<compile_context>
chip_gen: v7x
topology: tpu7x:2x2x1
jax: 0.10.0
libtpu: 0.0.40
codegen_flags: <defaults>
</compile_context>

<pallas_src>
import functools

import jax
import jax.numpy as jnp
from jax.experimental import pallas as pl
from jax.experimental.pallas import tpu as pltpu


def _round_up(x, m):
    return (x + m - 1) // m * m


def _pad2(a, rows, cols):
    r, c = a.shape
    if r == rows and c == cols:
        return a
    return jnp.pad(a, ((0, rows - r), (0, cols - c)))


# -----------------------------------------------------------------------------
# Kernel
# -----------------------------------------------------------------------------
def mlp_head_kernel(x_ref, w1_ref, b1_ref, w2_ref, b2_ref, w3_ref, b3_ref, o_ref):
    # Dropout(0.2) layers are identity in eval mode.
    # TODO(synk): training-mode dropout (pltpu.prng_* Bernoulli mask) not implemented.
    x = x_ref[...].astype(jnp.bfloat16)                     # fold f32->bf16 cast into kernel
    h1 = jnp.dot(x, w1_ref[...], preferred_element_type=jnp.float32) + b1_ref[...]
    h1 = jnp.maximum(h1, 0.0).astype(jnp.bfloat16)          # ReLU (after 2nd Dropout)
    h2 = jnp.dot(h1, w2_ref[...], preferred_element_type=jnp.float32) + b2_ref[...]
    h2 = jnp.maximum(h2, 0.0).astype(jnp.bfloat16)          # ReLU
    logits = jnp.dot(h2, w3_ref[...], preferred_element_type=jnp.float32) + b3_ref[...]
    o_ref[...] = logits.astype(o_ref.dtype)                 # bf16, lane-dense store


# -----------------------------------------------------------------------------
# One-time parameter preparation (model-load time, NOT per-call)
# -----------------------------------------------------------------------------
def prepare_head_params(w1, b1, w2, b2, w3, b3):
    """Cast weights to bf16 and pad to MXU-friendly shapes once.

    Weights are stored as [in, out] so the kernel computes `x @ W + b`
    (matching PyTorch's `x @ W_pt.T + b`).  Returns (params_tuple, n_outputs).
    """
    D, H1 = w1.shape
    H2 = w2.shape[1]
    n_out = w3.shape[1]
    Dp = _round_up(D, 128)
    H1p = _round_up(H1, 128)
    H2p = _round_up(H2, 128)
    OUTp = _round_up(max(n_out, 128), 128)      # lane-dense output width

    params = (
        _pad2(jnp.asarray(w1, jnp.bfloat16), Dp, H1p),
        _pad2(jnp.asarray(b1, jnp.float32).reshape(1, -1), 1, H1p),
        _pad2(jnp.asarray(w2, jnp.bfloat16), H1p, H2p),
        _pad2(jnp.asarray(b2, jnp.float32).reshape(1, -1), 1, H2p),
        _pad2(jnp.asarray(w3, jnp.bfloat16), H2p, OUTp),
        _pad2(jnp.asarray(b3, jnp.float32).reshape(1, -1), 1, OUTp),
    )
    # Materialize on device once so no cast/pad ops run per forward call.
    params = tuple(jax.block_until_ready(p) for p in params)
    return params, n_out


# -----------------------------------------------------------------------------
# Per-generation tile choice: 1 grid step on single-TC chips, 2 on v7x.
# -----------------------------------------------------------------------------
def default_tile_b(B, max_tile=512):
    try:
        kind = jax.devices()[0].device_kind.lower()
    except Exception:
        kind = ""
    num_tc = 2 if "v7" in kind else 1           # v5e/v6e: 1 TensorCore per chip
    Bp8 = _round_up(max(B, 8), 8)
    steps = max(num_tc, pl.cdiv(Bp8, max_tile))
    if Bp8 < 16 * num_tc:                       # too small to be worth splitting
        steps = 1
    return _round_up(pl.cdiv(Bp8, steps), 8)


# -----------------------------------------------------------------------------
# Forward
# -----------------------------------------------------------------------------
@functools.partial(jax.jit, static_argnames=("n_out", "tile_b"))
def base_head_forward(feats, params, *, n_out, tile_b):
    """Fused MLP head: feats [B, D] (f32) -> logits [B, n_out] (bf16)."""
    w1p, b1p, w2p, b2p, w3p, b3p = params
    B, D = feats.shape
    Dp, H1p = w1p.shape
    H2p = w2p.shape[1]
    OUTp = w3p.shape[1]
    Bp = _round_up(B, tile_b)

    # No-op when B is a tile multiple and D already lane-padded (the common case).
    xp = _pad2(feats, Bp, Dp)                    # stays f32; cast happens in-kernel

    grid = (Bp // tile_b,)

    flops = 2 * Bp * (Dp * H1p + H1p * H2p + H2p * OUTp)
    bytes_accessed = (
        xp.size * xp.dtype.itemsize                          # f32 features
        + (w1p.size + w2p.size + w3p.size) * 2               # bf16 weights
        + (b1p.size + b2p.size + b3p.size) * 4               # f32 biases
        + Bp * OUTp * 2                                      # bf16 output
    )

    out = pl.pallas_call(
        mlp_head_kernel,
        out_shape=jax.ShapeDtypeStruct((Bp, OUTp), jnp.bfloat16),
        grid_spec=pltpu.PrefetchScalarGridSpec(
            num_scalar_prefetch=0,
            grid=grid,
            in_specs=[
                pl.BlockSpec((tile_b, Dp), lambda i: (i, 0)),   # features tile (f32)
                pl.BlockSpec((Dp, H1p), lambda i: (0, 0)),      # W1 (resident, bf16)
                pl.BlockSpec((1, H1p), lambda i: (0, 0)),       # b1 (f32)
                pl.BlockSpec((H1p, H2p), lambda i: (0, 0)),     # W2
                pl.BlockSpec((1, H2p), lambda i: (0, 0)),       # b2
                pl.BlockSpec((H2p, OUTp), lambda i: (0, 0)),    # W3 (lane-padded)
                pl.BlockSpec((1, OUTp), lambda i: (0, 0)),      # b3
            ],
            out_specs=pl.BlockSpec((tile_b, OUTp), lambda i: (i, 0)),
        ),
        compiler_params=pltpu.CompilerParams(
            dimension_semantics=("parallel",),
        ),
        cost_estimate=pl.CostEstimate(
            flops=flops, transcendentals=0, bytes_accessed=bytes_accessed
        ),
    )(xp, w1p, b1p, w2p, b2p, w3p, b3p)

    # Tiny trailing slice: keep real rows / classes.  Callers that can consume
    # the padded (Bp, OUTp) slab directly (e.g. argmax over first n_out cols)
    # may skip this entirely.
    return out[:B, :n_out]


def init_linear_params(key, fan_in, fan_out):
    """Deterministic PyTorch-like (kaiming-uniform-ish) init, stored as [in, out]."""
    kw, kb = jax.random.split(key)
    bound = 1.0 / jnp.sqrt(fan_in)
    w = jax.random.uniform(kw, (fan_in, fan_out), jnp.float32, -bound, bound)
    b = jax.random.uniform(kb, (1, fan_out), jnp.float32, -bound, bound)
    return w, b


if __name__ == "__main__":
    # Module-consistent shapes: backbone flattened feature dim D = 512
    # (resnet18-like), hidden 512 -> 256, n_outputs = 2 (clean vs dirty).
    B, D, H1, H2, N_OUT = 256, 512, 512, 256, 2

    root = jax.random.PRNGKey(0)
    k_feat, k1, k2, k3 = jax.random.split(root, 4)

    # Stand-in for the (untranslatable) pretrained backbone output, already flattened.
    feats = jax.random.normal(k_feat, (B, D), jnp.float32)

    w1, b1 = init_linear_params(k1, D, H1)
    w2, b2 = init_linear_params(k2, H1, H2)
    w3, b3 = init_linear_params(k3, H2, N_OUT)

    # One-time model-load preparation (cast+pad hoisted out of the forward path).
    params, n_out = prepare_head_params(w1, b1, w2, b2, w3, b3)

    # Grid length 1 on v5e/v6e (tile_b = 256), 2 parallel steps on v7x (tile_b = 128).
    tile_b = default_tile_b(B)

    logits = base_head_forward(feats, params, n_out=n_out, tile_b=tile_b)
    logits = jax.block_until_ready(logits)

    # Pure-JAX reference with the same mixed precision (bf16 operands, f32 accum,
    # bf16 output), eval-mode dropout = identity.
    xb = feats.astype(jnp.bfloat16)
    w1b, w2b, w3b = (w.astype(jnp.bfloat16) for w in (w1, w2, w3))
    h1 = jnp.maximum(jnp.dot(xb, w1b, preferred_element_type=jnp.float32) + b1, 0.0)
    h1 = h1.astype(jnp.bfloat16)
    h2 = jnp.maximum(jnp.dot(h1, w2b, preferred_element_type=jnp.float32) + b2, 0.0)
    h2 = h2.astype(jnp.bfloat16)
    ref = (jnp.dot(h2, w3b, preferred_element_type=jnp.float32) + b3).astype(jnp.bfloat16)

    assert logits.shape == (B, N_OUT)
    assert logits.dtype == jnp.bfloat16
    assert jnp.allclose(
        logits.astype(jnp.float32), ref.astype(jnp.float32), atol=3e-2, rtol=3e-2
    ), "mismatch vs JAX reference"

    print("KERNEL_OK")
</pallas_src>

<mosaic_0001>
module attributes {stable_mosaic.version = 11 : i64} {
  func.func @mlp_head_kernel(%arg0: i32, %arg1: memref<256x512xf32, #tpu.memory_space<vmem>>, %arg2: memref<512x512xbf16, #tpu.memory_space<vmem>>, %arg3: memref<1x512xf32, #tpu.memory_space<vmem>>, %arg4: memref<512x256xbf16, #tpu.memory_space<vmem>>, %arg5: memref<1x256xf32, #tpu.memory_space<vmem>>, %arg6: memref<256x128xbf16, #tpu.memory_space<vmem>>, %arg7: memref<1x128xf32, #tpu.memory_space<vmem>>, %arg8: memref<256x128xbf16, #tpu.memory_space<vmem>>) attributes {dimension_semantics = [#tpu.dimension_semantics<parallel>], iteration_bounds = array<i64: 1>, scalar_prefetch = 0 : i64, scratch_operands = 0 : i64, tpu.core_type = #tpu.core_type<tc>, window_params = [{transform_indices = @transform_0, window_bounds = array<i64: 256, 512>}, {pipeline_mode = #tpu.pipeline_mode<synchronous>, transform_indices = @transform_1, window_bounds = array<i64: 512, 512>}, {pipeline_mode = #tpu.pipeline_mode<synchronous>, transform_indices = @transform_2, window_bounds = array<i64: 1, 512>}, {pipeline_mode = #tpu.pipeline_mode<synchronous>, transform_indices = @transform_3, window_bounds = array<i64: 512, 256>}, {pipeline_mode = #tpu.pipeline_mode<synchronous>, transform_indices = @transform_4, window_bounds = array<i64: 1, 256>}, {pipeline_mode = #tpu.pipeline_mode<synchronous>, transform_indices = @transform_5, window_bounds = array<i64: 256, 128>}, {pipeline_mode = #tpu.pipeline_mode<synchronous>, transform_indices = @transform_6, window_bounds = array<i64: 1, 128>}, {transform_indices = @transform_7, window_bounds = array<i64: 256, 128>}]} {
    %c0 = arith.constant 0 : index
    %c0_0 = arith.constant 0 : index
    %0 = vector.load %arg1[%c0, %c0_0] : memref<256x512xf32, #tpu.memory_space<vmem>>, vector<256x512xf32>
    %1 = arith.truncf %0 : vector<256x512xf32> to vector<256x512xbf16>
    %c0_1 = arith.constant 0 : index
    %c0_2 = arith.constant 0 : index
    %2 = vector.load %arg2[%c0_1, %c0_2] : memref<512x512xbf16, #tpu.memory_space<vmem>>, vector<512x512xbf16>
    %cst = arith.constant dense<0.000000e+00> : vector<256x512xf32>
    %3 = tpu.matmul %1, %2, %cst {dimension_numbers = #tpu.dot_dimension_numbers<[1], [0], [0], [1], [0, 0, 1, 1], [], []>} : vector<256x512xbf16>, vector<512x512xbf16>, vector<256x512xf32> -> vector<256x512xf32>
    %c0_3 = arith.constant 0 : index
    %c0_4 = arith.constant 0 : index
    %4 = vector.load %arg3[%c0_3, %c0_4] : memref<1x512xf32, #tpu.memory_space<vmem>>, vector<1x512xf32>
    %5 = vector.broadcast %4 : vector<1x512xf32> to vector<256x512xf32>
    %6 = arith.addf %3, %5 : vector<256x512xf32>
    %cst_5 = arith.constant 0.000000e+00 : f32
    %7 = vector.broadcast %cst_5 : f32 to vector<256x512xf32>
    %8 = arith.maximumf %6, %7 : vector<256x512xf32>
    %9 = arith.truncf %8 : vector<256x512xf32> to vector<256x512xbf16>
    %c0_6 = arith.constant 0 : index
    %c0_7 = arith.constant 0 : index
    %10 = vector.load %arg4[%c0_6, %c0_7] : memref<512x256xbf16, #tpu.memory_space<vmem>>, vector<512x256xbf16>
    %cst_8 = arith.constant dense<0.000000e+00> : vector<256x256xf32>
    %11 = tpu.matmul %9, %10, %cst_8 {dimension_numbers = #tpu.dot_dimension_numbers<[1], [0], [0], [1], [0, 0, 1, 1], [], []>} : vector<256x512xbf16>, vector<512x256xbf16>, vector<256x256xf32> -> vector<256x256xf32>
    %c0_9 = arith.constant 0 : index
    %c0_10 = arith.constant 0 : index
    %12 = vector.load %arg5[%c0_9, %c0_10] : memref<1x256xf32, #tpu.memory_space<vmem>>, vector<1x256xf32>
    %13 = vector.broadcast %12 : vector<1x256xf32> to vector<256x256xf32>
    %14 = arith.addf %11, %13 : vector<256x256xf32>
    %cst_11 = arith.constant 0.000000e+00 : f32
    %15 = vector.broadcast %cst_11 : f32 to vector<256x256xf32>
    %16 = arith.maximumf %14, %15 : vector<256x256xf32>
    %17 = arith.truncf %16 : vector<256x256xf32> to vector<256x256xbf16>
    %c0_12 = arith.constant 0 : index
    %c0_13 = arith.constant 0 : index
    %18 = vector.load %arg6[%c0_12, %c0_13] : memref<256x128xbf16, #tpu.memory_space<vmem>>, vector<256x128xbf16>
    %cst_14 = arith.constant dense<0.000000e+00> : vector<256x128xf32>
    %19 = tpu.matmul %17, %18, %cst_14 {dimension_numbers = #tpu.dot_dimension_numbers<[1], [0], [0], [1], [0, 0, 1, 1], [], []>} : vector<256x256xbf16>, vector<256x128xbf16>, vector<256x128xf32> -> vector<256x128xf32>
    %c0_15 = arith.constant 0 : index
    %c0_16 = arith.constant 0 : index
    %20 = vector.load %arg7[%c0_15, %c0_16] : memref<1x128xf32, #tpu.memory_space<vmem>>, vector<1x128xf32>
    %21 = vector.broadcast %20 : vector<1x128xf32> to vector<256x128xf32>
    %22 = arith.addf %19, %21 : vector<256x128xf32>
    %23 = arith.truncf %22 : vector<256x128xf32> to vector<256x128xbf16>
    %c0_17 = arith.constant 0 : index
    %c0_18 = arith.constant 0 : index
    %24 = vector.load %arg8[%c0_17, %c0_18] : memref<256x128xbf16, #tpu.memory_space<vmem>>, vector<256x128xbf16>
    tpu.vector_store %arg8[%c0_17, %c0_18], %23 {strides = array<i32>} : memref<256x128xbf16, #tpu.memory_space<vmem>>, vector<256x128xbf16>,
    return
  }
  func.func @transform_0(%arg0: i32) -> (i32, i32) {
    %c0_i32 = arith.constant 0 : i32
    %c0_i32_0 = arith.constant 0 : i32
    return %arg0, %c0_i32 : i32, i32
  }
  func.func @transform_1(%arg0: i32) -> (i32, i32) {
    %c0_i32 = arith.constant 0 : i32
    %c0_i32_0 = arith.constant 0 : i32
    %c0_i32_1 = arith.constant 0 : i32
    return %c0_i32, %c0_i32_0 : i32, i32
  }
  func.func @transform_2(%arg0: i32) -> (i32, i32) {
    %c0_i32 = arith.constant 0 : i32
    %c0_i32_0 = arith.constant 0 : i32
    %c0_i32_1 = arith.constant 0 : i32
    return %c0_i32, %c0_i32_0 : i32, i32
  }
  func.func @transform_3(%arg0: i32) -> (i32, i32) {
    %c0_i32 = arith.constant 0 : i32
    %c0_i32_0 = arith.constant 0 : i32
    %c0_i32_1 = arith.constant 0 : i32
    return %c0_i32, %c0_i32_0 : i32, i32
  }
  func.func @transform_4(%arg0: i32) -> (i32, i32) {
    %c0_i32 = arith.constant 0 : i32
    %c0_i32_0 = arith.constant 0 : i32
    %c0_i32_1 = arith.constant 0 : i32
    return %c0_i32, %c0_i32_0 : i32, i32
  }
  func.func @transform_5(%arg0: i32) -> (i32, i32) {
    %c0_i32 = arith.constant 0 : i32
    %c0_i32_0 = arith.constant 0 : i32
    %c0_i32_1 = arith.constant 0 : i32
    return %c0_i32, %c0_i32_0 : i32, i32
  }
  func.func @transform_6(%arg0: i32) -> (i32, i32) {
    %c0_i32 = arith.constant 0 : i32
    %c0_i32_0 = arith.constant 0 : i32
    %c0_i32_1 = arith.constant 0 : i32
    return %c0_i32, %c0_i32_0 : i32, i32
  }
  func.func @transform_7(%arg0: i32) -> (i32, i32) {
    %c0_i32 = arith.constant 0 : i32
    %c0_i32_0 = arith.constant 0 : i32
    return %arg0, %c0_i32 : i32, i32
  }
}

</mosaic_0001>

<llo_original>
// kernel: base_head_forward.1
$region0: #{base_head_forward.1}
  #allocation0 [shape = 'u32[]', space=smem, size = 0x4, offset = 0x4, fixed_abs, tag = 'smem constant byte address 0x4 - core index']
  #allocation1 [shape = 'u32[144,128]{1,0:T(1,128)}', space=vmem, size = 0x12000, scoped, tag = 'internal scratch']
  %s0 = inlined_call_operand.hbm [shape: f32[256,512], index: 0, kind: input, shape index: {}]
  %s1 = inlined_call_operand.hbm [shape: bf16[512,512], index: 1, kind: input, shape index: {}]
  %s2 = inlined_call_operand.vmem [shape: f32[1,512], index: 2, kind: input, shape index: {}]
  %s3 = inlined_call_operand.hbm [shape: bf16[512,256], index: 3, kind: input, shape index: {}]
  %s4 = inlined_call_operand.vmem [shape: f32[1,256], index: 4, kind: input, shape index: {}]
  %s5 = inlined_call_operand.hbm [shape: bf16[256,128], index: 5, kind: input, shape index: {}]
  %s6 = inlined_call_operand.vmem [shape: f32[1,128], index: 6, kind: input, shape index: {}]
  %s7 = inlined_call_operand.vmem [shape: bf16[256,128], index: 7, kind: output, shape index: {}]
  %s8 = sld [smem:[#allocation0]]
  $region54: #{base_head_forward.1} parent=0
    _
  %s10 = ssub.s32 1, %s8
  %s11 = scalar_select 0, %s10, %s8
  $region1: #{base_head_forward.1} parent=0
    #allocation2 [shape = 'u8[524288]{0}', space=vmem, size = 0x80000, scoped, tag = 'input window, operand 0, single buffered']
    #allocation3 [shape = 's32[1]{0}', space=sflag, size = 0x4, scoped, tag = 'scoped memory for base_head_forward.1']
    #allocation4 [shape = 'u8[524288]{0}', space=vmem, size = 0x80000, scoped, tag = 'input window, operand 1, single buffered']
    #allocation5 [shape = 's32[1]{0}', space=sflag, size = 0x4, scoped, tag = 'scoped memory for base_head_forward.1']
    #allocation6 [shape = 'u8[262144]{0}', space=vmem, size = 0x40000, scoped, tag = 'input window, operand 3, single buffered']
    #allocation7 [shape = 'u8[65536]{0}', space=vmem, size = 0x10000, scoped, tag = 'input window, operand 5, single buffered']
    #allocation8 [shape = 's32[1]{0}', space=sflag, size = 0x4, scoped, tag = 'scoped memory for base_head_forward.1']
    %12 = vsyncpa [#allocation3], 0
    %13 = vsyncpa [#allocation5], 0
    %14 = vsyncpa [#allocation8], 0
    // Predicated region
    $region2: #{base_head_forward.1} parent=1 // pred_check
      _
    $region3: #{base_head_forward.1} parent=1 // pred_check_branch
      %16 = sbr.rel (0) target = $region5
    $region4: #{base_head_forward.1} parent=1 // pred_region
      %s18 = ssub.s32 16384, 16384
      %19 = vsyncadd [#allocation3], %s18
      %s20 = sshll.u32 [#allocation2], 4
      %s21 = int_to_ptr.vmem [resolvable:$true] %s20
      %26 = dma.hbm_to_vmem [thread:$0]  %s0, 16384, %s21, [#allocation3], 512, 512, 32
    $region5: #{base_head_forward.1} parent=1 // pred_fallthru
      _
    // Predicated region
    $region6: #{base_head_forward.1} parent=1 // pred_check
      _
    $region7: #{base_head_forward.1} parent=1 // pred_check_branch
      %28 = sbr.rel (0) target = $region9
    $region8: #{base_head_forward.1} parent=1 // pred_region
      %s30 = ssub.s32 16384, 16384
      %31 = vsyncadd [#allocation5], %s30
      %s32 = sshll.u32 [#allocation4], 4
      %s33 = int_to_ptr.vmem [resolvable:$true] %s32
      %38 = dma.hbm_to_vmem [thread:$0]  %s1, 16384, %s33, [#allocation5], 256, 256, 16
    $region9: #{base_head_forward.1} parent=1 // pred_fallthru
      _
    // Predicated region
    $region10: #{base_head_forward.1} parent=1 // pred_check
      _
    $region11: #{base_head_forward.1} parent=1 // pred_check_branch
      %40 = sbr.rel (0) target = $region13
    $region12: #{base_head_forward.1} parent=1 // pred_region
      _
    $region13: #{base_head_forward.1} parent=1 // pred_fallthru
      _
    // Predicated region
    $region14: #{base_head_forward.1} parent=1 // pred_check
      _
    $region15: #{base_head_forward.1} parent=1 // pred_check_branch
      %42 = sbr.rel (0) target = $region17
    $region16: #{base_head_forward.1} parent=1 // pred_region
      %s44 = ssub.s32 8192, 8192
      %45 = vsyncadd [#allocation5], %s44
      %s46 = sshll.u32 [#allocation6], 4
      %s47 = int_to_ptr.vmem [resolvable:$true] %s46
      %52 = dma.hbm_to_vmem [thread:$0]  %s3, 8192, %s47, [#allocation5], 128, 128, 8
    $region17: #{base_head_forward.1} parent=1 // pred_fallthru
      _
    // Predicated region
    $region18: #{base_head_forward.1} parent=1 // pred_check
      _
    $region19: #{base_head_forward.1} parent=1 // pred_check_branch
      %54 = sbr.rel (0) target = $region21
    $region20: #{base_head_forward.1} parent=1 // pred_region
      _
    $region21: #{base_head_forward.1} parent=1 // pred_fallthru
      _
    // Predicated region
    $region22: #{base_head_forward.1} parent=1 // pred_check
      _
    $region23: #{base_head_forward.1} parent=1 // pred_check_branch
      %56 = sbr.rel (0) target = $region25
    $region24: #{base_head_forward.1} parent=1 // pred_region
      %s58 = ssub.s32 2048, 2048
      %59 = vsyncadd [#allocation8], %s58
      %s60 = sshll.u32 [#allocation7], 4
      %s61 = int_to_ptr.vmem [resolvable:$true] %s60
      %66 = dma.hbm_to_vmem [thread:$0]  %s5, 2048, %s61, [#allocation8], 64, 64, 4
    $region25: #{base_head_forward.1} parent=1 // pred_fallthru
      _
    // Predicated region
    $region26: #{base_head_forward.1} parent=1 // pred_check
      _
    $region27: #{base_head_forward.1} parent=1 // pred_check_branch
      %68 = sbr.rel (0) target = $region29
    $region28: #{base_head_forward.1} parent=1 // pred_region
      _
    $region29: #{base_head_forward.1} parent=1 // pred_fallthru
      _
    // Predicated region
    $region30: #{base_head_forward.1} parent=1 // pred_check
      _
    $region31: #{base_head_forward.1} parent=1 // pred_check_branch
      %70 = sbr.rel (0) target = $region33
    $region32: #{base_head_forward.1} parent=1 // pred_region
      %71 = dma.done [#allocation3], 16384
    $region33: #{base_head_forward.1} parent=1 // pred_fallthru
      _
    // Predicated region
    $region34: #{base_head_forward.1} parent=1 // pred_check
      _
    $region35: #{base_head_forward.1} parent=1 // pred_check_branch
      %73 = sbr.rel (0) target = $region37
    $region36: #{base_head_forward.1} parent=1 // pred_region
      %74 = dma.done [#allocation5], 16384
    $region37: #{base_head_forward.1} parent=1 // pred_fallthru
      _
    // Predicated region
    $region38: #{base_head_forward.1} parent=1 // pred_check
      _
    $region39: #{base_head_forward.1} parent=1 // pred_check_branch
      %76 = sbr.rel (0) target = $region41
    $region40: #{base_head_forward.1} parent=1 // pred_region
      %77 = dma.done [#allocation5], 8192
    $region41: #{base_head_forward.1} parent=1 // pred_fallthru
      _
    // Predicated region
    $region42: #{base_head_forward.1} parent=1 // pred_check
      _
    $region43: #{base_head_forward.1} parent=1 // pred_check_branch
      %79 = sbr.rel (0) target = $region45
    $region44: #{base_head_forward.1} parent=1 // pred_region
      %80 = dma.done [#allocation8], 2048
    $region45: #{base_head_forward.1} parent=1 // pred_fallthru
      _
    %v82 = vld [vmem:[#allocation2] sm:$0xff]
    %v83 = vld [vmem:[#allocation2 + $0x8] sm:$0xff]
    %v84 = vld [vmem:[#allocation2 + $0x10] sm:$0xff]
    %v85 = vld [vmem:[#allocation2 + $0x18] sm:$0xff]
    %v86 = vld [vmem:[#allocation2 + $0x20] sm:$0xff]
    %v87 = vld [vmem:[#allocation2 + $0x28] sm:$0xff]
    %v88 = vld [vmem:[#allocation2 + $0x30] sm:$0xff]
    %v89 = vld [vmem:[#allocation2 + $0x38] sm:$0xff]
    %v90 = vld [vmem:[#allocation2 + $0x40] sm:$0xff]
    %v91 = vld [vmem:[#allocation2 + $0x48] sm:$0xff]
    %v92 = vld [vmem:[#allocation2 + $0x50] sm:$0xff]
    %v93 = vld [vmem:[#allocation2 + $0x58] sm:$0xff]
    %v94 = vld [vmem:[#allocation2 + $0x60] sm:$0xff]
    %v95 = vld [vmem:[#allocation2 + $0x68] sm:$0xff]
    %v96 = vld [vmem:[#allocation2 + $0x70] sm:$0xff]
    %v97 = vld [vmem:[#allocation2 + $0x78] sm:$0xff]
    %v98 = vld [vmem:[#allocation2 + $0x80] sm:$0xff]
    %v99 = vld [vmem:[#allocation2 + $0x88] sm:$0xff]
    %v100 = vld [vmem:[#allocation2 + $0x90] sm:$0xff]
    %v101 = vld [vmem:[#allocation2 + $0x98] sm:$0xff]
    %v102 = vld [vmem:[#allocation2 + $0xa0] sm:$0xff]
    %v103 = vld [vmem:[#allocation2 + $0xa8] sm:$0xff]
    %v104 = vld [vmem:[#allocation2 + $0xb0] sm:$0xff]
    %v105 = vld [vmem:[#allocation2 + $0xb8] sm:$0xff]
    %v106 = vld [vmem:[#allocation2 + $0xc0] sm:$0xff]
    %v107 = vld [vmem:[#allocation2 + $0xc8] sm:$0xff]
    %v108 = vld [vmem:[#allocation2 + $0xd0] sm:$0xff]
    %v109 = vld [vmem:[#allocation2 + $0xd8] sm:$0xff]
    %v110 = vld [vmem:[#allocation2 + $0xe0] sm:$0xff]
    %v111 = vld [vmem:[#allocation2 + $0xe8] sm:$0xff]
    %v112 = vld [vmem:[#allocation2 + $0xf0] sm:$0xff]
    %v113 = vld [vmem:[#allocation2 + $0xf8] sm:$0xff]
    %v114 = vld [vmem:[#allocation2 + $0x100] sm:$0xff]
    %v115 = vld [vmem:[#allocation2 + $0x108] sm:$0xff]
    %v116 = vld [vmem:[#allocation2 + $0x110] sm:$0xff]
    %v117 = vld [vmem:[#allocation2 + $0x118] sm:$0xff]
    %v118 = vld [vmem:[#allocation2 + $0x120] sm:$0xff]
    %v119 = vld [vmem:[#allocation2 + $0x128] sm:$0xff]
    %v120 = vld [vmem:[#allocation2 + $0x130] sm:$0xff]
    %v121 = vld [vmem:[#allocation2 + $0x138] sm:$0xff]
    %v122 = vld [vmem:[#allocation2 + $0x140] sm:$0xff]
    %v123 = vld [vmem:[#allocation2 + $0x148] sm:$0xff]
    %v124 = vld [vmem:[#allocation2 + $0x150] sm:$0xff]
    %v125 = vld [vmem:[#allocation2 + $0x158] sm:$0xff]
    %v126 = vld [vmem:[#allocation2 + $0x160] sm:$0xff]
    %v127 = vld [vmem:[#allocation2 + $0x168] sm:$0xff]
    %v128 = vld [vmem:[#allocation2 + $0x170] sm:$0xff]
    %v129 = vld [vmem:[#allocation2 + $0x178] sm:$0xff]
    %v130 = vld [vmem:[#allocation2 + $0x180] sm:$0xff]
    %v131 = vld [vmem:[#allocation2 + $0x188] sm:$0xff]
    %v132 = vld [vmem:[#allocation2 + $0x190] sm:$0xff]
    %v133 = vld [vmem:[#allocation2 + $0x198] sm:$0xff]
    %v134 = vld [vmem:[#allocation2 + $0x1a0] sm:$0xff]
    %v135 = vld [vmem:[#allocation2 + $0x1a8] sm:$0xff]
    %v136 = vld [vmem:[#allocation2 + $0x1b0] sm:$0xff]
    %v137 = vld [vmem:[#allocation2 + $0x1b8] sm:$0xff]
    %v138 = vld [vmem:[#allocation2 + $0x1c0] sm:$0xff]
    %v139 = vld [vmem:[#allocation2 + $0x1c8] sm:$0xff]
    %v140 = vld [vmem:[#allocation2 + $0x1d0] sm:$0xff]
    %v141 = vld [vmem:[#allocation2 + $0x1d8] sm:$0xff]
    %v142 = vld [vmem:[#allocation2 + $0x1e0] sm:$0xff]
    %v143 = vld [vmem:[#allocation2 + $0x1e8] sm:$0xff]
    %v144 = vld [vmem:[#allocation2 + $0x1f0] sm:$0xff]
    %v145 = vld [vmem:[#allocation2 + $0x1f8] sm:$0xff]
    %v146 = vld [vmem:[#allocation2 + $0x200] sm:$0xff]
    %v147 = vld [vmem:[#allocation2 + $0x208] sm:$0xff]
    %v148 = vld [vmem:[#allocation2 + $0x210] sm:$0xff]
    %v149 = vld [vmem:[#allocation2 + $0x218] sm:$0xff]
    %v150 = vld [vmem:[#allocation2 + $0x220] sm:$0xff]
    %v151 = vld [vmem:[#allocation2 + $0x228] sm:$0xff]
    %v152 = vld [vmem:[#allocation2 + $0x230] sm:$0xff]
    %v153 = vld [vmem:[#allocation2 + $0x238] sm:$0xff]
    %v154 = vld [vmem:[#allocation2 + $0x240] sm:$0xff]
    %v155 = vld [vmem:[#allocation2 + $0x248] sm:$0xff]
    %v156 = vld [vmem:[#allocation2 + $0x250] sm:$0xff]
    %v157 = vld [vmem:[#allocation2 + $0x258] sm:$0xff]
    %v158 = vld [vmem:[#allocation2 + $0x260] sm:$0xff]
    %v159 = vld [vmem:[#allocation2 + $0x268] sm:$0xff]
    %v160 = vld [vmem:[#allocation2 + $0x270] sm:$0xff]
    %v161 = vld [vmem:[#allocation2 + $0x278] sm:$0xff]
    %v162 = vld [vmem:[#allocation2 + $0x280] sm:$0xff]
    %v163 = vld [vmem:[#allocation2 + $0x288] sm:$0xff]
    %v164 = vld [vmem:[#allocation2 + $0x290] sm:$0xff]
    %v165 = vld [vmem:[#allocation2 + $0x298] sm:$0xff]
    %v166 = vld [vmem:[#allocation2 + $0x2a0] sm:$0xff]
    %v167 = vld [vmem:[#allocation2 + $0x2a8] sm:$0xff]
    %v168 = vld [vmem:[#allocation2 + $0x2b0] sm:$0xff]
    %v169 = vld [vmem:[#allocation2 + $0x2b8] sm:$0xff]
    %v170 = vld [vmem:[#allocation2 + $0x2c0] sm:$0xff]
    %v171 = vld [vmem:[#allocation2 + $0x2c8] sm:$0xff]
    %v172 = vld [vmem:[#allocation2 + $0x2d0] sm:$0xff]
    %v173 = vld [vmem:[#allocation2 + $0x2d8] sm:$0xff]
    %v174 = vld [vmem:[#allocation2 + $0x2e0] sm:$0xff]
    %v175 = vld [vmem:[#allocation2 + $0x2e8] sm:$0xff]
    %v176 = vld [vmem:[#allocation2 + $0x2f0] sm:$0xff]
    %v177 = vld [vmem:[#allocation2 + $0x2f8] sm:$0xff]
    %v178 = vld [vmem:[#allocation2 + $0x300] sm:$0xff]
    %v179 = vld [vmem:[#allocation2 + $0x308] sm:$0xff]
    %v180 = vld [vmem:[#allocation2 + $0x310] sm:$0xff]
    %v181 = vld [vmem:[#allocation2 + $0x318] sm:$0xff]
    %v182 = vld [vmem:[#allocation2 + $0x320] sm:$0xff]
    %v183 = vld [vmem:[#allocation2 + $0x328] sm:$0xff]
    %v184 = vld [vmem:[#allocation2 + $0x330] sm:$0xff]
    %v185 = vld [vmem:[#allocation2 + $0x338] sm:$0xff]
    %v186 = vld [vmem:[#allocation2 + $0x340] sm:$0xff]
    %v187 = vld [vmem:[#allocation2 + $0x348] sm:$0xff]
    %v188 = vld [vmem:[#allocation2 + $0x350] sm:$0xff]
    %v189 = vld [vmem:[#allocation2 + $0x358] sm:$0xff]
    %v190 = vld [vmem:[#allocation2 + $0x360] sm:$0xff]
    %v191 = vld [vmem:[#allocation2 + $0x368] sm:$0xff]
    %v192 = vld [vmem:[#allocation2 + $0x370] sm:$0xff]
    %v193 = vld [vmem:[#allocation2 + $0x378] sm:$0xff]
    %v194 = vld [vmem:[#allocation2 + $0x380] sm:$0xff]
    %v195 = vld [vmem:[#allocation2 + $0x388] sm:$0xff]
    %v196 = vld [vmem:[#allocation2 + $0x390] sm:$0xff]
    %v197 = vld [vmem:[#allocation2 + $0x398] sm:$0xff]
    %v198 = vld [vmem:[#allocation2 + $0x3a0] sm:$0xff]
    %v199 = vld [vmem:[#allocation2 + $0x3a8] sm:$0xff]
    %v200 = vld [vmem:[#allocation2 + $0x3b0] sm:$0xff]
    %v201 = vld [vmem:[#allocation2 + $0x3b8] sm:$0xff]
    %v202 = vld [vmem:[#allocation2 + $0x3c0] sm:$0xff]
    %v203 = vld [vmem:[#allocation2 + $0x3c8] sm:$0xff]
    %v204 = vld [vmem:[#allocation2 + $0x3d0] sm:$0xff]
    %v205 = vld [vmem:[#allocation2 + $0x3d8] sm:$0xff]
    %v206 = vld [vmem:[#allocation2 + $0x3e0] sm:$0xff]
    %v207 = vld [vmem:[#allocation2 + $0x3e8] sm:$0xff]
    %v208 = vld [vmem:[#allocation2 + $0x3f0] sm:$0xff]
    %v209 = vld [vmem:[#allocation2 + $0x3f8] sm:$0xff]
    %v210 = vpack.c.bf16 %v86, %v82
    %v211 = vpack.c.bf16 %v87, %v83
    %v212 = vpack.c.bf16 %v88, %v84
    %v213 = vpack.c.bf16 %v89, %v85
    %v214 = vpack.c.bf16 %v94, %v90
    %v215 = vpack.c.bf16 %v95, %v91
    %v216 = vpack.c.bf16 %v96, %v92
    %v217 = vpack.c.bf16 %v97, %v93
    %v218 = vpack.c.bf16 %v102, %v98
    %v219 = vpack.c.bf16 %v103, %v99
    %v220 = vpack.c.bf16 %v104, %v100
    %v221 = vpack.c.bf16 %v105, %v101
    %v222 = vpack.c.bf16 %v110, %v106
    %v223 = vpack.c.bf16 %v111, %v107
    %v224 = vpack.c.bf16 %v112, %v108
    %v225 = vpack.c.bf16 %v113, %v109
    %v226 = vpack.c.bf16 %v118, %v114
    %v227 = vpack.c.bf16 %v119, %v115
    %v228 = vpack.c.bf16 %v120, %v116
    %v229 = vpack.c.bf16 %v121, %v117
    %v230 = vpack.c.bf16 %v126, %v122
    %v231 = vpack.c.bf16 %v127, %v123
    %v232 = vpack.c.bf16 %v128, %v124
    %v233 = vpack.c.bf16 %v129, %v125
    %v234 = vpack.c.bf16 %v134, %v130
    %v235 = vpack.c.bf16 %v135, %v131
    %v236 = vpack.c.bf16 %v136, %v132
    %v237 = vpack.c.bf16 %v137, %v133
    %v238 = vpack.c.bf16 %v142, %v138
    %v239 = vpack.c.bf16 %v143, %v139
    %v240 = vpack.c.bf16 %v144, %v140
    %v241 = vpack.c.bf16 %v145, %v141
    %v242 = vpack.c.bf16 %v150, %v146
    %v243 = vpack.c.bf16 %v151, %v147
    %v244 = vpack.c.bf16 %v152, %v148
    %v245 = vpack.c.bf16 %v153, %v149
    %v246 = vpack.c.bf16 %v158, %v154
    %v247 = vpack.c.bf16 %v159, %v155
    %v248 = vpack.c.bf16 %v160, %v156
    %v249 = vpack.c.bf16 %v161, %v157
    %v250 = vpack.c.bf16 %v166, %v162
    %v251 = vpack.c.bf16 %v167, %v163
    %v252 = vpack.c.bf16 %v168, %v164
    %v253 = vpack.c.bf16 %v169, %v165
    %v254 = vpack.c.bf16 %v174, %v170
    %v255 = vpack.c.bf16 %v175, %v171
    %v256 = vpack.c.bf16 %v176, %v172
    %v257 = vpack.c.bf16 %v177, %v173
    %v258 = vpack.c.bf16 %v182, %v178
    %v259 = vpack.c.bf16 %v183, %v179
    %v260 = vpack.c.bf16 %v184, %v180
    %v261 = vpack.c.bf16 %v185, %v181
    %v262 = vpack.c.bf16 %v190, %v186
    %v263 = vpack.c.bf16 %v191, %v187
    %v264 = vpack.c.bf16 %v192, %v188
    %v265 = vpack.c.bf16 %v193, %v189
    %v266 = vpack.c.bf16 %v198, %v194
    %v267 = vpack.c.bf16 %v199, %v195
    %v268 = vpack.c.bf16 %v200, %v196
    %v269 = vpack.c.bf16 %v201, %v197
    %v270 = vpack.c.bf16 %v206, %v202
    %v271 = vpack.c.bf16 %v207, %v203
    %v272 = vpack.c.bf16 %v208, %v204
    %v273 = vpack.c.bf16 %v209, %v205
    %v274 = vld [vmem:[#allocation4] sm:$0xff]
    %v275 = vld [vmem:[#allocation4 + $0x8] sm:$0xff]
    %v276 = vld [vmem:[#allocation4 + $0x10] sm:$0xff]
    %v277 = vld [vmem:[#allocation4 + $0x18] sm:$0xff]
    %v278 = vld [vmem:[#allocation4 + $0x20] sm:$0xff]
    %v279 = vld [vmem:[#allocation4 + $0x28] sm:$0xff]
    %v280 = vld [vmem:[#allocation4 + $0x30] sm:$0xff]
    %v281 = vld [vmem:[#allocation4 + $0x38] sm:$0xff]
    %v282 = vld [vmem:[#allocation4 + $0x40] sm:$0xff]
    %v283 = vld [vmem:[#allocation4 + $0x48] sm:$0xff]
    %v284 = vld [vmem:[#allocation4 + $0x50] sm:$0xff]
    %v285 = vld [vmem:[#allocation4 + $0x58] sm:$0xff]
    %v286 = vld [vmem:[#allocation4 + $0x60] sm:$0xff]
    %v287 = vld [vmem:[#allocation4 + $0x68] sm:$0xff]
    %v288 = vld [vmem:[#allocation4 + $0x70] sm:$0xff]
    %v289 = vld [vmem:[#allocation4 + $0x78] sm:$0xff]
    %v290 = vld [vmem:[#allocation4 + $0x80] sm:$0xff]
    %v291 = vld [vmem:[#allocation4 + $0x88] sm:$0xff]
    %v292 = vld [vmem:[#allocation4 + $0x90] sm:$0xff]
    %v293 = vld [vmem:[#allocation4 + $0x98] sm:$0xff]
    %v294 = vld [vmem:[#allocation4 + $0xa0] sm:$0xff]
    %v295 = vld [vmem:[#allocation4 + $0xa8] sm:$0xff]
    %v296 = vld [vmem:[#allocation4 + $0xb0] sm:$0xff]
    %v297 = vld [vmem:[#allocation4 + $0xb8] sm:$0xff]
    %v298 = vld [vmem:[#allocation4 + $0xc0] sm:$0xff]
    %v299 = vld [vmem:[#allocation4 + $0xc8] sm:$0xff]
    %v300 = vld [vmem:[#allocation4 + $0xd0] sm:$0xff]
    %v301 = vld [vmem:[#allocation4 + $0xd8] sm:$0xff]
    %v302 = vld [vmem:[#allocation4 + $0xe0] sm:$0xff]
    %v303 = vld [vmem:[#allocation4 + $0xe8] sm:$0xff]
    %v304 = vld [vmem:[#allocation4 + $0xf0] sm:$0xff]
    %v305 = vld [vmem:[#allocation4 + $0xf8] sm:$0xff]
    %v306 = vld [vmem:[#allocation4 + $0x100] sm:$0xff]
    %v307 = vld [vmem:[#allocation4 + $0x108] sm:$0xff]
    %v308 = vld [vmem:[#allocation4 + $0x110] sm:$0xff]
    %v309 = vld [vmem:[#allocation4 + $0x118] sm:$0xff]
    %v310 = vld [vmem:[#allocation4 + $0x120] sm:$0xff]
    %v311 = vld [vmem:[#allocation4 + $0x128] sm:$0xff]
    %v312 = vld [vmem:[#allocation4 + $0x130] sm:$0xff]
    %v313 = vld [vmem:[#allocation4 + $0x138] sm:$0xff]
    %v314 = vld [vmem:[#allocation4 + $0x140] sm:$0xff]
    %v315 = vld [vmem:[#allocation4 + $0x148] sm:$0xff]
    %v316 = vld [vmem:[#allocation4 + $0x150] sm:$0xff]
    %v317 = vld [vmem:[#allocation4 + $0x158] sm:$0xff]
    %v318 = vld [vmem:[#allocation4 + $0x160] sm:$0xff]
    %v319 = vld [vmem:[#allocation4 + $0x168] sm:$0xff]
    %v320 = vld [vmem:[#allocation4 + $0x170] sm:$0xff]
    %v321 = vld [vmem:[#allocation4 + $0x178] sm:$0xff]
    %v322 = vld [vmem:[#allocation4 + $0x180] sm:$0xff]
    %v323 = vld [vmem:[#allocation4 + $0x188] sm:$0xff]
    %v324 = vld [vmem:[#allocation4 + $0x190] sm:$0xff]
    %v325 = vld [vmem:[#allocation4 + $0x198] sm:$0xff]
    %v326 = vld [vmem:[#allocation4 + $0x1a0] sm:$0xff]
    %v327 = vld [vmem:[#allocation4 + $0x1a8] sm:$0xff]
    %v328 = vld [vmem:[#allocation4 + $0x1b0] sm:$0xff]
    %v329 = vld [vmem:[#allocation4 + $0x1b8] sm:$0xff]
    %v330 = vld [vmem:[#allocation4 + $0x1c0] sm:$0xff]
    %v331 = vld [vmem:[#allocation4 + $0x1c8] sm:$0xff]
    %v332 = vld [vmem:[#allocation4 + $0x1d0] sm:$0xff]
    %v333 = vld [vmem:[#allocation4 + $0x1d8] sm:$0xff]
    %v334 = vld [vmem:[#allocation4 + $0x1e0] sm:$0xff]
    %v335 = vld [vmem:[#allocation4 + $0x1e8] sm:$0xff]
    %v336 = vld [vmem:[#allocation4 + $0x1f0] sm:$0xff]
    %v337 = vld [vmem:[#allocation4 + $0x1f8] sm:$0xff]
    %v338 = vld [vmem:[#allocation4 + $0x200] sm:$0xff]
    %v339 = vld [vmem:[#allocation4 + $0x208] sm:$0xff]
    %v340 = vld [vmem:[#allocation4 + $0x210] sm:$0xff]
    %v341 = vld [vmem:[#allocation4 + $0x218] sm:$0xff]
    %v342 = vld [vmem:[#allocation4 + $0x220] sm:$0xff]
    %v343 = vld [vmem:[#allocation4 + $0x228] sm:$0xff]
    %v344 = vld [vmem:[#allocation4 + $0x230] sm:$0xff]
    %v345 = vld [vmem:[#allocation4 + $0x238] sm:$0xff]
    %v346 = vld [vmem:[#allocation4 + $0x240] sm:$0xff]
    %v347 = vld [vmem:[#allocation4 + $0x248] sm:$0xff]
    %v348 = vld [vmem:[#allocation4 + $0x250] sm:$0xff]
    %v349 = vld [vmem:[#allocation4 + $0x258] sm:$0xff]
    %v350 = vld [vmem:[#allocation4 + $0x260] sm:$0xff]
    %v351 = vld [vmem:[#allocation4 + $0x268] sm:$0xff]
    %v352 = vld [vmem:[#allocation4 + $0x270] sm:$0xff]
    %v353 = vld [vmem:[#allocation4 + $0x278] sm:$0xff]
    %v354 = vld [vmem:[#allocation4 + $0x280] sm:$0xff]
    %v355 = vld [vmem:[#allocation4 + $0x288] sm:$0xff]
    %v356 = vld [vmem:[#allocation4 + $0x290] sm:$0xff]
    %v357 = vld [vmem:[#allocation4 + $0x298] sm:$0xff]
    %v358 = vld [vmem:[#allocation4 + $0x2a0] sm:$0xff]
    %v359 = vld [vmem:[#allocation4 + $0x2a8] sm:$0xff]
    %v360 = vld [vmem:[#allocation4 + $0x2b0] sm:$0xff]
    %v361 = vld [vmem:[#allocation4 + $0x2b8] sm:$0xff]
    %v362 = vld [vmem:[#allocation4 + $0x2c0] sm:$0xff]
    %v363 = vld [vmem:[#allocation4 + $0x2c8] sm:$0xff]
    %v364 = vld [vmem:[#allocation4 + $0x2d0] sm:$0xff]
    %v365 = vld [vmem:[#allocation4 + $0x2d8] sm:$0xff]
    %v366 = vld [vmem:[#allocation4 + $0x2e0] sm:$0xff]
    %v367 = vld [vmem:[#allocation4 + $0x2e8] sm:$0xff]
    %v368 = vld [vmem:[#allocation4 + $0x2f0] sm:$0xff]
    %v369 = vld [vmem:[#allocation4 + $0x2f8] sm:$0xff]
    %v370 = vld [vmem:[#allocation4 + $0x300] sm:$0xff]
    %v371 = vld [vmem:[#allocation4 + $0x308] sm:$0xff]
    %v372 = vld [vmem:[#allocation4 + $0x310] sm:$0xff]
    %v373 = vld [vmem:[#allocation4 + $0x318] sm:$0xff]
    %v374 = vld [vmem:[#allocation4 + $0x320] sm:$0xff]
    %v375 = vld [vmem:[#allocation4 + $0x328] sm:$0xff]
    %v376 = vld [vmem:[#allocation4 + $0x330] sm:$0xff]
    %v377 = vld [vmem:[#allocation4 + $0x338] sm:$0xff]
    %v378 = vld [vmem:[#allocation4 + $0x340] sm:$0xff]
    %v379 = vld [vmem:[#allocation4 + $0x348] sm:$0xff]
    %v380 = vld [vmem:[#allocation4 + $0x350] sm:$0xff]
    %v381 = vld [vmem:[#allocation4 + $0x358] sm:$0xff]
    %v382 = vld [vmem:[#allocation4 + $0x360] sm:$0xff]
    %v383 = vld [vmem:[#allocation4 + $0x368] sm:$0xff]
    %v384 = vld [vmem:[#allocation4 + $0x370] sm:$0xff]
    %v385 = vld [vmem:[#allocation4 + $0x378] sm:$0xff]
    %v386 = vld [vmem:[#allocation4 + $0x380] sm:$0xff]
    %v387 = vld [vmem:[#allocation4 + $0x388] sm:$0xff]
    %v388 = vld [vmem:[#allocation4 + $0x390] sm:$0xff]
    %v389 = vld [vmem:[#allocation4 + $0x398] sm:$0xff]
    %v390 = vld [vmem:[#allocation4 + $0x3a0] sm:$0xff]
    %v391 = vld [vmem:[#allocation4 + $0x3a8] sm:$0xff]
    %v392 = vld [vmem:[#allocation4 + $0x3b0] sm:$0xff]
    %v393 = vld [vmem:[#allocation4 + $0x3b8] sm:$0xff]
    %v394 = vld [vmem:[#allocation4 + $0x3c0] sm:$0xff]
    %v395 = vld [vmem:[#allocation4 + $0x3c8] sm:$0xff]
    %v396 = vld [vmem:[#allocation4 + $0x3d0] sm:$0xff]
    %v397 = vld [vmem:[#allocation4 + $0x3d8] sm:$0xff]
    %v398 = vld [vmem:[#allocation4 + $0x3e0] sm:$0xff]
    %v399 = vld [vmem:[#allocation4 + $0x3e8] sm:$0xff]
    %v400 = vld [vmem:[#allocation4 + $0x3f0] sm:$0xff]
    %v401 = vld [vmem:[#allocation4 + $0x3f8] sm:$0xff]
    %v402 = vld [vmem:[%s2] sm:$0xf]
    %v404 = vlaneseq
    %v405 = vshrl.u32 %v404, 7
    %v406 = vsub.s32 0, %v405
    %v407 = vrot.slane %v402, %v406
    %v408 = vlaneseq
    %v409 = vshrl.u32 %v408, 7
    %v410 = vsub.s32 1, %v409
    %v411 = vrot.slane %v402, %v410
    %v412 = vlaneseq
    %v413 = vshrl.u32 %v412, 7
    %v414 = vsub.s32 2, %v413
    %v415 = vrot.slane %v402, %v414
    %v416 = vlaneseq
    %v417 = vshrl.u32 %v416, 7
    %v418 = vsub.s32 3, %v417
    %v419 = vrot.slane %v402, %v418
    %v552 = vunpack.c.l.b16 %v274
    %v553 = vunpack.c.h.b16 %v274
    %v554 = vunpack.c.l.b16 %v275
    %v555 = vunpack.c.h.b16 %v275
    %v556 = vunpack.c.l.b16 %v276
    %v557 = vunpack.c.h.b16 %v276
    %v558 = vunpack.c.l.b16 %v277
    %v559 = vunpack.c.h.b16 %v277
    %v560 = vunpack.c.l.b16 %v278
    %v561 = vunpack.c.h.b16 %v278
    %v562 = vunpack.c.l.b16 %v279
    %v563 = vunpack.c.h.b16 %v279
    %v564 = vunpack.c.l.b16 %v280
    %v565 = vunpack.c.h.b16 %v280
    %v566 = vunpack.c.l.b16 %v281
    %v567 = vunpack.c.h.b16 %v281
    %v568 = vunpack.c.l.b16 %v282
    %v569 = vunpack.c.h.b16 %v282
    %v570 = vunpack.c.l.b16 %v283
    %v571 = vunpack.c.h.b16 %v283
    %v572 = vunpack.c.l.b16 %v284
    %v573 = vunpack.c.h.b16 %v284
    %v574 = vunpack.c.l.b16 %v285
    %v575 = vunpack.c.h.b16 %v285
    %v576 = vunpack.c.l.b16 %v286
    %v577 = vunpack.c.h.b16 %v286
    %v578 = vunpack.c.l.b16 %v287
    %v579 = vunpack.c.h.b16 %v287
    %v580 = vunpack.c.l.b16 %v288
    %v581 = vunpack.c.h.b16 %v288
    %v582 = vunpack.c.l.b16 %v289
    %v583 = vunpack.c.h.b16 %v289
    %v584 = vunpack.c.l.b16 %v290
    %v585 = vunpack.c.h.b16 %v290
    %v586 = vunpack.c.l.b16 %v291
    %v587 = vunpack.c.h.b16 %v291
    %v588 = vunpack.c.l.b16 %v292
    %v589 = vunpack.c.h.b16 %v292
    %v590 = vunpack.c.l.b16 %v293
    %v591 = vunpack.c.h.b16 %v293
    %v592 = vunpack.c.l.b16 %v294
    %v593 = vunpack.c.h.b16 %v294
    %v594 = vunpack.c.l.b16 %v295
    %v595 = vunpack.c.h.b16 %v295
    %v596 = vunpack.c.l.b16 %v296
    %v597 = vunpack.c.h.b16 %v296
    %v598 = vunpack.c.l.b16 %v297
    %v599 = vunpack.c.h.b16 %v297
    %v600 = vunpack.c.l.b16 %v298
    %v601 = vunpack.c.h.b16 %v298
    %v602 = vunpack.c.l.b16 %v299
    %v603 = vunpack.c.h.b16 %v299
    %v604 = vunpack.c.l.b16 %v300
    %v605 = vunpack.c.h.b16 %v300
    %v606 = vunpack.c.l.b16 %v301
    %v607 = vunpack.c.h.b16 %v301
    %v608 = vunpack.c.l.b16 %v302
    %v609 = vunpack.c.h.b16 %v302
    %v610 = vunpack.c.l.b16 %v303
    %v611 = vunpack.c.h.b16 %v303
    %v612 = vunpack.c.l.b16 %v304
    %v613 = vunpack.c.h.b16 %v304
    %v614 = vunpack.c.l.b16 %v305
    %v615 = vunpack.c.h.b16 %v305
    %v616 = vunpack.c.l.b16 %v306
    %v617 = vunpack.c.h.b16 %v306
    %v618 = vunpack.c.l.b16 %v307
    %v619 = vunpack.c.h.b16 %v307
    %v620 = vunpack.c.l.b16 %v308
    %v621 = vunpack.c.h.b16 %v308
    %v622 = vunpack.c.l.b16 %v309
    %v623 = vunpack.c.h.b16 %v309
    %v624 = vunpack.c.l.b16 %v310
    %v625 = vunpack.c.h.b16 %v310
    %v626 = vunpack.c.l.b16 %v311
    %v627 = vunpack.c.h.b16 %v311
    %v628 = vunpack.c.l.b16 %v312
    %v629 = vunpack.c.h.b16 %v312
    %v630 = vunpack.c.l.b16 %v313
    %v631 = vunpack.c.h.b16 %v313
    %v632 = vunpack.c.l.b16 %v314
    %v633 = vunpack.c.h.b16 %v314
    %v634 = vunpack.c.l.b16 %v315
    %v635 = vunpack.c.h.b16 %v315
    %v636 = vunpack.c.l.b16 %v316
    %v637 = vunpack.c.h.b16 %v316
    %v638 = vunpack.c.l.b16 %v317
    %v639 = vunpack.c.h.b16 %v317
    %v640 = vunpack.c.l.b16 %v318
    %v641 = vunpack.c.h.b16 %v318
    %v642 = vunpack.c.l.b16 %v319
    %v643 = vunpack.c.h.b16 %v319
    %v644 = vunpack.c.l.b16 %v320
    %v645 = vunpack.c.h.b16 %v320
    %v646 = vunpack.c.l.b16 %v321
    %v647 = vunpack.c.h.b16 %v321
    %v648 = vunpack.c.l.b16 %v322
    %v649 = vunpack.c.h.b16 %v322
    %v650 = vunpack.c.l.b16 %v323
    %v651 = vunpack.c.h.b16 %v323
    %v652 = vunpack.c.l.b16 %v324
    %v653 = vunpack.c.h.b16 %v324
    %v654 = vunpack.c.l.b16 %v325
    %v655 = vunpack.c.h.b16 %v325
    %v656 = vunpack.c.l.b16 %v326
    %v657 = vunpack.c.h.b16 %v326
    %v658 = vunpack.c.l.b16 %v327
    %v659 = vunpack.c.h.b16 %v327
    %v660 = vunpack.c.l.b16 %v328
    %v661 = vunpack.c.h.b16 %v328
    %v662 = vunpack.c.l.b16 %v329
    %v663 = vunpack.c.h.b16 %v329
    %v664 = vunpack.c.l.b16 %v330
    %v665 = vunpack.c.h.b16 %v330
    %v666 = vunpack.c.l.b16 %v331
    %v667 = vunpack.c.h.b16 %v331
    %v668 = vunpack.c.l.b16 %v332
    %v669 = vunpack.c.h.b16 %v332
    %v670 = vunpack.c.l.b16 %v333
    %v671 = vunpack.c.h.b16 %v333
    %v672 = vunpack.c.l.b16 %v334
    %v673 = vunpack.c.h.b16 %v334
    %v674 = vunpack.c.l.b16 %v335
    %v675 = vunpack.c.h.b16 %v335
    %v676 = vunpack.c.l.b16 %v336
    %v677 = vunpack.c.h.b16 %v336
    %v678 = vunpack.c.l.b16 %v337
    %v679 = vunpack.c.h.b16 %v337
    %v680 = vunpack.c.l.b16 %v338
    %v681 = vunpack.c.h.b16 %v338
    %v682 = vunpack.c.l.b16 %v339
    %v683 = vunpack.c.h.b16 %v339
    %v684 = vunpack.c.l.b16 %v340
    %v685 = vunpack.c.h.b16 %v340
    %v686 = vunpack.c.l.b16 %v341
    %v687 = vunpack.c.h.b16 %v341
    %v688 = vunpack.c.l.b16 %v342
    %v689 = vunpack.c.h.b16 %v342
    %v690 = vunpack.c.l.b16 %v343
    %v691 = vunpack.c.h.b16 %v343
    %v692 = vunpack.c.l.b16 %v344
    %v693 = vunpack.c.h.b16 %v344
    %v694 = vunpack.c.l.b16 %v345
    %v695 = vunpack.c.h.b16 %v345
    %v696 = vunpack.c.l.b16 %v346
    %v697 = vunpack.c.h.b16 %v346
    %v698 = vunpack.c.l.b16 %v347
    %v699 = vunpack.c.h.b16 %v347
    %v700 = vunpack.c.l.b16 %v348
    %v701 = vunpack.c.h.b16 %v348
    %v702 = vunpack.c.l.b16 %v349
    %v703 = vunpack.c.h.b16 %v349
    %v704 = vunpack.c.l.b16 %v350
    %v705 = vunpack.c.h.b16 %v350
    %v706 = vunpack.c.l.b16 %v351
    %v707 = vunpack.c.h.b16 %v351
    %v708 = vunpack.c.l.b16 %v352
    %v709 = vunpack.c.h.b16 %v352
    %v710 = vunpack.c.l.b16 %v353
    %v711 = vunpack.c.h.b16 %v353
    %v712 = vunpack.c.l.b16 %v354
    %v713 = vunpack.c.h.b16 %v354
    %v714 = vunpack.c.l.b16 %v355
    %v715 = vunpack.c.h.b16 %v355
    %v716 = vunpack.c.l.b16 %v356
    %v717 = vunpack.c.h.b16 %v356
    %v718 = vunpack.c.l.b16 %v357
    %v719 = vunpack.c.h.b16 %v357
    %v720 = vunpack.c.l.b16 %v358
    %v721 = vunpack.c.h.b16 %v358
    %v722 = vunpack.c.l.b16 %v359
    %v723 = vunpack.c.h.b16 %v359
    %v724 = vunpack.c.l.b16 %v360
    %v725 = vunpack.c.h.b16 %v360
    %v726 = vunpack.c.l.b16 %v361
    %v727 = vunpack.c.h.b16 %v361
    %v728 = vunpack.c.l.b16 %v362
    %v729 = vunpack.c.h.b16 %v362
    %v730 = vunpack.c.l.b16 %v363
    %v731 = vunpack.c.h.b16 %v363
    %v732 = vunpack.c.l.b16 %v364
    %v733 = vunpack.c.h.b16 %v364
    %v734 = vunpack.c.l.b16 %v365
    %v735 = vunpack.c.h.b16 %v365
    %v736 = vunpack.c.l.b16 %v366
    %v737 = vunpack.c.h.b16 %v366
    %v738 = vunpack.c.l.b16 %v367
    %v739 = vunpack.c.h.b16 %v367
    %v740 = vunpack.c.l.b16 %v368
    %v741 = vunpack.c.h.b16 %v368
    %v742 = vunpack.c.l.b16 %v369
    %v743 = vunpack.c.h.b16 %v369
    %v744 = vunpack.c.l.b16 %v370
    %v745 = vunpack.c.h.b16 %v370
    %v746 = vunpack.c.l.b16 %v371
    %v747 = vunpack.c.h.b16 %v371
    %v748 = vunpack.c.l.b16 %v372
    %v749 = vunpack.c.h.b16 %v372
    %v750 = vunpack.c.l.b16 %v373
    %v751 = vunpack.c.h.b16 %v373
    %v752 = vunpack.c.l.b16 %v374
    %v753 = vunpack.c.h.b16 %v374
    %v754 = vunpack.c.l.b16 %v375
    %v755 = vunpack.c.h.b16 %v375
    %v756 = vunpack.c.l.b16 %v376
    %v757 = vunpack.c.h.b16 %v376
    %v758 = vunpack.c.l.b16 %v377
    %v759 = vunpack.c.h.b16 %v377
    %v760 = vunpack.c.l.b16 %v378
    %v761 = vunpack.c.h.b16 %v378
    %v762 = vunpack.c.l.b16 %v379
    %v763 = vunpack.c.h.b16 %v379
    %v764 = vunpack.c.l.b16 %v380
    %v765 = vunpack.c.h.b16 %v380
    %v766 = vunpack.c.l.b16 %v381
    %v767 = vunpack.c.h.b16 %v381
    %v768 = vunpack.c.l.b16 %v382
    %v769 = vunpack.c.h.b16 %v382
    %v770 = vunpack.c.l.b16 %v383
    %v771 = vunpack.c.h.b16 %v383
    %v772 = vunpack.c.l.b16 %v384
    %v773 = vunpack.c.h.b16 %v384
    %v774 = vunpack.c.l.b16 %v385
    %v775 = vunpack.c.h.b16 %v385
    %v776 = vunpack.c.l.b16 %v386
    %v777 = vunpack.c.h.b16 %v386
    %v778 = vunpack.c.l.b16 %v387
    %v779 = vunpack.c.h.b16 %v387
    %v780 = vunpack.c.l.b16 %v388
    %v781 = vunpack.c.h.b16 %v388
    %v782 = vunpack.c.l.b16 %v389
    %v783 = vunpack.c.h.b16 %v389
    %v784 = vunpack.c.l.b16 %v390
    %v785 = vunpack.c.h.b16 %v390
    %v786 = vunpack.c.l.b16 %v391
    %v787 = vunpack.c.h.b16 %v391
    %v788 = vunpack.c.l.b16 %v392
    %v789 = vunpack.c.h.b16 %v392
    %v790 = vunpack.c.l.b16 %v393
    %v791 = vunpack.c.h.b16 %v393
    %v792 = vunpack.c.l.b16 %v394
    %v793 = vunpack.c.h.b16 %v394
    %v794 = vunpack.c.l.b16 %v395
    %v795 = vunpack.c.h.b16 %v395
    %v796 = vunpack.c.l.b16 %v396
    %v797 = vunpack.c.h.b16 %v396
    %v798 = vunpack.c.l.b16 %v397
    %v799 = vunpack.c.h.b16 %v397
    %v800 = vunpack.c.l.b16 %v398
    %v801 = vunpack.c.h.b16 %v398
    %v802 = vunpack.c.l.b16 %v399
    %v803 = vunpack.c.h.b16 %v399
    %v804 = vunpack.c.l.b16 %v400
    %v805 = vunpack.c.h.b16 %v400
    %v806 = vunpack.c.l.b16 %v401
    %v807 = vunpack.c.h.b16 %v401
    %v808 = vpack.c.b16 %v556, %v552
    %v809 = vpack.c.b16 %v557, %v553
    %v810 = vpack.c.b16 %v558, %v554
    %v811 = vpack.c.b16 %v559, %v555
    %v812 = vpack.c.b16 %v564, %v560
    %v813 = vpack.c.b16 %v565, %v561
    %v814 = vpack.c.b16 %v566, %v562
    %v815 = vpack.c.b16 %v567, %v563
    %v816 = vpack.c.b16 %v572, %v568
    %v817 = vpack.c.b16 %v573, %v569
    %v818 = vpack.c.b16 %v574, %v570
    %v819 = vpack.c.b16 %v575, %v571
    %v820 = vpack.c.b16 %v580, %v576
    %v821 = vpack.c.b16 %v581, %v577
    %v822 = vpack.c.b16 %v582, %v578
    %v823 = vpack.c.b16 %v583, %v579
    %v824 = vpack.c.b16 %v588, %v584
    %v825 = vpack.c.b16 %v589, %v585
    %v826 = vpack.c.b16 %v590, %v586
    %v827 = vpack.c.b16 %v591, %v587
    %v828 = vpack.c.b16 %v596, %v592
    %v829 = vpack.c.b16 %v597, %v593
    %v830 = vpack.c.b16 %v598, %v594
    %v831 = vpack.c.b16 %v599, %v595
    %v832 = vpack.c.b16 %v604, %v600
    %v833 = vpack.c.b16 %v605, %v601
    %v834 = vpack.c.b16 %v606, %v602
    %v835 = vpack.c.b16 %v607, %v603
    %v836 = vpack.c.b16 %v612, %v608
    %v837 = vpack.c.b16 %v613, %v609
    %v838 = vpack.c.b16 %v614, %v610
    %v839 = vpack.c.b16 %v615, %v611
    %v840 = vpack.c.b16 %v620, %v616
    %v841 = vpack.c.b16 %v621, %v617
    %v842 = vpack.c.b16 %v622, %v618
    %v843 = vpack.c.b16 %v623, %v619
    %v844 = vpack.c.b16 %v628, %v624
    %v845 = vpack.c.b16 %v629, %v625
    %v846 = vpack.c.b16 %v630, %v626
    %v847 = vpack.c.b16 %v631, %v627
    %v848 = vpack.c.b16 %v636, %v632
    %v849 = vpack.c.b16 %v637, %v633
    %v850 = vpack.c.b16 %v638, %v634
    %v851 = vpack.c.b16 %v639, %v635
    %v852 = vpack.c.b16 %v644, %v640
    %v853 = vpack.c.b16 %v645, %v641
    %v854 = vpack.c.b16 %v646, %v642
    %v855 = vpack.c.b16 %v647, %v643
    %v856 = vpack.c.b16 %v652, %v648
    %v857 = vpack.c.b16 %v653, %v649
    %v858 = vpack.c.b16 %v654, %v650
    %v859 = vpack.c.b16 %v655, %v651
    %v860 = vpack.c.b16 %v660, %v656
    %v861 = vpack.c.b16 %v661, %v657
    %v862 = vpack.c.b16 %v662, %v658
    %v863 = vpack.c.b16 %v663, %v659
    %v864 = vpack.c.b16 %v668, %v664
    %v865 = vpack.c.b16 %v669, %v665
    %v866 = vpack.c.b16 %v670, %v666
    %v867 = vpack.c.b16 %v671, %v667
    %v868 = vpack.c.b16 %v676, %v672
    %v869 = vpack.c.b16 %v677, %v673
    %v870 = vpack.c.b16 %v678, %v674
    %v871 = vpack.c.b16 %v679, %v675
    %v872 = vpack.c.b16 %v684, %v680
    %v873 = vpack.c.b16 %v685, %v681
    %v874 = vpack.c.b16 %v686, %v682
    %v875 = vpack.c.b16 %v687, %v683
    %v876 = vpack.c.b16 %v692, %v688
    %v877 = vpack.c.b16 %v693, %v689
    %v878 = vpack.c.b16 %v694, %v690
    %v879 = vpack.c.b16 %v695, %v691
    %v880 = vpack.c.b16 %v700, %v696
    %v881 = vpack.c.b16 %v701, %v697
    %v882 = vpack.c.b16 %v702, %v698
    %v883 = vpack.c.b16 %v703, %v699
    %v884 = vpack.c.b16 %v708, %v704
    %v885 = vpack.c.b16 %v709, %v705
    %v886 = vpack.c.b16 %v710, %v706
    %v887 = vpack.c.b16 %v711, %v707
    %v888 = vpack.c.b16 %v716, %v712
    %v889 = vpack.c.b16 %v717, %v713
    %v890 = vpack.c.b16 %v718, %v714
    %v891 = vpack.c.b16 %v719, %v715
    %v892 = vpack.c.b16 %v724, %v720
    %v893 = vpack.c.b16 %v725, %v721
    %v894 = vpack.c.b16 %v726, %v722
    %v895 = vpack.c.b16 %v727, %v723
    %v896 = vpack.c.b16 %v732, %v728
    %v897 = vpack.c.b16 %v733, %v729
    %v898 = vpack.c.b16 %v734, %v730
    %v899 = vpack.c.b16 %v735, %v731
    %v900 = vpack.c.b16 %v740, %v736
    %v901 = vpack.c.b16 %v741, %v737
    %v902 = vpack.c.b16 %v742, %v738
    %v903 = vpack.c.b16 %v743, %v739
    %v904 = vpack.c.b16 %v748, %v744
    %v905 = vpack.c.b16 %v749, %v745
    %v906 = vpack.c.b16 %v750, %v746
    %v907 = vpack.c.b16 %v751, %v747
    %v908 = vpack.c.b16 %v756, %v752
    %v909 = vpack.c.b16 %v757, %v753
    %v910 = vpack.c.b16 %v758, %v754
    %v911 = vpack.c.b16 %v759, %v755
    %v912 = vpack.c.b16 %v764, %v760
    %v913 = vpack.c.b16 %v765, %v761
    %v914 = vpack.c.b16 %v766, %v762
    %v915 = vpack.c.b16 %v767, %v763
    %v916 = vpack.c.b16 %v772, %v768
    %v917 = vpack.c.b16 %v773, %v769
    %v918 = vpack.c.b16 %v774, %v770
    %v919 = vpack.c.b16 %v775, %v771
    %v920 = vpack.c.b16 %v780, %v776
    %v921 = vpack.c.b16 %v781, %v777
    %v922 = vpack.c.b16 %v782, %v778
    %v923 = vpack.c.b16 %v783, %v779
    %v924 = vpack.c.b16 %v788, %v784
    %v925 = vpack.c.b16 %v789, %v785
    %v926 = vpack.c.b16 %v790, %v786
    %v927 = vpack.c.b16 %v791, %v787
    %v928 = vpack.c.b16 %v796, %v792
    %v929 = vpack.c.b16 %v797, %v793
    %v930 = vpack.c.b16 %v798, %v794
    %v931 = vpack.c.b16 %v799, %v795
    %v932 = vpack.c.b16 %v804, %v800
    %v933 = vpack.c.b16 %v805, %v801
    %v934 = vpack.c.b16 %v806, %v802
    %v935 = vpack.c.b16 %v807, %v803
    %1064 = vmatprep.subr.bf16.mxu0 %v809
    %1065 = vmatpush1.bf16.msra.mxu0 %v808
    %1066 = vmatprep.subr.bf16.mxu0 %v813
    %1067 = vmatpush1.bf16.msra.mxu0 %v812
    %1068 = vmatprep.subr.bf16.mxu0 %v817
    %1069 = vmatpush1.bf16.msra.mxu0 %v816
    %1070 = vmatprep.subr.bf16.mxu0 %v821
    %1071 = vmatpush1.bf16.msra.mxu0 %v820
    %1072 = vmatprep.subr.bf16.mxu0 %v825
    %1073 = vmatpush1.bf16.msra.mxu0 %v824
    %1074 = vmatprep.subr.bf16.mxu0 %v829
    %1075 = vmatpush1.bf16.msra.mxu0 %v828
    %1076 = vmatprep.subr.bf16.mxu0 %v833
    %1077 = vmatpush1.bf16.msra.mxu0 %v832
    %1078 = vmatprep.subr.bf16.mxu0 %v837
    %1079 = vmatpush1.bf16.msra.mxu0 %v836
    %1080 = vmatprep.subr.bf16.mxu0 %v841
    %1081 = vmatpush1.bf16.msra.mxu0 %v840
    %1082 = vmatprep.subr.bf16.mxu0 %v845
    %1083 = vmatpush1.bf16.msra.mxu0 %v844
    %1084 = vmatprep.subr.bf16.mxu0 %v849
    %1085 = vmatpush1.bf16.msra.mxu0 %v848
    %1086 = vmatprep.subr.bf16.mxu0 %v853
    %1087 = vmatpush1.bf16.msra.mxu0 %v852
    %1088 = vmatprep.subr.bf16.mxu0 %v857
    %1089 = vmatpush1.bf16.msra.mxu0 %v856
    %1090 = vmatprep.subr.bf16.mxu0 %v861
    %1091 = vmatpush1.bf16.msra.mxu0 %v860
    %1092 = vmatprep.subr.bf16.mxu0 %v865
    %1093 = vmatpush1.bf16.msra.mxu0 %v864
    %1094 = vmatprep.subr.bf16.mxu0 %v869
    %1095 = vmatpush1.bf16.msra.mxu0 %v868
    %1096 = vmatprep.mubr.bf16.mxu0 %v211
    %1097 = vmatmul.mubr.bf16.gmra.mrb[0].mxu0 %v210
    %v1098 = vpop.f32.mrb[0].mxu0
    %v1099 = vadd.f32 %v407, %v1098
    %v1100 = vpop.f32.mrb[0].mxu0
    %v1101 = vadd.f32 %v411, %v1100
    %v1102 = vpop.f32.mrb[0].mxu0
    %v1103 = vadd.f32 %v407, %v1102
    %v1104 = vpop.f32.mrb[0].mxu0
    %v1105 = vadd.f32 %v411, %v1104
    %1106 = vmatprep.mubr.bf16.mxu0 %v215
    %1107 = vmatmul.mubr.bf16.gmra.mrb[0].mxu0 %v214
    %v1108 = vpop.f32.mrb[0].mxu0
    %v1109 = vadd.f32 %v407, %v1108
    %v1110 = vpop.f32.mrb[0].mxu0
    %v1111 = vadd.f32 %v411, %v1110
    %v1112 = vpop.f32.mrb[0].mxu0
    %v1113 = vadd.f32 %v407, %v1112
    %v1114 = vpop.f32.mrb[0].mxu0
    %v1115 = vadd.f32 %v411, %v1114
    %1116 = vmatprep.mubr.bf16.mxu0 %v219
    %1117 = vmatmul.mubr.bf16.gmra.mrb[0].mxu0 %v218
    %v1118 = vpop.f32.mrb[0].mxu0
    %v1119 = vadd.f32 %v407, %v1118
    %v1120 = vpop.f32.mrb[0].mxu0
    %v1121 = vadd.f32 %v411, %v1120
    %v1122 = vpop.f32.mrb[0].mxu0
    %v1123 = vadd.f32 %v407, %v1122
    %v1124 = vpop.f32.mrb[0].mxu0
    %v1125 = vadd.f32 %v411, %v1124
    %1126 = vmatprep.mubr.bf16.mxu0 %v223
    %1127 = vmatmul.mubr.bf16.gmra.mrb[0].mxu0 %v222
    %v1128 = vpop.f32.mrb[0].mxu0
    %v1129 = vadd.f32 %v407, %v1128
    %v1130 = vpop.f32.mrb[0].mxu0
    %v1131 = vadd.f32 %v411, %v1130
    %v1132 = vpop.f32.mrb[0].mxu0
    %v1133 = vadd.f32 %v407, %v1132
    %v1134 = vpop.f32.mrb[0].mxu0
    %v1135 = vadd.f32 %v411, %v1134
    %1136 = vmatprep.mubr.bf16.mxu0 %v227
    %1137 = vmatmul.mubr.bf16.gmra.mrb[0].mxu0 %v226
    %v1138 = vpop.f32.mrb[0].mxu0
    %v1139 = vadd.f32 %v407, %v1138
    %v1140 = vpop.f32.mrb[0].mxu0
    %v1141 = vadd.f32 %v411, %v1140
    %v1142 = vpop.f32.mrb[0].mxu0
    %v1143 = vadd.f32 %v407, %v1142
    %v1144 = vpop.f32.mrb[0].mxu0
    %v1145 = vadd.f32 %v411, %v1144
    %1146 = vmatprep.mubr.bf16.mxu0 %v231
    %1147 = vmatmul.mubr.bf16.gmra.mrb[0].mxu0 %v230
    %v1148 = vpop.f32.mrb[0].mxu0
    %v1149 = vadd.f32 %v407, %v1148
    %v1150 = vpop.f32.mrb[0].mxu0
    %v1151 = vadd.f32 %v411, %v1150
    %v1152 = vpop.f32.mrb[0].mxu0
    %v1153 = vadd.f32 %v407, %v1152
    %v1154 = vpop.f32.mrb[0].mxu0
    %v1155 = vadd.f32 %v411, %v1154
    %1156 = vmatprep.mubr.bf16.mxu0 %v235
    %1157 = vmatmul.mubr.bf16.gmra.mrb[0].mxu0 %v234
    %v1158 = vpop.f32.mrb[0].mxu0
    %v1159 = vadd.f32 %v407, %v1158
    %v1160 = vpop.f32.mrb[0].mxu0
    %v1161 = vadd.f32 %v411, %v1160
    %v1162 = vpop.f32.mrb[0].mxu0
    %v1163 = vadd.f32 %v407, %v1162
    %v1164 = vpop.f32.mrb[0].mxu0
    %v1165 = vadd.f32 %v411, %v1164
    %1166 = vmatprep.mubr.bf16.mxu0 %v239
    %1167 = vmatmul.mubr.bf16.gmra.mrb[0].mxu0 %v238
    %v1168 = vpop.f32.mrb[0].mxu0
    %v1169 = vadd.f32 %v407, %v1168
    %v1170 = vpop.f32.mrb[0].mxu0
    %v1171 = vadd.f32 %v411, %v1170
    %v1172 = vpop.f32.mrb[0].mxu0
    %v1173 = vadd.f32 %v407, %v1172
    %v1174 = vpop.f32.mrb[0].mxu0
    %v1175 = vadd.f32 %v411, %v1174
    %1176 = vmatprep.mubr.bf16.mxu0 %v243
    %1177 = vmatmul.mubr.bf16.gmra.mrb[0].mxu0 %v242
    %v1178 = vpop.f32.mrb[0].mxu0
    %v1179 = vadd.f32 %v407, %v1178
    %v1180 = vpop.f32.mrb[0].mxu0
    %v1181 = vadd.f32 %v411, %v1180
    %v1182 = vpop.f32.mrb[0].mxu0
    %v1183 = vadd.f32 %v407, %v1182
    %v1184 = vpop.f32.mrb[0].mxu0
    %v1185 = vadd.f32 %v411, %v1184
    %1186 = vmatprep.mubr.bf16.mxu0 %v247
    %1187 = vmatmul.mubr.bf16.gmra.mrb[0].mxu0 %v246
    %v1188 = vpop.f32.mrb[0].mxu0
    %v1189 = vadd.f32 %v407, %v1188
    %v1190 = vpop.f32.mrb[0].mxu0
    %v1191 = vadd.f32 %v411, %v1190
    %v1192 = vpop.f32.mrb[0].mxu0
    %v1193 = vadd.f32 %v407, %v1192
    %v1194 = vpop.f32.mrb[0].mxu0
    %v1195 = vadd.f32 %v411, %v1194
    %1196 = vmatprep.mubr.bf16.mxu0 %v251
    %1197 = vmatmul.mubr.bf16.gmra.mrb[0].mxu0 %v250
    %v1198 = vpop.f32.mrb[0].mxu0
    %v1199 = vadd.f32 %v407, %v1198
    %v1200 = vpop.f32.mrb[0].mxu0
    %v1201 = vadd.f32 %v411, %v1200
    %v1202 = vpop.f32.mrb[0].mxu0
    %v1203 = vadd.f32 %v407, %v1202
    %v1204 = vpop.f32.mrb[0].mxu0
    %v1205 = vadd.f32 %v411, %v1204
    %1206 = vmatprep.mubr.bf16.mxu0 %v255
    %1207 = vmatmul.mubr.bf16.gmra.mrb[0].mxu0 %v254
    %v1208 = vpop.f32.mrb[0].mxu0
    %v1209 = vadd.f32 %v407, %v1208
    %v1210 = vpop.f32.mrb[0].mxu0
    %v1211 = vadd.f32 %v411, %v1210
    %v1212 = vpop.f32.mrb[0].mxu0
    %v1213 = vadd.f32 %v407, %v1212
    %v1214 = vpop.f32.mrb[0].mxu0
    %v1215 = vadd.f32 %v411, %v1214
    %1216 = vmatprep.mubr.bf16.mxu0 %v259
    %1217 = vmatmul.mubr.bf16.gmra.mrb[0].mxu0 %v258
    %v1218 = vpop.f32.mrb[0].mxu0
    %v1219 = vadd.f32 %v407, %v1218
    %v1220 = vpop.f32.mrb[0].mxu0
    %v1221 = vadd.f32 %v411, %v1220
    %v1222 = vpop.f32.mrb[0].mxu0
    %v1223 = vadd.f32 %v407, %v1222
    %v1224 = vpop.f32.mrb[0].mxu0
    %v1225 = vadd.f32 %v411, %v1224
    %1226 = vmatprep.mubr.bf16.mxu0 %v263
    %1227 = vmatmul.mubr.bf16.gmra.mrb[0].mxu0 %v262
    %v1228 = vpop.f32.mrb[0].mxu0
    %v1229 = vadd.f32 %v407, %v1228
    %v1230 = vpop.f32.mrb[0].mxu0
    %v1231 = vadd.f32 %v411, %v1230
    %v1232 = vpop.f32.mrb[0].mxu0
    %v1233 = vadd.f32 %v407, %v1232
    %v1234 = vpop.f32.mrb[0].mxu0
    %v1235 = vadd.f32 %v411, %v1234
    %1236 = vmatprep.mubr.bf16.mxu0 %v267
    %1237 = vmatmul.mubr.bf16.gmra.mrb[0].mxu0 %v266
    %v1238 = vpop.f32.mrb[0].mxu0
    %v1239 = vadd.f32 %v407, %v1238
    %v1240 = vpop.f32.mrb[0].mxu0
    %v1241 = vadd.f32 %v411, %v1240
    %v1242 = vpop.f32.mrb[0].mxu0
    %v1243 = vadd.f32 %v407, %v1242
    %v1244 = vpop.f32.mrb[0].mxu0
    %v1245 = vadd.f32 %v411, %v1244
    %1246 = vmatprep.mubr.bf16.mxu0 %v271
    %1247 = vmatmul.mubr.bf16.gmra.mrb[0].mxu0 %v270
    %v1248 = vpop.f32.mrb[0].mxu0
    %v1249 = vadd.f32 %v407, %v1248
    %v1250 = vpop.f32.mrb[0].mxu0
    %v1251 = vadd.f32 %v411, %v1250
    %v1252 = vpop.f32.mrb[0].mxu0
    %v1253 = vadd.f32 %v407, %v1252
    %v1254 = vpop.f32.mrb[0].mxu0
    %v1255 = vadd.f32 %v411, %v1254
    %1256 = vdwg.mxu0
    %1257 = vmatprep.subr.bf16.mxu0 %v873
    %1258 = vmatpush1.bf16.msra.mxu0 %v872
    %1259 = vmatprep.subr.bf16.mxu0 %v877
    %1260 = vmatpush1.bf16.msra.mxu0 %v876
    %1261 = vmatprep.subr.bf16.mxu0 %v881
    %1262 = vmatpush1.bf16.msra.mxu0 %v880
    %1263 = vmatprep.subr.bf16.mxu0 %v885
    %1264 = vmatpush1.bf16.msra.mxu0 %v884
    %1265 = vmatprep.subr.bf16.mxu0 %v889
    %1266 = vmatpush1.bf16.msra.mxu0 %v888
    %1267 = vmatprep.subr.bf16.mxu0 %v893
    %1268 = vmatpush1.bf16.msra.mxu0 %v892
    %1269 = vmatprep.subr.bf16.mxu0 %v897
    %1270 = vmatpush1.bf16.msra.mxu0 %v896
    %1271 = vmatprep.subr.bf16.mxu0 %v901
    %1272 = vmatpush1.bf16.msra.mxu0 %v900
    %1273 = vmatprep.subr.bf16.mxu0 %v905
    %1274 = vmatpush1.bf16.msra.mxu0 %v904
    %1275 = vmatprep.subr.bf16.mxu0 %v909
    %1276 = vmatpush1.bf16.msra.mxu0 %v908
    %1277 = vmatprep.subr.bf16.mxu0 %v913
    %1278 = vmatpush1.bf16.msra.mxu0 %v912
    %1279 = vmatprep.subr.bf16.mxu0 %v917
    %1280 = vmatpush1.bf16.msra.mxu0 %v916
    %1281 = vmatprep.subr.bf16.mxu0 %v921
    %1282 = vmatpush1.bf16.msra.mxu0 %v920
    %1283 = vmatprep.subr.bf16.mxu0 %v925
    %1284 = vmatpush1.bf16.msra.mxu0 %v924
    %1285 = vmatprep.subr.bf16.mxu0 %v929
    %1286 = vmatpush1.bf16.msra.mxu0 %v928
    %1287 = vmatprep.subr.bf16.mxu0 %v933
    %1288 = vmatpush1.bf16.msra.mxu0 %v932
    %1289 = vmatprep.mubr.bf16.mxu0 %v213
    %1290 = vmatmul.mubr.bf16.gmra.mrb[0].mxu0 %v212
    %v1291 = vpop.f32.mrb[0].mxu0
    %v1292 = vadd.f32 %v1099, %v1291
    %v1293 = vpop.f32.mrb[0].mxu0
    %v1294 = vadd.f32 %v1101, %v1293
    %v1295 = vpop.f32.mrb[0].mxu0
    %v1296 = vadd.f32 %v1103, %v1295
    %v1297 = vpop.f32.mrb[0].mxu0
    %v1298 = vadd.f32 %v1105, %v1297
    %1299 = vmatprep.mubr.bf16.mxu0 %v217
    %1300 = vmatmul.mubr.bf16.gmra.mrb[0].mxu0 %v216
    %v1301 = vpop.f32.mrb[0].mxu0
    %v1302 = vadd.f32 %v1109, %v1301
    %v1303 = vpop.f32.mrb[0].mxu0
    %v1304 = vadd.f32 %v1111, %v1303
    %v1305 = vpop.f32.mrb[0].mxu0
    %v1306 = vadd.f32 %v1113, %v1305
    %v1307 = vpop.f32.mrb[0].mxu0
    %v1308 = vadd.f32 %v1115, %v1307
    %1309 = vmatprep.mubr.bf16.mxu0 %v221
    %1310 = vmatmul.mubr.bf16.gmra.mrb[0].mxu0 %v220
    %v1311 = vpop.f32.mrb[0].mxu0
    %v1312 = vadd.f32 %v1119, %v1311
    %v1313 = vpop.f32.mrb[0].mxu0
    %v1314 = vadd.f32 %v1121, %v1313
    %v1315 = vpop.f32.mrb[0].mxu0
    %v1316 = vadd.f32 %v1123, %v1315
    %v1317 = vpop.f32.mrb[0].mxu0
    %v1318 = vadd.f32 %v1125, %v1317
    %1319 = vmatprep.mubr.bf16.mxu0 %v225
    %1320 = vmatmul.mubr.bf16.gmra.mrb[0].mxu0 %v224
    %v1321 = vpop.f32.mrb[0].mxu0
    %v1322 = vadd.f32 %v1129, %v1321
    %v1323 = vpop.f32.mrb[0].mxu0
    %v1324 = vadd.f32 %v1131, %v1323
    %v1325 = vpop.f32.mrb[0].mxu0
    %v1326 = vadd.f32 %v1133, %v1325
    %v1327 = vpop.f32.mrb[0].mxu0
    %v1328 = vadd.f32 %v1135, %v1327
    %1329 = vmatprep.mubr.bf16.mxu0 %v229
    %1330 = vmatmul.mubr.bf16.gmra.mrb[0].mxu0 %v228
    %v1331 = vpop.f32.mrb[0].mxu0
    %v1332 = vadd.f32 %v1139, %v1331
    %v1333 = vpop.f32.mrb[0].mxu0
    %v1334 = vadd.f32 %v1141, %v1333
    %v1335 = vpop.f32.mrb[0].mxu0
    %v1336 = vadd.f32 %v1143, %v1335
    %v1337 = vpop.f32.mrb[0].mxu0
    %v1338 = vadd.f32 %v1145, %v1337
    %1339 = vmatprep.mubr.bf16.mxu0 %v233
    %1340 = vmatmul.mubr.bf16.gmra.mrb[0].mxu0 %v232
    %v1341 = vpop.f32.mrb[0].mxu0
    %v1342 = vadd.f32 %v1149, %v1341
    %v1343 = vpop.f32.mrb[0].mxu0
    %v1344 = vadd.f32 %v1151, %v1343
    %v1345 = vpop.f32.mrb[0].mxu0
    %v1346 = vadd.f32 %v1153, %v1345
    %v1347 = vpop.f32.mrb[0].mxu0
    %v1348 = vadd.f32 %v1155, %v1347
    %1349 = vmatprep.mubr.bf16.mxu0 %v237
    %1350 = vmatmul.mubr.bf16.gmra.mrb[0].mxu0 %v236
    %v1351 = vpop.f32.mrb[0].mxu0
    %v1352 = vadd.f32 %v1159, %v1351
    %v1353 = vpop.f32.mrb[0].mxu0
    %v1354 = vadd.f32 %v1161, %v1353
    %v1355 = vpop.f32.mrb[0].mxu0
    %v1356 = vadd.f32 %v1163, %v1355
    %v1357 = vpop.f32.mrb[0].mxu0
    %v1358 = vadd.f32 %v1165, %v1357
    %1359 = vmatprep.mubr.bf16.mxu0 %v241
    %1360 = vmatmul.mubr.bf16.gmra.mrb[0].mxu0 %v240
    %v1361 = vpop.f32.mrb[0].mxu0
    %v1362 = vadd.f32 %v1169, %v1361
    %v1363 = vpop.f32.mrb[0].mxu0
    %v1364 = vadd.f32 %v1171, %v1363
    %v1365 = vpop.f32.mrb[0].mxu0
    %v1366 = vadd.f32 %v1173, %v1365
    %v1367 = vpop.f32.mrb[0].mxu0
    %v1368 = vadd.f32 %v1175, %v1367
    %1369 = vmatprep.mubr.bf16.mxu0 %v245
    %1370 = vmatmul.mubr.bf16.gmra.mrb[0].mxu0 %v244
    %v1371 = vpop.f32.mrb[0].mxu0
    %v1372 = vadd.f32 %v1179, %v1371
    %v1373 = vpop.f32.mrb[0].mxu0
    %v1374 = vadd.f32 %v1181, %v1373
    %v1375 = vpop.f32.mrb[0].mxu0
    %v1376 = vadd.f32 %v1183, %v1375
    %v1377 = vpop.f32.mrb[0].mxu0
    %v1378 = vadd.f32 %v1185, %v1377
    %1379 = vmatprep.mubr.bf16.mxu0 %v249
    %1380 = vmatmul.mubr.bf16.gmra.mrb[0].mxu0 %v248
    %v1381 = vpop.f32.mrb[0].mxu0
    %v1382 = vadd.f32 %v1189, %v1381
    %v1383 = vpop.f32.mrb[0].mxu0
    %v1384 = vadd.f32 %v1191, %v1383
    %v1385 = vpop.f32.mrb[0].mxu0
    %v1386 = vadd.f32 %v1193, %v1385
    %v1387 = vpop.f32.mrb[0].mxu0
    %v1388 = vadd.f32 %v1195, %v1387
    %1389 = vmatprep.mubr.bf16.mxu0 %v253
    %1390 = vmatmul.mubr.bf16.gmra.mrb[0].mxu0 %v252
    %v1391 = vpop.f32.mrb[0].mxu0
    %v1392 = vadd.f32 %v1199, %v1391
    %v1393 = vpop.f32.mrb[0].mxu0
    %v1394 = vadd.f32 %v1201, %v1393
    %v1395 = vpop.f32.mrb[0].mxu0
    %v1396 = vadd.f32 %v1203, %v1395
    %v1397 = vpop.f32.mrb[0].mxu0
    %v1398 = vadd.f32 %v1205, %v1397
    %1399 = vmatprep.mubr.bf16.mxu0 %v257
    %1400 = vmatmul.mubr.bf16.gmra.mrb[0].mxu0 %v256
    %v1401 = vpop.f32.mrb[0].mxu0
    %v1402 = vadd.f32 %v1209, %v1401
    %v1403 = vpop.f32.mrb[0].mxu0
    %v1404 = vadd.f32 %v1211, %v1403
    %v1405 = vpop.f32.mrb[0].mxu0
    %v1406 = vadd.f32 %v1213, %v1405
    %v1407 = vpop.f32.mrb[0].mxu0
    %v1408 = vadd.f32 %v1215, %v1407
    %1409 = vmatprep.mubr.bf16.mxu0 %v261
    %1410 = vmatmul.mubr.bf16.gmra.mrb[0].mxu0 %v260
    %v1411 = vpop.f32.mrb[0].mxu0
    %v1412 = vadd.f32 %v1219, %v1411
    %v1413 = vpop.f32.mrb[0].mxu0
    %v1414 = vadd.f32 %v1221, %v1413
    %v1415 = vpop.f32.mrb[0].mxu0
    %v1416 = vadd.f32 %v1223, %v1415
    %v1417 = vpop.f32.mrb[0].mxu0
    %v1418 = vadd.f32 %v1225, %v1417
    %1419 = vmatprep.mubr.bf16.mxu0 %v265
    %1420 = vmatmul.mubr.bf16.gmra.mrb[0].mxu0 %v264
    %v1421 = vpop.f32.mrb[0].mxu0
    %v1422 = vadd.f32 %v1229, %v1421
    %v1423 = vpop.f32.mrb[0].mxu0
    %v1424 = vadd.f32 %v1231, %v1423
    %v1425 = vpop.f32.mrb[0].mxu0
    %v1426 = vadd.f32 %v1233, %v1425
    %v1427 = vpop.f32.mrb[0].mxu0
    %v1428 = vadd.f32 %v1235, %v1427
    %1429 = vmatprep.mubr.bf16.mxu0 %v269
    %1430 = vmatmul.mubr.bf16.gmra.mrb[0].mxu0 %v268
    %v1431 = vpop.f32.mrb[0].mxu0
    %v1432 = vadd.f32 %v1239, %v1431
    %v1433 = vpop.f32.mrb[0].mxu0
    %v1434 = vadd.f32 %v1241, %v1433
    %v1435 = vpop.f32.mrb[0].mxu0
    %v1436 = vadd.f32 %v1243, %v1435
    %v1437 = vpop.f32.mrb[0].mxu0
    %v1438 = vadd.f32 %v1245, %v1437
    %1439 = vmatprep.mubr.bf16.mxu0 %v273
    %1440 = vmatmul.mubr.bf16.gmra.mrb[0].mxu0 %v272
    %v1441 = vpop.f32.mrb[0].mxu0
    %v1442 = vadd.f32 %v1249, %v1441
    %v1443 = vpop.f32.mrb[0].mxu0
    %v1444 = vadd.f32 %v1251, %v1443
    %v1445 = vpop.f32.mrb[0].mxu0
    %v1446 = vadd.f32 %v1253, %v1445
    %v1447 = vpop.f32.mrb[0].mxu0
    %v1448 = vadd.f32 %v1255, %v1447
    %1449 = vdwg.mxu0
    %1450 = vmatprep.subr.bf16.mxu0 %v811
    %1451 = vmatpush1.bf16.msra.mxu0 %v810
    %1452 = vmatprep.subr.bf16.mxu0 %v815
    %1453 = vmatpush1.bf16.msra.mxu0 %v814
    %1454 = vmatprep.subr.bf16.mxu0 %v819
    %1455 = vmatpush1.bf16.msra.mxu0 %v818
    %1456 = vmatprep.subr.bf16.mxu0 %v823
    %1457 = vmatpush1.bf16.msra.mxu0 %v822
    %1458 = vmatprep.subr.bf16.mxu0 %v827
    %1459 = vmatpush1.bf16.msra.mxu0 %v826
    %1460 = vmatprep.subr.bf16.mxu0 %v831
    %1461 = vmatpush1.bf16.msra.mxu0 %v830
    %1462 = vmatprep.subr.bf16.mxu0 %v835
    %1463 = vmatpush1.bf16.msra.mxu0 %v834
    %1464 = vmatprep.subr.bf16.mxu0 %v839
    %1465 = vmatpush1.bf16.msra.mxu0 %v838
    %1466 = vmatprep.subr.bf16.mxu0 %v843
    %1467 = vmatpush1.bf16.msra.mxu0 %v842
    %1468 = vmatprep.subr.bf16.mxu0 %v847
    %1469 = vmatpush1.bf16.msra.mxu0 %v846
    %1470 = vmatprep.subr.bf16.mxu0 %v851
    %1471 = vmatpush1.bf16.msra.mxu0 %v850
    %1472 = vmatprep.subr.bf16.mxu0 %v855
    %1473 = vmatpush1.bf16.msra.mxu0 %v854
    %1474 = vmatprep.subr.bf16.mxu0 %v859
    %1475 = vmatpush1.bf16.msra.mxu0 %v858
    %1476 = vmatprep.subr.bf16.mxu0 %v863
    %1477 = vmatpush1.bf16.msra.mxu0 %v862
    %1478 = vmatprep.subr.bf16.mxu0 %v867
    %1479 = vmatpush1.bf16.msra.mxu0 %v866
    %1480 = vmatprep.subr.bf16.mxu0 %v871
    %1481 = vmatpush1.bf16.msra.mxu0 %v870
    %1482 = vmatprep.mubr.bf16.mxu0 %v211
    %1483 = vmatmul.mubr.bf16.gmra.mrb[0].mxu0 %v210
    %v1484 = vpop.f32.mrb[0].mxu0
    %v1485 = vadd.f32 %v415, %v1484
    %v1486 = vpop.f32.mrb[0].mxu0
    %v1487 = vadd.f32 %v419, %v1486
    %v1488 = vpop.f32.mrb[0].mxu0
    %v1489 = vadd.f32 %v415, %v1488
    %v1490 = vpop.f32.mrb[0].mxu0
    %v1491 = vadd.f32 %v419, %v1490
    %1492 = vmatprep.mubr.bf16.mxu0 %v215
    %1493 = vmatmul.mubr.bf16.gmra.mrb[0].mxu0 %v214
    %v1494 = vpop.f32.mrb[0].mxu0
    %v1495 = vadd.f32 %v415, %v1494
    %v1496 = vpop.f32.mrb[0].mxu0
    %v1497 = vadd.f32 %v419, %v1496
    %v1498 = vpop.f32.mrb[0].mxu0
    %v1499 = vadd.f32 %v415, %v1498
    %v1500 = vpop.f32.mrb[0].mxu0
    %v1501 = vadd.f32 %v419, %v1500
    %1502 = vmatprep.mubr.bf16.mxu0 %v219
    %1503 = vmatmul.mubr.bf16.gmra.mrb[0].mxu0 %v218
    %v1504 = vpop.f32.mrb[0].mxu0
    %v1505 = vadd.f32 %v415, %v1504
    %v1506 = vpop.f32.mrb[0].mxu0
    %v1507 = vadd.f32 %v419, %v1506
    %v1508 = vpop.f32.mrb[0].mxu0
    %v1509 = vadd.f32 %v415, %v1508
    %v1510 = vpop.f32.mrb[0].mxu0
    %v1511 = vadd.f32 %v419, %v1510
    %1512 = vmatprep.mubr.bf16.mxu0 %v223
    %1513 = vmatmul.mubr.bf16.gmra.mrb[0].mxu0 %v222
    %v1514 = vpop.f32.mrb[0].mxu0
    %v1515 = vadd.f32 %v415, %v1514
    %v1516 = vpop.f32.mrb[0].mxu0
    %v1517 = vadd.f32 %v419, %v1516
    %v1518 = vpop.f32.mrb[0].mxu0
    %v1519 = vadd.f32 %v415, %v1518
    %v1520 = vpop.f32.mrb[0].mxu0
    %v1521 = vadd.f32 %v419, %v1520
    %1522 = vmatprep.mubr.bf16.mxu0 %v227
    %1523 = vmatmul.mubr.bf16.gmra.mrb[0].mxu0 %v226
    %v1524 = vpop.f32.mrb[0].mxu0
    %v1525 = vadd.f32 %v415, %v1524
    %v1526 = vpop.f32.mrb[0].mxu0
    %v1527 = vadd.f32 %v419, %v1526
    %v1528 = vpop.f32.mrb[0].mxu0
    %v1529 = vadd.f32 %v415, %v1528
    %v1530 = vpop.f32.mrb[0].mxu0
    %v1531 = vadd.f32 %v419, %v1530
    %1532 = vmatprep.mubr.bf16.mxu0 %v231
    %1533 = vmatmul.mubr.bf16.gmra.mrb[0].mxu0 %v230
    %v1534 = vpop.f32.mrb[0].mxu0
    %v1535 = vadd.f32 %v415, %v1534
    %v1536 = vpop.f32.mrb[0].mxu0
    %v1537 = vadd.f32 %v419, %v1536
    %v1538 = vpop.f32.mrb[0].mxu0
    %v1539 = vadd.f32 %v415, %v1538
    %v1540 = vpop.f32.mrb[0].mxu0
    %v1541 = vadd.f32 %v419, %v1540
    %1542 = vmatprep.mubr.bf16.mxu0 %v235
    %1543 = vmatmul.mubr.bf16.gmra.mrb[0].mxu0 %v234
    %v1544 = vpop.f32.mrb[0].mxu0
    %v1545 = vadd.f32 %v415, %v1544
    %v1546 = vpop.f32.mrb[0].mxu0
    %v1547 = vadd.f32 %v419, %v1546
    %v1548 = vpop.f32.mrb[0].mxu0
    %v1549 = vadd.f32 %v415, %v1548
    %v1550 = vpop.f32.mrb[0].mxu0
    %v1551 = vadd.f32 %v419, %v1550
    %1552 = vmatprep.mubr.bf16.mxu0 %v239
    %1553 = vmatmul.mubr.bf16.gmra.mrb[0].mxu0 %v238
    %v1554 = vpop.f32.mrb[0].mxu0
    %v1555 = vadd.f32 %v415, %v1554
    %v1556 = vpop.f32.mrb[0].mxu0
    %v1557 = vadd.f32 %v419, %v1556
    %v1558 = vpop.f32.mrb[0].mxu0
    %v1559 = vadd.f32 %v415, %v1558
    %v1560 = vpop.f32.mrb[0].mxu0
    %v1561 = vadd.f32 %v419, %v1560
    %1562 = vmatprep.mubr.bf16.mxu0 %v243
    %1563 = vmatmul.mubr.bf16.gmra.mrb[0].mxu0 %v242
    %v1564 = vpop.f32.mrb[0].mxu0
    %v1565 = vadd.f32 %v415, %v1564
    %v1566 = vpop.f32.mrb[0].mxu0
    %v1567 = vadd.f32 %v419, %v1566
    %v1568 = vpop.f32.mrb[0].mxu0
    %v1569 = vadd.f32 %v415, %v1568
    %v1570 = vpop.f32.mrb[0].mxu0
    %v1571 = vadd.f32 %v419, %v1570
    %1572 = vmatprep.mubr.bf16.mxu0 %v247
    %1573 = vmatmul.mubr.bf16.gmra.mrb[0].mxu0 %v246
    %v1574 = vpop.f32.mrb[0].mxu0
    %v1575 = vadd.f32 %v415, %v1574
    %v1576 = vpop.f32.mrb[0].mxu0
    %v1577 = vadd.f32 %v419, %v1576
    %v1578 = vpop.f32.mrb[0].mxu0
    %v1579 = vadd.f32 %v415, %v1578
    %v1580 = vpop.f32.mrb[0].mxu0
    %v1581 = vadd.f32 %v419, %v1580
    %1582 = vmatprep.mubr.bf16.mxu0 %v251
    %1583 = vmatmul.mubr.bf16.gmra.mrb[0].mxu0 %v250
    %v1584 = vpop.f32.mrb[0].mxu0
    %v1585 = vadd.f32 %v415, %v1584
    %v1586 = vpop.f32.mrb[0].mxu0
    %v1587 = vadd.f32 %v419, %v1586
    %v1588 = vpop.f32.mrb[0].mxu0
    %v1589 = vadd.f32 %v415, %v1588
    %v1590 = vpop.f32.mrb[0].mxu0
    %v1591 = vadd.f32 %v419, %v1590
    %1592 = vmatprep.mubr.bf16.mxu0 %v255
    %1593 = vmatmul.mubr.bf16.gmra.mrb[0].mxu0 %v254
    %v1594 = vpop.f32.mrb[0].mxu0
    %v1595 = vadd.f32 %v415, %v1594
    %v1596 = vpop.f32.mrb[0].mxu0
    %v1597 = vadd.f32 %v419, %v1596
    %v1598 = vpop.f32.mrb[0].mxu0
    %v1599 = vadd.f32 %v415, %v1598
    %v1600 = vpop.f32.mrb[0].mxu0
    %v1601 = vadd.f32 %v419, %v1600
    %1602 = vmatprep.mubr.bf16.mxu0 %v259
    %1603 = vmatmul.mubr.bf16.gmra.mrb[0].mxu0 %v258
    %v1604 = vpop.f32.mrb[0].mxu0
    %v1605 = vadd.f32 %v415, %v1604
    %v1606 = vpop.f32.mrb[0].mxu0
    %v1607 = vadd.f32 %v419, %v1606
    %v1608 = vpop.f32.mrb[0].mxu0
    %v1609 = vadd.f32 %v415, %v1608
    %v1610 = vpop.f32.mrb[0].mxu0
    %v1611 = vadd.f32 %v419, %v1610
    %1612 = vmatprep.mubr.bf16.mxu0 %v263
    %1613 = vmatmul.mubr.bf16.gmra.mrb[0].mxu0 %v262
    %v1614 = vpop.f32.mrb[0].mxu0
    %v1615 = vadd.f32 %v415, %v1614
    %v1616 = vpop.f32.mrb[0].mxu0
    %v1617 = vadd.f32 %v419, %v1616
    %v1618 = vpop.f32.mrb[0].mxu0
    %v1619 = vadd.f32 %v415, %v1618
    %v1620 = vpop.f32.mrb[0].mxu0
    %v1621 = vadd.f32 %v419, %v1620
    %1622 = vmatprep.mubr.bf16.mxu0 %v267
    %1623 = vmatmul.mubr.bf16.gmra.mrb[0].mxu0 %v266
    %v1624 = vpop.f32.mrb[0].mxu0
    %v1625 = vadd.f32 %v415, %v1624
    %v1626 = vpop.f32.mrb[0].mxu0
    %v1627 = vadd.f32 %v419, %v1626
    %v1628 = vpop.f32.mrb[0].mxu0
    %v1629 = vadd.f32 %v415, %v1628
    %v1630 = vpop.f32.mrb[0].mxu0
    %v1631 = vadd.f32 %v419, %v1630
    %1632 = vmatprep.mubr.bf16.mxu0 %v271
    %1633 = vmatmul.mubr.bf16.gmra.mrb[0].mxu0 %v270
    %v1634 = vpop.f32.mrb[0].mxu0
    %v1635 = vadd.f32 %v415, %v1634
    %v1636 = vpop.f32.mrb[0].mxu0
    %v1637 = vadd.f32 %v419, %v1636
    %v1638 = vpop.f32.mrb[0].mxu0
    %v1639 = vadd.f32 %v415, %v1638
    %v1640 = vpop.f32.mrb[0].mxu0
    %v1641 = vadd.f32 %v419, %v1640
    %1642 = vdwg.mxu0
    %1643 = vmatprep.subr.bf16.mxu0 %v875
    %1644 = vmatpush1.bf16.msra.mxu0 %v874
    %1645 = vmatprep.subr.bf16.mxu0 %v879
    %1646 = vmatpush1.bf16.msra.mxu0 %v878
    %1647 = vmatprep.subr.bf16.mxu0 %v883
    %1648 = vmatpush1.bf16.msra.mxu0 %v882
    %1649 = vmatprep.subr.bf16.mxu0 %v887
    %1650 = vmatpush1.bf16.msra.mxu0 %v886
    %1651 = vmatprep.subr.bf16.mxu0 %v891
    %1652 = vmatpush1.bf16.msra.mxu0 %v890
    %1653 = vmatprep.subr.bf16.mxu0 %v895
    %1654 = vmatpush1.bf16.msra.mxu0 %v894
    %1655 = vmatprep.subr.bf16.mxu0 %v899
    %1656 = vmatpush1.bf16.msra.mxu0 %v898
    %1657 = vmatprep.subr.bf16.mxu0 %v903
    %1658 = vmatpush1.bf16.msra.mxu0 %v902
    %1659 = vmatprep.subr.bf16.mxu0 %v907
    %1660 = vmatpush1.bf16.msra.mxu0 %v906
    %1661 = vmatprep.subr.bf16.mxu0 %v911
    %1662 = vmatpush1.bf16.msra.mxu0 %v910
    %1663 = vmatprep.subr.bf16.mxu0 %v915
    %1664 = vmatpush1.bf16.msra.mxu0 %v914
    %1665 = vmatprep.subr.bf16.mxu0 %v919
    %1666 = vmatpush1.bf16.msra.mxu0 %v918
    %1667 = vmatprep.subr.bf16.mxu0 %v923
    %1668 = vmatpush1.bf16.msra.mxu0 %v922
    %1669 = vmatprep.subr.bf16.mxu0 %v927
    %1670 = vmatpush1.bf16.msra.mxu0 %v926
    %1671 = vmatprep.subr.bf16.mxu0 %v931
    %1672 = vmatpush1.bf16.msra.mxu0 %v930
    %1673 = vmatprep.subr.bf16.mxu0 %v935
    %1674 = vmatpush1.bf16.msra.mxu0 %v934
    %1675 = vmatprep.mubr.bf16.mxu0 %v213
    %1676 = vmatmul.mubr.bf16.gmra.mrb[0].mxu0 %v212
    %v1677 = vpop.f32.mrb[0].mxu0
    %v1678 = vadd.f32 %v1485, %v1677
    %v1679 = vpop.f32.mrb[0].mxu0
    %v1680 = vadd.f32 %v1487, %v1679
    %v1681 = vpop.f32.mrb[0].mxu0
    %v1682 = vadd.f32 %v1489, %v1681
    %v1683 = vpop.f32.mrb[0].mxu0
    %v1684 = vadd.f32 %v1491, %v1683
    %1685 = vmatprep.mubr.bf16.mxu0 %v217
    %1686 = vmatmul.mubr.bf16.gmra.mrb[0].mxu0 %v216
    %v1687 = vpop.f32.mrb[0].mxu0
    %v1688 = vadd.f32 %v1495, %v1687
    %v1689 = vpop.f32.mrb[0].mxu0
    %v1690 = vadd.f32 %v1497, %v1689
    %v1691 = vpop.f32.mrb[0].mxu0
    %v1692 = vadd.f32 %v1499, %v1691
    %v1693 = vpop.f32.mrb[0].mxu0
    %v1694 = vadd.f32 %v1501, %v1693
    %1695 = vmatprep.mubr.bf16.mxu0 %v221
    %1696 = vmatmul.mubr.bf16.gmra.mrb[0].mxu0 %v220
    %v1697 = vpop.f32.mrb[0].mxu0
    %v1698 = vadd.f32 %v1505, %v1697
    %v1699 = vpop.f32.mrb[0].mxu0
    %v1700 = vadd.f32 %v1507, %v1699
    %v1701 = vpop.f32.mrb[0].mxu0
    %v1702 = vadd.f32 %v1509, %v1701
    %v1703 = vpop.f32.mrb[0].mxu0
    %v1704 = vadd.f32 %v1511, %v1703
    %1705 = vmatprep.mubr.bf16.mxu0 %v225
    %1706 = vmatmul.mubr.bf16.gmra.mrb[0].mxu0 %v224
    %v1707 = vpop.f32.mrb[0].mxu0
    %v1708 = vadd.f32 %v1515, %v1707
    %v1709 = vpop.f32.mrb[0].mxu0
    %v1710 = vadd.f32 %v1517, %v1709
    %v1711 = vpop.f32.mrb[0].mxu0
    %v1712 = vadd.f32 %v1519, %v1711
    %v1713 = vpop.f32.mrb[0].mxu0
    %v1714 = vadd.f32 %v1521, %v1713
    %1715 = vmatprep.mubr.bf16.mxu0 %v229
    %1716 = vmatmul.mubr.bf16.gmra.mrb[0].mxu0 %v228
    %v1717 = vpop.f32.mrb[0].mxu0
    %v1718 = vadd.f32 %v1525, %v1717
    %v1719 = vpop.f32.mrb[0].mxu0
    %v1720 = vadd.f32 %v1527, %v1719
    %v1721 = vpop.f32.mrb[0].mxu0
    %v1722 = vadd.f32 %v1529, %v1721
    %v1723 = vpop.f32.mrb[0].mxu0
    %v1724 = vadd.f32 %v1531, %v1723
    %1725 = vmatprep.mubr.bf16.mxu0 %v233
    %1726 = vmatmul.mubr.bf16.gmra.mrb[0].mxu0 %v232
    %v1727 = vpop.f32.mrb[0].mxu0
    %v1728 = vadd.f32 %v1535, %v1727
    %v1729 = vpop.f32.mrb[0].mxu0
    %v1730 = vadd.f32 %v1537, %v1729
    %v1731 = vpop.f32.mrb[0].mxu0
    %v1732 = vadd.f32 %v1539, %v1731
    %v1733 = vpop.f32.mrb[0].mxu0
    %v1734 = vadd.f32 %v1541, %v1733
    %1735 = vmatprep.mubr.bf16.mxu0 %v237
    %1736 = vmatmul.mubr.bf16.gmra.mrb[0].mxu0 %v236
    %v1737 = vpop.f32.mrb[0].mxu0
    %v1738 = vadd.f32 %v1545, %v1737
    %v1739 = vpop.f32.mrb[0].mxu0
    %v1740 = vadd.f32 %v1547, %v1739
    %v1741 = vpop.f32.mrb[0].mxu0
    %v1742 = vadd.f32 %v1549, %v1741
    %v1743 = vpop.f32.mrb[0].mxu0
    %v1744 = vadd.f32 %v1551, %v1743
    %1745 = vmatprep.mubr.bf16.mxu0 %v241
    %1746 = vmatmul.mubr.bf16.gmra.mrb[0].mxu0 %v240
    %v1747 = vpop.f32.mrb[0].mxu0
    %v1748 = vadd.f32 %v1555, %v1747
    %v1749 = vpop.f32.mrb[0].mxu0
    %v1750 = vadd.f32 %v1557, %v1749
    %v1751 = vpop.f32.mrb[0].mxu0
    %v1752 = vadd.f32 %v1559, %v1751
    %v1753 = vpop.f32.mrb[0].mxu0
    %v1754 = vadd.f32 %v1561, %v1753
    %1755 = vmatprep.mubr.bf16.mxu0 %v245
    %1756 = vmatmul.mubr.bf16.gmra.mrb[0].mxu0 %v244
    %v1757 = vpop.f32.mrb[0].mxu0
    %v1758 = vadd.f32 %v1565, %v1757
    %v1759 = vpop.f32.mrb[0].mxu0
    %v1760 = vadd.f32 %v1567, %v1759
    %v1761 = vpop.f32.mrb[0].mxu0
    %v1762 = vadd.f32 %v1569, %v1761
    %v1763 = vpop.f32.mrb[0].mxu0
    %v1764 = vadd.f32 %v1571, %v1763
    %1765 = vmatprep.mubr.bf16.mxu0 %v249
    %1766 = vmatmul.mubr.bf16.gmra.mrb[0].mxu0 %v248
    %v1767 = vpop.f32.mrb[0].mxu0
    %v1768 = vadd.f32 %v1575, %v1767
    %v1769 = vpop.f32.mrb[0].mxu0
    %v1770 = vadd.f32 %v1577, %v1769
    %v1771 = vpop.f32.mrb[0].mxu0
    %v1772 = vadd.f32 %v1579, %v1771
    %v1773 = vpop.f32.mrb[0].mxu0
    %v1774 = vadd.f32 %v1581, %v1773
    %1775 = vmatprep.mubr.bf16.mxu0 %v253
    %1776 = vmatmul.mubr.bf16.gmra.mrb[0].mxu0 %v252
    %v1777 = vpop.f32.mrb[0].mxu0
    %v1778 = vadd.f32 %v1585, %v1777
    %v1779 = vpop.f32.mrb[0].mxu0
    %v1780 = vadd.f32 %v1587, %v1779
    %v1781 = vpop.f32.mrb[0].mxu0
    %v1782 = vadd.f32 %v1589, %v1781
    %v1783 = vpop.f32.mrb[0].mxu0
    %v1784 = vadd.f32 %v1591, %v1783
    %1785 = vmatprep.mubr.bf16.mxu0 %v257
    %1786 = vmatmul.mubr.bf16.gmra.mrb[0].mxu0 %v256
    %v1787 = vpop.f32.mrb[0].mxu0
    %v1788 = vadd.f32 %v1595, %v1787
    %v1789 = vpop.f32.mrb[0].mxu0
    %v1790 = vadd.f32 %v1597, %v1789
    %v1791 = vpop.f32.mrb[0].mxu0
    %v1792 = vadd.f32 %v1599, %v1791
    %v1793 = vpop.f32.mrb[0].mxu0
    %v1794 = vadd.f32 %v1601, %v1793
    %1795 = vmatprep.mubr.bf16.mxu0 %v261
    %1796 = vmatmul.mubr.bf16.gmra.mrb[0].mxu0 %v260
    %v1797 = vpop.f32.mrb[0].mxu0
    %v1798 = vadd.f32 %v1605, %v1797
    %v1799 = vpop.f32.mrb[0].mxu0
    %v1800 = vadd.f32 %v1607, %v1799
    %v1801 = vpop.f32.mrb[0].mxu0
    %v1802 = vadd.f32 %v1609, %v1801
    %v1803 = vpop.f32.mrb[0].mxu0
    %v1804 = vadd.f32 %v1611, %v1803
    %1805 = vmatprep.mubr.bf16.mxu0 %v265
    %1806 = vmatmul.mubr.bf16.gmra.mrb[0].mxu0 %v264
    %v1807 = vpop.f32.mrb[0].mxu0
    %v1808 = vadd.f32 %v1615, %v1807
    %v1809 = vpop.f32.mrb[0].mxu0
    %v1810 = vadd.f32 %v1617, %v1809
    %v1811 = vpop.f32.mrb[0].mxu0
    %v1812 = vadd.f32 %v1619, %v1811
    %v1813 = vpop.f32.mrb[0].mxu0
    %v1814 = vadd.f32 %v1621, %v1813
    %1815 = vmatprep.mubr.bf16.mxu0 %v269
    %1816 = vmatmul.mubr.bf16.gmra.mrb[0].mxu0 %v268
    %v1817 = vpop.f32.mrb[0].mxu0
    %v1818 = vadd.f32 %v1625, %v1817
    %v1819 = vpop.f32.mrb[0].mxu0
    %v1820 = vadd.f32 %v1627, %v1819
    %v1821 = vpop.f32.mrb[0].mxu0
    %v1822 = vadd.f32 %v1629, %v1821
    %v1823 = vpop.f32.mrb[0].mxu0
    %v1824 = vadd.f32 %v1631, %v1823
    %1825 = vmatprep.mubr.bf16.mxu0 %v273
    %1826 = vmatmul.mubr.bf16.gmra.mrb[0].mxu0 %v272
    %v1827 = vpop.f32.mrb[0].mxu0
    %v1828 = vadd.f32 %v1635, %v1827
    %v1829 = vpop.f32.mrb[0].mxu0
    %v1830 = vadd.f32 %v1637, %v1829
    %v1831 = vpop.f32.mrb[0].mxu0
    %v1832 = vadd.f32 %v1639, %v1831
    %v1833 = vpop.f32.mrb[0].mxu0
    %v1834 = vadd.f32 %v1641, %v1833
    %1835 = vdwg.mxu0
    %v1836 = vmax.f32 %v1292, 0.0
    %v1837 = vmax.f32 %v1294, 0.0
    %v1838 = vmax.f32 %v1678, 0.0
    %v1839 = vmax.f32 %v1680, 0.0
    %v1840 = vmax.f32 %v1296, 0.0
    %v1841 = vmax.f32 %v1298, 0.0
    %v1842 = vmax.f32 %v1682, 0.0
    %v1843 = vmax.f32 %v1684, 0.0
    %v1844 = vmax.f32 %v1302, 0.0
    %v1845 = vmax.f32 %v1304, 0.0
    %v1846 = vmax.f32 %v1688, 0.0
    %v1847 = vmax.f32 %v1690, 0.0
    %v1848 = vmax.f32 %v1306, 0.0
    %v1849 = vmax.f32 %v1308, 0.0
    %v1850 = vmax.f32 %v1692, 0.0
    %v1851 = vmax.f32 %v1694, 0.0
    %v1852 = vmax.f32 %v1312, 0.0
    %v1853 = vmax.f32 %v1314, 0.0
    %v1854 = vmax.f32 %v1698, 0.0
    %v1855 = vmax.f32 %v1700, 0.0
    %v1856 = vmax.f32 %v1316, 0.0
    %v1857 = vmax.f32 %v1318, 0.0
    %v1858 = vmax.f32 %v1702, 0.0
    %v1859 = vmax.f32 %v1704, 0.0
    %v1860 = vmax.f32 %v1322, 0.0
    %v1861 = vmax.f32 %v1324, 0.0
    %v1862 = vmax.f32 %v1708, 0.0
    %v1863 = vmax.f32 %v1710, 0.0
    %v1864 = vmax.f32 %v1326, 0.0
    %v1865 = vmax.f32 %v1328, 0.0
    %v1866 = vmax.f32 %v1712, 0.0
    %v1867 = vmax.f32 %v1714, 0.0
    %v1868 = vmax.f32 %v1332, 0.0
    %v1869 = vmax.f32 %v1334, 0.0
    %v1870 = vmax.f32 %v1718, 0.0
    %v1871 = vmax.f32 %v1720, 0.0
    %v1872 = vmax.f32 %v1336, 0.0
    %v1873 = vmax.f32 %v1338, 0.0
    %v1874 = vmax.f32 %v1722, 0.0
    %v1875 = vmax.f32 %v1724, 0.0
    %v1876 = vmax.f32 %v1342, 0.0
    %v1877 = vmax.f32 %v1344, 0.0
    %v1878 = vmax.f32 %v1728, 0.0
    %v1879 = vmax.f32 %v1730, 0.0
    %v1880 = vmax.f32 %v1346, 0.0
    %v1881 = vmax.f32 %v1348, 0.0
    %v1882 = vmax.f32 %v1732, 0.0
    %v1883 = vmax.f32 %v1734, 0.0
    %v1884 = vmax.f32 %v1352, 0.0
    %v1885 = vmax.f32 %v1354, 0.0
    %v1886 = vmax.f32 %v1738, 0.0
    %v1887 = vmax.f32 %v1740, 0.0
    %v1888 = vmax.f32 %v1356, 0.0
    %v1889 = vmax.f32 %v1358, 0.0
    %v1890 = vmax.f32 %v1742, 0.0
    %v1891 = vmax.f32 %v1744, 0.0
    %v1892 = vmax.f32 %v1362, 0.0
    %v1893 = vmax.f32 %v1364, 0.0
    %v1894 = vmax.f32 %v1748, 0.0
    %v1895 = vmax.f32 %v1750, 0.0
    %v1896 = vmax.f32 %v1366, 0.0
    %v1897 = vmax.f32 %v1368, 0.0
    %v1898 = vmax.f32 %v1752, 0.0
    %v1899 = vmax.f32 %v1754, 0.0
    %v1900 = vmax.f32 %v1372, 0.0
    %v1901 = vmax.f32 %v1374, 0.0
    %v1902 = vmax.f32 %v1758, 0.0
    %v1903 = vmax.f32 %v1760, 0.0
    %v1904 = vmax.f32 %v1376, 0.0
    %v1905 = vmax.f32 %v1378, 0.0
    %v1906 = vmax.f32 %v1762, 0.0
    %v1907 = vmax.f32 %v1764, 0.0
    %v1908 = vmax.f32 %v1382, 0.0
    %v1909 = vmax.f32 %v1384, 0.0
    %v1910 = vmax.f32 %v1768, 0.0
    %v1911 = vmax.f32 %v1770, 0.0
    %v1912 = vmax.f32 %v1386, 0.0
    %v1913 = vmax.f32 %v1388, 0.0
    %v1914 = vmax.f32 %v1772, 0.0
    %v1915 = vmax.f32 %v1774, 0.0
    %v1916 = vmax.f32 %v1392, 0.0
    %v1917 = vmax.f32 %v1394, 0.0
    %v1918 = vmax.f32 %v1778, 0.0
    %v1919 = vmax.f32 %v1780, 0.0
    %v1920 = vmax.f32 %v1396, 0.0
    %v1921 = vmax.f32 %v1398, 0.0
    %v1922 = vmax.f32 %v1782, 0.0
    %v1923 = vmax.f32 %v1784, 0.0
    %v1924 = vmax.f32 %v1402, 0.0
    %v1925 = vmax.f32 %v1404, 0.0
    %v1926 = vmax.f32 %v1788, 0.0
    %v1927 = vmax.f32 %v1790, 0.0
    %v1928 = vmax.f32 %v1406, 0.0
    %v1929 = vmax.f32 %v1408, 0.0
    %v1930 = vmax.f32 %v1792, 0.0
    %v1931 = vmax.f32 %v1794, 0.0
    %v1932 = vmax.f32 %v1412, 0.0
    %v1933 = vmax.f32 %v1414, 0.0
    %v1934 = vmax.f32 %v1798, 0.0
    %v1935 = vmax.f32 %v1800, 0.0
    %v1936 = vmax.f32 %v1416, 0.0
    %v1937 = vmax.f32 %v1418, 0.0
    %v1938 = vmax.f32 %v1802, 0.0
    %v1939 = vmax.f32 %v1804, 0.0
    %v1940 = vmax.f32 %v1422, 0.0
    %v1941 = vmax.f32 %v1424, 0.0
    %v1942 = vmax.f32 %v1808, 0.0
    %v1943 = vmax.f32 %v1810, 0.0
    %v1944 = vmax.f32 %v1426, 0.0
    %v1945 = vmax.f32 %v1428, 0.0
    %v1946 = vmax.f32 %v1812, 0.0
    %v1947 = vmax.f32 %v1814, 0.0
    %v1948 = vmax.f32 %v1432, 0.0
    %v1949 = vmax.f32 %v1434, 0.0
    %v1950 = vmax.f32 %v1818, 0.0
    %v1951 = vmax.f32 %v1820, 0.0
    %v1952 = vmax.f32 %v1436, 0.0
    %v1953 = vmax.f32 %v1438, 0.0
    %v1954 = vmax.f32 %v1822, 0.0
    %v1955 = vmax.f32 %v1824, 0.0
    %v1956 = vmax.f32 %v1442, 0.0
    %v1957 = vmax.f32 %v1444, 0.0
    %v1958 = vmax.f32 %v1828, 0.0
    %v1959 = vmax.f32 %v1830, 0.0
    %v1960 = vmax.f32 %v1446, 0.0
    %v1961 = vmax.f32 %v1448, 0.0
    %v1962 = vmax.f32 %v1832, 0.0
    %v1963 = vmax.f32 %v1834, 0.0
    %v1964 = vpack.c.bf16 %v1840, %v1836
    %v1965 = vpack.c.bf16 %v1841, %v1837
    %v1966 = vpack.c.bf16 %v1842, %v1838
    %v1967 = vpack.c.bf16 %v1843, %v1839
    %v1968 = vpack.c.bf16 %v1848, %v1844
    %v1969 = vpack.c.bf16 %v1849, %v1845
    %v1970 = vpack.c.bf16 %v1850, %v1846
    %v1971 = vpack.c.bf16 %v1851, %v1847
    %v1972 = vpack.c.bf16 %v1856, %v1852
    %v1973 = vpack.c.bf16 %v1857, %v1853
    %v1974 = vpack.c.bf16 %v1858, %v1854
    %v1975 = vpack.c.bf16 %v1859, %v1855
    %v1976 = vpack.c.bf16 %v1864, %v1860
    %v1977 = vpack.c.bf16 %v1865, %v1861
    %v1978 = vpack.c.bf16 %v1866, %v1862
    %v1979 = vpack.c.bf16 %v1867, %v1863
    %v1980 = vpack.c.bf16 %v1872, %v1868
    %v1981 = vpack.c.bf16 %v1873, %v1869
    %v1982 = vpack.c.bf16 %v1874, %v1870
    %v1983 = vpack.c.bf16 %v1875, %v1871
    %v1984 = vpack.c.bf16 %v1880, %v1876
    %v1985 = vpack.c.bf16 %v1881, %v1877
    %v1986 = vpack.c.bf16 %v1882, %v1878
    %v1987 = vpack.c.bf16 %v1883, %v1879
    %v1988 = vpack.c.bf16 %v1888, %v1884
    %v1989 = vpack.c.bf16 %v1889, %v1885
    %v1990 = vpack.c.bf16 %v1890, %v1886
    %v1991 = vpack.c.bf16 %v1891, %v1887
    %v1992 = vpack.c.bf16 %v1896, %v1892
    %v1993 = vpack.c.bf16 %v1897, %v1893
    %v1994 = vpack.c.bf16 %v1898, %v1894
    %v1995 = vpack.c.bf16 %v1899, %v1895
    %v1996 = vpack.c.bf16 %v1904, %v1900
    %v1997 = vpack.c.bf16 %v1905, %v1901
    %v1998 = vpack.c.bf16 %v1906, %v1902
    %v1999 = vpack.c.bf16 %v1907, %v1903
    %v2000 = vpack.c.bf16 %v1912, %v1908
    %v2001 = vpack.c.bf16 %v1913, %v1909
    %v2002 = vpack.c.bf16 %v1914, %v1910
    %v2003 = vpack.c.bf16 %v1915, %v1911
    %v2004 = vpack.c.bf16 %v1920, %v1916
    %v2005 = vpack.c.bf16 %v1921, %v1917
    %v2006 = vpack.c.bf16 %v1922, %v1918
    %v2007 = vpack.c.bf16 %v1923, %v1919
    %v2008 = vpack.c.bf16 %v1928, %v1924
    %v2009 = vpack.c.bf16 %v1929, %v1925
    %v2010 = vpack.c.bf16 %v1930, %v1926
    %v2011 = vpack.c.bf16 %v1931, %v1927
    %v2012 = vpack.c.bf16 %v1936, %v1932
    %v2013 = vpack.c.bf16 %v1937, %v1933
    %v2014 = vpack.c.bf16 %v1938, %v1934
    %v2015 = vpack.c.bf16 %v1939, %v1935
    %v2016 = vpack.c.bf16 %v1944, %v1940
    %v2017 = vpack.c.bf16 %v1945, %v1941
    %v2018 = vpack.c.bf16 %v1946, %v1942
    %v2019 = vpack.c.bf16 %v1947, %v1943
    %v2020 = vpack.c.bf16 %v1952, %v1948
    %v2021 = vpack.c.bf16 %v1953, %v1949
    %v2022 = vpack.c.bf16 %v1954, %v1950
    %v2023 = vpack.c.bf16 %v1955, %v1951
    %v2024 = vpack.c.bf16 %v1960, %v1956
    %v2025 = vpack.c.bf16 %v1961, %v1957
    %v2026 = vpack.c.bf16 %v1962, %v1958
    %v2027 = vpack.c.bf16 %v1963, %v1959
    %v2028 = vld [vmem:[#allocation6] sm:$0xff]
    %v2029 = vld [vmem:[#allocation6 + $0x8] sm:$0xff]
    %v2030 = vld [vmem:[#allocation6 + $0x10] sm:$0xff]
    %v2031 = vld [vmem:[#allocation6 + $0x18] sm:$0xff]
    %v2032 = vld [vmem:[#allocation6 + $0x20] sm:$0xff]
    %v2033 = vld [vmem:[#allocation6 + $0x28] sm:$0xff]
    %v2034 = vld [vmem:[#allocation6 + $0x30] sm:$0xff]
    %v2035 = vld [vmem:[#allocation6 + $0x38] sm:$0xff]
    %v2036 = vld [vmem:[#allocation6 + $0x40] sm:$0xff]
    %v2037 = vld [vmem:[#allocation6 + $0x48] sm:$0xff]
    %v2038 = vld [vmem:[#allocation6 + $0x50] sm:$0xff]
    %v2039 = vld [vmem:[#allocation6 + $0x58] sm:$0xff]
    %v2040 = vld [vmem:[#allocation6 + $0x60] sm:$0xff]
    %v2041 = vld [vmem:[#allocation6 + $0x68] sm:$0xff]
    %v2042 = vld [vmem:[#allocation6 + $0x70] sm:$0xff]
    %v2043 = vld [vmem:[#allocation6 + $0x78] sm:$0xff]
    %v2044 = vld [vmem:[#allocation6 + $0x80] sm:$0xff]
    %v2045 = vld [vmem:[#allocation6 + $0x88] sm:$0xff]
    %v2046 = vld [vmem:[#allocation6 + $0x90] sm:$0xff]
    %v2047 = vld [vmem:[#allocation6 + $0x98] sm:$0xff]
    %v2048 = vld [vmem:[#allocation6 + $0xa0] sm:$0xff]
    %v2049 = vld [vmem:[#allocation6 + $0xa8] sm:$0xff]
    %v2050 = vld [vmem:[#allocation6 + $0xb0] sm:$0xff]
    %v2051 = vld [vmem:[#allocation6 + $0xb8] sm:$0xff]
    %v2052 = vld [vmem:[#allocation6 + $0xc0] sm:$0xff]
    %v2053 = vld [vmem:[#allocation6 + $0xc8] sm:$0xff]
    %v2054 = vld [vmem:[#allocation6 + $0xd0] sm:$0xff]
    %v2055 = vld [vmem:[#allocation6 + $0xd8] sm:$0xff]
    %v2056 = vld [vmem:[#allocation6 + $0xe0] sm:$0xff]
    %v2057 = vld [vmem:[#allocation6 + $0xe8] sm:$0xff]
    %v2058 = vld [vmem:[#allocation6 + $0xf0] sm:$0xff]
    %v2059 = vld [vmem:[#allocation6 + $0xf8] sm:$0xff]
    %v2060 = vld [vmem:[#allocation6 + $0x100] sm:$0xff]
    %v2061 = vld [vmem:[#allocation6 + $0x108] sm:$0xff]
    %v2062 = vld [vmem:[#allocation6 + $0x110] sm:$0xff]
    %v2063 = vld [vmem:[#allocation6 + $0x118] sm:$0xff]
    %v2064 = vld [vmem:[#allocation6 + $0x120] sm:$0xff]
    %v2065 = vld [vmem:[#allocation6 + $0x128] sm:$0xff]
    %v2066 = vld [vmem:[#allocation6 + $0x130] sm:$0xff]
    %v2067 = vld [vmem:[#allocation6 + $0x138] sm:$0xff]
    %v2068 = vld [vmem:[#allocation6 + $0x140] sm:$0xff]
    %v2069 = vld [vmem:[#allocation6 + $0x148] sm:$0xff]
    %v2070 = vld [vmem:[#allocation6 + $0x150] sm:$0xff]
    %v2071 = vld [vmem:[#allocation6 + $0x158] sm:$0xff]
    %v2072 = vld [vmem:[#allocation6 + $0x160] sm:$0xff]
    %v2073 = vld [vmem:[#allocation6 + $0x168] sm:$0xff]
    %v2074 = vld [vmem:[#allocation6 + $0x170] sm:$0xff]
    %v2075 = vld [vmem:[#allocation6 + $0x178] sm:$0xff]
    %v2076 = vld [vmem:[#allocation6 + $0x180] sm:$0xff]
    %v2077 = vld [vmem:[#allocation6 + $0x188] sm:$0xff]
    %v2078 = vld [vmem:[#allocation6 + $0x190] sm:$0xff]
    %v2079 = vld [vmem:[#allocation6 + $0x198] sm:$0xff]
    %v2080 = vld [vmem:[#allocation6 + $0x1a0] sm:$0xff]
    %v2081 = vld [vmem:[#allocation6 + $0x1a8] sm:$0xff]
    %v2082 = vld [vmem:[#allocation6 + $0x1b0] sm:$0xff]
    %v2083 = vld [vmem:[#allocation6 + $0x1b8] sm:$0xff]
    %v2084 = vld [vmem:[#allocation6 + $0x1c0] sm:$0xff]
    %v2085 = vld [vmem:[#allocation6 + $0x1c8] sm:$0xff]
    %v2086 = vld [vmem:[#allocation6 + $0x1d0] sm:$0xff]
    %v2087 = vld [vmem:[#allocation6 + $0x1d8] sm:$0xff]
    %v2088 = vld [vmem:[#allocation6 + $0x1e0] sm:$0xff]
    %v2089 = vld [vmem:[#allocation6 + $0x1e8] sm:$0xff]
    %v2090 = vld [vmem:[#allocation6 + $0x1f0] sm:$0xff]
    %v2091 = vld [vmem:[#allocation6 + $0x1f8] sm:$0xff]
    %v2092 = vld [vmem:[%s4] sm:$0x3]
    %v2094 = vlaneseq
    %v2095 = vshrl.u32 %v2094, 7
    %v2096 = vsub.s32 0, %v2095
    %v2097 = vrot.slane %v2092, %v2096
    %v2098 = vlaneseq
    %v2099 = vshrl.u32 %v2098, 7
    %v2100 = vsub.s32 1, %v2099
    %v2101 = vrot.slane %v2092, %v2100
    %v2168 = vunpack.c.l.b16 %v2028
    %v2169 = vunpack.c.h.b16 %v2028
    %v2170 = vunpack.c.l.b16 %v2029
    %v2171 = vunpack.c.h.b16 %v2029
    %v2172 = vunpack.c.l.b16 %v2030
    %v2173 = vunpack.c.h.b16 %v2030
    %v2174 = vunpack.c.l.b16 %v2031
    %v2175 = vunpack.c.h.b16 %v2031
    %v2176 = vunpack.c.l.b16 %v2032
    %v2177 = vunpack.c.h.b16 %v2032
    %v2178 = vunpack.c.l.b16 %v2033
    %v2179 = vunpack.c.h.b16 %v2033
    %v2180 = vunpack.c.l.b16 %v2034
    %v2181 = vunpack.c.h.b16 %v2034
    %v2182 = vunpack.c.l.b16 %v2035
    %v2183 = vunpack.c.h.b16 %v2035
    %v2184 = vunpack.c.l.b16 %v2036
    %v2185 = vunpack.c.h.b16 %v2036
    %v2186 = vunpack.c.l.b16 %v2037
    %v2187 = vunpack.c.h.b16 %v2037
    %v2188 = vunpack.c.l.b16 %v2038
    %v2189 = vunpack.c.h.b16 %v2038
    %v2190 = vunpack.c.l.b16 %v2039
    %v2191 = vunpack.c.h.b16 %v2039
    %v2192 = vunpack.c.l.b16 %v2040
    %v2193 = vunpack.c.h.b16 %v2040
    %v2194 = vunpack.c.l.b16 %v2041
    %v2195 = vunpack.c.h.b16 %v2041
    %v2196 = vunpack.c.l.b16 %v2042
    %v2197 = vunpack.c.h.b16 %v2042
    %v2198 = vunpack.c.l.b16 %v2043
    %v2199 = vunpack.c.h.b16 %v2043
    %v2200 = vunpack.c.l.b16 %v2044
    %v2201 = vunpack.c.h.b16 %v2044
    %v2202 = vunpack.c.l.b16 %v2045
    %v2203 = vunpack.c.h.b16 %v2045
    %v2204 = vunpack.c.l.b16 %v2046
    %v2205 = vunpack.c.h.b16 %v2046
    %v2206 = vunpack.c.l.b16 %v2047
    %v2207 = vunpack.c.h.b16 %v2047
    %v2208 = vunpack.c.l.b16 %v2048
    %v2209 = vunpack.c.h.b16 %v2048
    %v2210 = vunpack.c.l.b16 %v2049
    %v2211 = vunpack.c.h.b16 %v2049
    %v2212 = vunpack.c.l.b16 %v2050
    %v2213 = vunpack.c.h.b16 %v2050
    %v2214 = vunpack.c.l.b16 %v2051
    %v2215 = vunpack.c.h.b16 %v2051
    %v2216 = vunpack.c.l.b16 %v2052
    %v2217 = vunpack.c.h.b16 %v2052
    %v2218 = vunpack.c.l.b16 %v2053
    %v2219 = vunpack.c.h.b16 %v2053
    %v2220 = vunpack.c.l.b16 %v2054
    %v2221 = vunpack.c.h.b16 %v2054
    %v2222 = vunpack.c.l.b16 %v2055
    %v2223 = vunpack.c.h.b16 %v2055
    %v2224 = vunpack.c.l.b16 %v2056
    %v2225 = vunpack.c.h.b16 %v2056
    %v2226 = vunpack.c.l.b16 %v2057
    %v2227 = vunpack.c.h.b16 %v2057
    %v2228 = vunpack.c.l.b16 %v2058
    %v2229 = vunpack.c.h.b16 %v2058
    %v2230 = vunpack.c.l.b16 %v2059
    %v2231 = vunpack.c.h.b16 %v2059
    %v2232 = vunpack.c.l.b16 %v2060
    %v2233 = vunpack.c.h.b16 %v2060
    %v2234 = vunpack.c.l.b16 %v2061
    %v2235 = vunpack.c.h.b16 %v2061
    %v2236 = vunpack.c.l.b16 %v2062
    %v2237 = vunpack.c.h.b16 %v2062
    %v2238 = vunpack.c.l.b16 %v2063
    %v2239 = vunpack.c.h.b16 %v2063
    %v2240 = vunpack.c.l.b16 %v2064
    %v2241 = vunpack.c.h.b16 %v2064
    %v2242 = vunpack.c.l.b16 %v2065
    %v2243 = vunpack.c.h.b16 %v2065
    %v2244 = vunpack.c.l.b16 %v2066
    %v2245 = vunpack.c.h.b16 %v2066
    %v2246 = vunpack.c.l.b16 %v2067
    %v2247 = vunpack.c.h.b16 %v2067
    %v2248 = vunpack.c.l.b16 %v2068
    %v2249 = vunpack.c.h.b16 %v2068
    %v2250 = vunpack.c.l.b16 %v2069
    %v2251 = vunpack.c.h.b16 %v2069
    %v2252 = vunpack.c.l.b16 %v2070
    %v2253 = vunpack.c.h.b16 %v2070
    %v2254 = vunpack.c.l.b16 %v2071
    %v2255 = vunpack.c.h.b16 %v2071
    %v2256 = vunpack.c.l.b16 %v2072
    %v2257 = vunpack.c.h.b16 %v2072
    %v2258 = vunpack.c.l.b16 %v2073
    %v2259 = vunpack.c.h.b16 %v2073
    %v2260 = vunpack.c.l.b16 %v2074
    %v2261 = vunpack.c.h.b16 %v2074
    %v2262 = vunpack.c.l.b16 %v2075
    %v2263 = vunpack.c.h.b16 %v2075
    %v2264 = vunpack.c.l.b16 %v2076
    %v2265 = vunpack.c.h.b16 %v2076
    %v2266 = vunpack.c.l.b16 %v2077
    %v2267 = vunpack.c.h.b16 %v2077
    %v2268 = vunpack.c.l.b16 %v2078
    %v2269 = vunpack.c.h.b16 %v2078
    %v2270 = vunpack.c.l.b16 %v2079
    %v2271 = vunpack.c.h.b16 %v2079
    %v2272 = vunpack.c.l.b16 %v2080
    %v2273 = vunpack.c.h.b16 %v2080
    %v2274 = vunpack.c.l.b16 %v2081
    %v2275 = vunpack.c.h.b16 %v2081
    %v2276 = vunpack.c.l.b16 %v2082
    %v2277 = vunpack.c.h.b16 %v2082
    %v2278 = vunpack.c.l.b16 %v2083
    %v2279 = vunpack.c.h.b16 %v2083
    %v2280 = vunpack.c.l.b16 %v2084
    %v2281 = vunpack.c.h.b16 %v2084
    %v2282 = vunpack.c.l.b16 %v2085
    %v2283 = vunpack.c.h.b16 %v2085
    %v2284 = vunpack.c.l.b16 %v2086
    %v2285 = vunpack.c.h.b16 %v2086
    %v2286 = vunpack.c.l.b16 %v2087
    %v2287 = vunpack.c.h.b16 %v2087
    %v2288 = vunpack.c.l.b16 %v2088
    %v2289 = vunpack.c.h.b16 %v2088
    %v2290 = vunpack.c.l.b16 %v2089
    %v2291 = vunpack.c.h.b16 %v2089
    %v2292 = vunpack.c.l.b16 %v2090
    %v2293 = vunpack.c.h.b16 %v2090
    %v2294 = vunpack.c.l.b16 %v2091
    %v2295 = vunpack.c.h.b16 %v2091
    %v2296 = vpack.c.b16 %v2170, %v2168
    %v2297 = vpack.c.b16 %v2171, %v2169
    %v2298 = vpack.c.b16 %v2174, %v2172
    %v2299 = vpack.c.b16 %v2175, %v2173
    %v2300 = vpack.c.b16 %v2178, %v2176
    %v2301 = vpack.c.b16 %v2179, %v2177
    %v2302 = vpack.c.b16 %v2182, %v2180
    %v2303 = vpack.c.b16 %v2183, %v2181
    %v2304 = vpack.c.b16 %v2186, %v2184
    %v2305 = vpack.c.b16 %v2187, %v2185
    %v2306 = vpack.c.b16 %v2190, %v2188
    %v2307 = vpack.c.b16 %v2191, %v2189
    %v2308 = vpack.c.b16 %v2194, %v2192
    %v2309 = vpack.c.b16 %v2195, %v2193
    %v2310 = vpack.c.b16 %v2198, %v2196
    %v2311 = vpack.c.b16 %v2199, %v2197
    %v2312 = vpack.c.b16 %v2202, %v2200
    %v2313 = vpack.c.b16 %v2203, %v2201
    %v2314 = vpack.c.b16 %v2206, %v2204
    %v2315 = vpack.c.b16 %v2207, %v2205
    %v2316 = vpack.c.b16 %v2210, %v2208
    %v2317 = vpack.c.b16 %v2211, %v2209
    %v2318 = vpack.c.b16 %v2214, %v2212
    %v2319 = vpack.c.b16 %v2215, %v2213
    %v2320 = vpack.c.b16 %v2218, %v2216
    %v2321 = vpack.c.b16 %v2219, %v2217
    %v2322 = vpack.c.b16 %v2222, %v2220
    %v2323 = vpack.c.b16 %v2223, %v2221
    %v2324 = vpack.c.b16 %v2226, %v2224
    %v2325 = vpack.c.b16 %v2227, %v2225
    %v2326 = vpack.c.b16 %v2230, %v2228
    %v2327 = vpack.c.b16 %v2231, %v2229
    %v2328 = vpack.c.b16 %v2234, %v2232
    %v2329 = vpack.c.b16 %v2235, %v2233
    %v2330 = vpack.c.b16 %v2238, %v2236
    %v2331 = vpack.c.b16 %v2239, %v2237
    %v2332 = vpack.c.b16 %v2242, %v2240
    %v2333 = vpack.c.b16 %v2243, %v2241
    %v2334 = vpack.c.b16 %v2246, %v2244
    %v2335 = vpack.c.b16 %v2247, %v2245
    %v2336 = vpack.c.b16 %v2250, %v2248
    %v2337 = vpack.c.b16 %v2251, %v2249
    %v2338 = vpack.c.b16 %v2254, %v2252
    %v2339 = vpack.c.b16 %v2255, %v2253
    %v2340 = vpack.c.b16 %v2258, %v2256
    %v2341 = vpack.c.b16 %v2259, %v2257
    %v2342 = vpack.c.b16 %v2262, %v2260
    %v2343 = vpack.c.b16 %v2263, %v2261
    %v2344 = vpack.c.b16 %v2266, %v2264
    %v2345 = vpack.c.b16 %v2267, %v2265
    %v2346 = vpack.c.b16 %v2270, %v2268
    %v2347 = vpack.c.b16 %v2271, %v2269
    %v2348 = vpack.c.b16 %v2274, %v2272
    %v2349 = vpack.c.b16 %v2275, %v2273
    %v2350 = vpack.c.b16 %v2278, %v2276
    %v2351 = vpack.c.b16 %v2279, %v2277
    %v2352 = vpack.c.b16 %v2282, %v2280
    %v2353 = vpack.c.b16 %v2283, %v2281
    %v2354 = vpack.c.b16 %v2286, %v2284
    %v2355 = vpack.c.b16 %v2287, %v2285
    %v2356 = vpack.c.b16 %v2290, %v2288
    %v2357 = vpack.c.b16 %v2291, %v2289
    %v2358 = vpack.c.b16 %v2294, %v2292
    %v2359 = vpack.c.b16 %v2295, %v2293
    %2424 = vmatprep.subr.bf16.mxu0 %v2297
    %2425 = vmatpush1.bf16.msra.mxu0 %v2296
    %2426 = vmatprep.subr.bf16.mxu0 %v2299
    %2427 = vmatpush1.bf16.msra.mxu0 %v2298
    %2428 = vmatprep.subr.bf16.mxu0 %v2301
    %2429 = vmatpush1.bf16.msra.mxu0 %v2300
    %2430 = vmatprep.subr.bf16.mxu0 %v2303
    %2431 = vmatpush1.bf16.msra.mxu0 %v2302
    %2432 = vmatprep.subr.bf16.mxu0 %v2305
    %2433 = vmatpush1.bf16.msra.mxu0 %v2304
    %2434 = vmatprep.subr.bf16.mxu0 %v2307
    %2435 = vmatpush1.bf16.msra.mxu0 %v2306
    %2436 = vmatprep.subr.bf16.mxu0 %v2309
    %2437 = vmatpush1.bf16.msra.mxu0 %v2308
    %2438 = vmatprep.subr.bf16.mxu0 %v2311
    %2439 = vmatpush1.bf16.msra.mxu0 %v2310
    %2440 = vmatprep.subr.bf16.mxu0 %v2313
    %2441 = vmatpush1.bf16.msra.mxu0 %v2312
    %2442 = vmatprep.subr.bf16.mxu0 %v2315
    %2443 = vmatpush1.bf16.msra.mxu0 %v2314
    %2444 = vmatprep.subr.bf16.mxu0 %v2317
    %2445 = vmatpush1.bf16.msra.mxu0 %v2316
    %2446 = vmatprep.subr.bf16.mxu0 %v2319
    %2447 = vmatpush1.bf16.msra.mxu0 %v2318
    %2448 = vmatprep.subr.bf16.mxu0 %v2321
    %2449 = vmatpush1.bf16.msra.mxu0 %v2320
    %2450 = vmatprep.subr.bf16.mxu0 %v2323
    %2451 = vmatpush1.bf16.msra.mxu0 %v2322
    %2452 = vmatprep.subr.bf16.mxu0 %v2325
    %2453 = vmatpush1.bf16.msra.mxu0 %v2324
    %2454 = vmatprep.subr.bf16.mxu0 %v2327
    %2455 = vmatpush1.bf16.msra.mxu0 %v2326
    %2456 = vmatprep.mubr.bf16.mxu0 %v1965
    %2457 = vmatmul.mubr.bf16.gmra.mrb[0].mxu0 %v1964
    %v2458 = vpop.f32.mrb[0].mxu0
    %v2459 = vadd.f32 %v2097, %v2458
    %v2460 = vpop.f32.mrb[0].mxu0
    %v2461 = vadd.f32 %v2101, %v2460
    %v2462 = vpop.f32.mrb[0].mxu0
    %v2463 = vadd.f32 %v2097, %v2462
    %v2464 = vpop.f32.mrb[0].mxu0
    %v2465 = vadd.f32 %v2101, %v2464
    %2466 = vmatprep.mubr.bf16.mxu0 %v1969
    %2467 = vmatmul.mubr.bf16.gmra.mrb[0].mxu0 %v1968
    %v2468 = vpop.f32.mrb[0].mxu0
    %v2469 = vadd.f32 %v2097, %v2468
    %v2470 = vpop.f32.mrb[0].mxu0
    %v2471 = vadd.f32 %v2101, %v2470
    %v2472 = vpop.f32.mrb[0].mxu0
    %v2473 = vadd.f32 %v2097, %v2472
    %v2474 = vpop.f32.mrb[0].mxu0
    %v2475 = vadd.f32 %v2101, %v2474
    %2476 = vmatprep.mubr.bf16.mxu0 %v1973
    %2477 = vmatmul.mubr.bf16.gmra.mrb[0].mxu0 %v1972
    %v2478 = vpop.f32.mrb[0].mxu0
    %v2479 = vadd.f32 %v2097, %v2478
    %v2480 = vpop.f32.mrb[0].mxu0
    %v2481 = vadd.f32 %v2101, %v2480
    %v2482 = vpop.f32.mrb[0].mxu0
    %v2483 = vadd.f32 %v2097, %v2482
    %v2484 = vpop.f32.mrb[0].mxu0
    %v2485 = vadd.f32 %v2101, %v2484
    %2486 = vmatprep.mubr.bf16.mxu0 %v1977
    %2487 = vmatmul.mubr.bf16.gmra.mrb[0].mxu0 %v1976
    %v2488 = vpop.f32.mrb[0].mxu0
    %v2489 = vadd.f32 %v2097, %v2488
    %v2490 = vpop.f32.mrb[0].mxu0
    %v2491 = vadd.f32 %v2101, %v2490
    %v2492 = vpop.f32.mrb[0].mxu0
    %v2493 = vadd.f32 %v2097, %v2492
    %v2494 = vpop.f32.mrb[0].mxu0
    %v2495 = vadd.f32 %v2101, %v2494
    %2496 = vmatprep.mubr.bf16.mxu0 %v1981
    %2497 = vmatmul.mubr.bf16.gmra.mrb[0].mxu0 %v1980
    %v2498 = vpop.f32.mrb[0].mxu0
    %v2499 = vadd.f32 %v2097, %v2498
    %v2500 = vpop.f32.mrb[0].mxu0
    %v2501 = vadd.f32 %v2101, %v2500
    %v2502 = vpop.f32.mrb[0].mxu0
    %v2503 = vadd.f32 %v2097, %v2502
    %v2504 = vpop.f32.mrb[0].mxu0
    %v2505 = vadd.f32 %v2101, %v2504
    %2506 = vmatprep.mubr.bf16.mxu0 %v1985
    %2507 = vmatmul.mubr.bf16.gmra.mrb[0].mxu0 %v1984
    %v2508 = vpop.f32.mrb[0].mxu0
    %v2509 = vadd.f32 %v2097, %v2508
    %v2510 = vpop.f32.mrb[0].mxu0
    %v2511 = vadd.f32 %v2101, %v2510
    %v2512 = vpop.f32.mrb[0].mxu0
    %v2513 = vadd.f32 %v2097, %v2512
    %v2514 = vpop.f32.mrb[0].mxu0
    %v2515 = vadd.f32 %v2101, %v2514
    %2516 = vmatprep.mubr.bf16.mxu0 %v1989
    %2517 = vmatmul.mubr.bf16.gmra.mrb[0].mxu0 %v1988
    %v2518 = vpop.f32.mrb[0].mxu0
    %v2519 = vadd.f32 %v2097, %v2518
    %v2520 = vpop.f32.mrb[0].mxu0
    %v2521 = vadd.f32 %v2101, %v2520
    %v2522 = vpop.f32.mrb[0].mxu0
    %v2523 = vadd.f32 %v2097, %v2522
    %v2524 = vpop.f32.mrb[0].mxu0
    %v2525 = vadd.f32 %v2101, %v2524
    %2526 = vmatprep.mubr.bf16.mxu0 %v1993
    %2527 = vmatmul.mubr.bf16.gmra.mrb[0].mxu0 %v1992
    %v2528 = vpop.f32.mrb[0].mxu0
    %v2529 = vadd.f32 %v2097, %v2528
    %v2530 = vpop.f32.mrb[0].mxu0
    %v2531 = vadd.f32 %v2101, %v2530
    %v2532 = vpop.f32.mrb[0].mxu0
    %v2533 = vadd.f32 %v2097, %v2532
    %v2534 = vpop.f32.mrb[0].mxu0
    %v2535 = vadd.f32 %v2101, %v2534
    %2536 = vmatprep.mubr.bf16.mxu0 %v1997
    %2537 = vmatmul.mubr.bf16.gmra.mrb[0].mxu0 %v1996
    %v2538 = vpop.f32.mrb[0].mxu0
    %v2539 = vadd.f32 %v2097, %v2538
    %v2540 = vpop.f32.mrb[0].mxu0
    %v2541 = vadd.f32 %v2101, %v2540
    %v2542 = vpop.f32.mrb[0].mxu0
    %v2543 = vadd.f32 %v2097, %v2542
    %v2544 = vpop.f32.mrb[0].mxu0
    %v2545 = vadd.f32 %v2101, %v2544
    %2546 = vmatprep.mubr.bf16.mxu0 %v2001
    %2547 = vmatmul.mubr.bf16.gmra.mrb[0].mxu0 %v2000
    %v2548 = vpop.f32.mrb[0].mxu0
    %v2549 = vadd.f32 %v2097, %v2548
    %v2550 = vpop.f32.mrb[0].mxu0
    %v2551 = vadd.f32 %v2101, %v2550
    %v2552 = vpop.f32.mrb[0].mxu0
    %v2553 = vadd.f32 %v2097, %v2552
    %v2554 = vpop.f32.mrb[0].mxu0
    %v2555 = vadd.f32 %v2101, %v2554
    %2556 = vmatprep.mubr.bf16.mxu0 %v2005
    %2557 = vmatmul.mubr.bf16.gmra.mrb[0].mxu0 %v2004
    %v2558 = vpop.f32.mrb[0].mxu0
    %v2559 = vadd.f32 %v2097, %v2558
    %v2560 = vpop.f32.mrb[0].mxu0
    %v2561 = vadd.f32 %v2101, %v2560
    %v2562 = vpop.f32.mrb[0].mxu0
    %v2563 = vadd.f32 %v2097, %v2562
    %v2564 = vpop.f32.mrb[0].mxu0
    %v2565 = vadd.f32 %v2101, %v2564
    %2566 = vmatprep.mubr.bf16.mxu0 %v2009
    %2567 = vmatmul.mubr.bf16.gmra.mrb[0].mxu0 %v2008
    %v2568 = vpop.f32.mrb[0].mxu0
    %v2569 = vadd.f32 %v2097, %v2568
    %v2570 = vpop.f32.mrb[0].mxu0
    %v2571 = vadd.f32 %v2101, %v2570
    %v2572 = vpop.f32.mrb[0].mxu0
    %v2573 = vadd.f32 %v2097, %v2572
    %v2574 = vpop.f32.mrb[0].mxu0
    %v2575 = vadd.f32 %v2101, %v2574
    %2576 = vmatprep.mubr.bf16.mxu0 %v2013
    %2577 = vmatmul.mubr.bf16.gmra.mrb[0].mxu0 %v2012
    %v2578 = vpop.f32.mrb[0].mxu0
    %v2579 = vadd.f32 %v2097, %v2578
    %v2580 = vpop.f32.mrb[0].mxu0
    %v2581 = vadd.f32 %v2101, %v2580
    %v2582 = vpop.f32.mrb[0].mxu0
    %v2583 = vadd.f32 %v2097, %v2582
    %v2584 = vpop.f32.mrb[0].mxu0
    %v2585 = vadd.f32 %v2101, %v2584
    %2586 = vmatprep.mubr.bf16.mxu0 %v2017
    %2587 = vmatmul.mubr.bf16.gmra.mrb[0].mxu0 %v2016
    %v2588 = vpop.f32.mrb[0].mxu0
    %v2589 = vadd.f32 %v2097, %v2588
    %v2590 = vpop.f32.mrb[0].mxu0
    %v2591 = vadd.f32 %v2101, %v2590
    %v2592 = vpop.f32.mrb[0].mxu0
    %v2593 = vadd.f32 %v2097, %v2592
    %v2594 = vpop.f32.mrb[0].mxu0
    %v2595 = vadd.f32 %v2101, %v2594
    %2596 = vmatprep.mubr.bf16.mxu0 %v2021
    %2597 = vmatmul.mubr.bf16.gmra.mrb[0].mxu0 %v2020
    %v2598 = vpop.f32.mrb[0].mxu0
    %v2599 = vadd.f32 %v2097, %v2598
    %v2600 = vpop.f32.mrb[0].mxu0
    %v2601 = vadd.f32 %v2101, %v2600
    %v2602 = vpop.f32.mrb[0].mxu0
    %v2603 = vadd.f32 %v2097, %v2602
    %v2604 = vpop.f32.mrb[0].mxu0
    %v2605 = vadd.f32 %v2101, %v2604
    %2606 = vmatprep.mubr.bf16.mxu0 %v2025
    %2607 = vmatmul.mubr.bf16.gmra.mrb[0].mxu0 %v2024
    %v2608 = vpop.f32.mrb[0].mxu0
    %v2609 = vadd.f32 %v2097, %v2608
    %v2610 = vpop.f32.mrb[0].mxu0
    %v2611 = vadd.f32 %v2101, %v2610
    %v2612 = vpop.f32.mrb[0].mxu0
    %v2613 = vadd.f32 %v2097, %v2612
    %v2614 = vpop.f32.mrb[0].mxu0
    %v2615 = vadd.f32 %v2101, %v2614
    %2616 = vdwg.mxu0
    %2617 = vmatprep.subr.bf16.mxu0 %v2329
    %2618 = vmatpush1.bf16.msra.mxu0 %v2328
    %2619 = vmatprep.subr.bf16.mxu0 %v2331
    %2620 = vmatpush1.bf16.msra.mxu0 %v2330
    %2621 = vmatprep.subr.bf16.mxu0 %v2333
    %2622 = vmatpush1.bf16.msra.mxu0 %v2332
    %2623 = vmatprep.subr.bf16.mxu0 %v2335
    %2624 = vmatpush1.bf16.msra.mxu0 %v2334
    %2625 = vmatprep.subr.bf16.mxu0 %v2337
    %2626 = vmatpush1.bf16.msra.mxu0 %v2336
    %2627 = vmatprep.subr.bf16.mxu0 %v2339
    %2628 = vmatpush1.bf16.msra.mxu0 %v2338
    %2629 = vmatprep.subr.bf16.mxu0 %v2341
    %2630 = vmatpush1.bf16.msra.mxu0 %v2340
    %2631 = vmatprep.subr.bf16.mxu0 %v2343
    %2632 = vmatpush1.bf16.msra.mxu0 %v2342
    %2633 = vmatprep.subr.bf16.mxu0 %v2345
    %2634 = vmatpush1.bf16.msra.mxu0 %v2344
    %2635 = vmatprep.subr.bf16.mxu0 %v2347
    %2636 = vmatpush1.bf16.msra.mxu0 %v2346
    %2637 = vmatprep.subr.bf16.mxu0 %v2349
    %2638 = vmatpush1.bf16.msra.mxu0 %v2348
    %2639 = vmatprep.subr.bf16.mxu0 %v2351
    %2640 = vmatpush1.bf16.msra.mxu0 %v2350
    %2641 = vmatprep.subr.bf16.mxu0 %v2353
    %2642 = vmatpush1.bf16.msra.mxu0 %v2352
    %2643 = vmatprep.subr.bf16.mxu0 %v2355
    %2644 = vmatpush1.bf16.msra.mxu0 %v2354
    %2645 = vmatprep.subr.bf16.mxu0 %v2357
    %2646 = vmatpush1.bf16.msra.mxu0 %v2356
    %2647 = vmatprep.subr.bf16.mxu0 %v2359
    %2648 = vmatpush1.bf16.msra.mxu0 %v2358
    %2649 = vmatprep.mubr.bf16.mxu0 %v1967
    %2650 = vmatmul.mubr.bf16.gmra.mrb[0].mxu0 %v1966
    %v2651 = vpop.f32.mrb[0].mxu0
    %v2652 = vadd.f32 %v2459, %v2651
    %v2653 = vpop.f32.mrb[0].mxu0
    %v2654 = vadd.f32 %v2461, %v2653
    %v2655 = vpop.f32.mrb[0].mxu0
    %v2656 = vadd.f32 %v2463, %v2655
    %v2657 = vpop.f32.mrb[0].mxu0
    %v2658 = vadd.f32 %v2465, %v2657
    %2659 = vmatprep.mubr.bf16.mxu0 %v1971
    %2660 = vmatmul.mubr.bf16.gmra.mrb[0].mxu0 %v1970
    %v2661 = vpop.f32.mrb[0].mxu0
    %v2662 = vadd.f32 %v2469, %v2661
    %v2663 = vpop.f32.mrb[0].mxu0
    %v2664 = vadd.f32 %v2471, %v2663
    %v2665 = vpop.f32.mrb[0].mxu0
    %v2666 = vadd.f32 %v2473, %v2665
    %v2667 = vpop.f32.mrb[0].mxu0
    %v2668 = vadd.f32 %v2475, %v2667
    %2669 = vmatprep.mubr.bf16.mxu0 %v1975
    %2670 = vmatmul.mubr.bf16.gmra.mrb[0].mxu0 %v1974
    %v2671 = vpop.f32.mrb[0].mxu0
    %v2672 = vadd.f32 %v2479, %v2671
    %v2673 = vpop.f32.mrb[0].mxu0
    %v2674 = vadd.f32 %v2481, %v2673
    %v2675 = vpop.f32.mrb[0].mxu0
    %v2676 = vadd.f32 %v2483, %v2675
    %v2677 = vpop.f32.mrb[0].mxu0
    %v2678 = vadd.f32 %v2485, %v2677
    %2679 = vmatprep.mubr.bf16.mxu0 %v1979
    %2680 = vmatmul.mubr.bf16.gmra.mrb[0].mxu0 %v1978
    %v2681 = vpop.f32.mrb[0].mxu0
    %v2682 = vadd.f32 %v2489, %v2681
    %v2683 = vpop.f32.mrb[0].mxu0
    %v2684 = vadd.f32 %v2491, %v2683
    %v2685 = vpop.f32.mrb[0].mxu0
    %v2686 = vadd.f32 %v2493, %v2685
    %v2687 = vpop.f32.mrb[0].mxu0
    %v2688 = vadd.f32 %v2495, %v2687
    %2689 = vmatprep.mubr.bf16.mxu0 %v1983
    %2690 = vmatmul.mubr.bf16.gmra.mrb[0].mxu0 %v1982
    %v2691 = vpop.f32.mrb[0].mxu0
    %v2692 = vadd.f32 %v2499, %v2691
    %v2693 = vpop.f32.mrb[0].mxu0
    %v2694 = vadd.f32 %v2501, %v2693
    %v2695 = vpop.f32.mrb[0].mxu0
    %v2696 = vadd.f32 %v2503, %v2695
    %v2697 = vpop.f32.mrb[0].mxu0
    %v2698 = vadd.f32 %v2505, %v2697
    %2699 = vmatprep.mubr.bf16.mxu0 %v1987
    %2700 = vmatmul.mubr.bf16.gmra.mrb[0].mxu0 %v1986
    %v2701 = vpop.f32.mrb[0].mxu0
    %v2702 = vadd.f32 %v2509, %v2701
    %v2703 = vpop.f32.mrb[0].mxu0
    %v2704 = vadd.f32 %v2511, %v2703
    %v2705 = vpop.f32.mrb[0].mxu0
    %v2706 = vadd.f32 %v2513, %v2705
    %v2707 = vpop.f32.mrb[0].mxu0
    %v2708 = vadd.f32 %v2515, %v2707
    %2709 = vmatprep.mubr.bf16.mxu0 %v1991
    %2710 = vmatmul.mubr.bf16.gmra.mrb[0].mxu0 %v1990
    %v2711 = vpop.f32.mrb[0].mxu0
    %v2712 = vadd.f32 %v2519, %v2711
    %v2713 = vpop.f32.mrb[0].mxu0
    %v2714 = vadd.f32 %v2521, %v2713
    %v2715 = vpop.f32.mrb[0].mxu0
    %v2716 = vadd.f32 %v2523, %v2715
    %v2717 = vpop.f32.mrb[0].mxu0
    %v2718 = vadd.f32 %v2525, %v2717
    %2719 = vmatprep.mubr.bf16.mxu0 %v1995
    %2720 = vmatmul.mubr.bf16.gmra.mrb[0].mxu0 %v1994
    %v2721 = vpop.f32.mrb[0].mxu0
    %v2722 = vadd.f32 %v2529, %v2721
    %v2723 = vpop.f32.mrb[0].mxu0
    %v2724 = vadd.f32 %v2531, %v2723
    %v2725 = vpop.f32.mrb[0].mxu0
    %v2726 = vadd.f32 %v2533, %v2725
    %v2727 = vpop.f32.mrb[0].mxu0
    %v2728 = vadd.f32 %v2535, %v2727
    %2729 = vmatprep.mubr.bf16.mxu0 %v1999
    %2730 = vmatmul.mubr.bf16.gmra.mrb[0].mxu0 %v1998
    %v2731 = vpop.f32.mrb[0].mxu0
    %v2732 = vadd.f32 %v2539, %v2731
    %v2733 = vpop.f32.mrb[0].mxu0
    %v2734 = vadd.f32 %v2541, %v2733
    %v2735 = vpop.f32.mrb[0].mxu0
    %v2736 = vadd.f32 %v2543, %v2735
    %v2737 = vpop.f32.mrb[0].mxu0
    %v2738 = vadd.f32 %v2545, %v2737
    %2739 = vmatprep.mubr.bf16.mxu0 %v2003
    %2740 = vmatmul.mubr.bf16.gmra.mrb[0].mxu0 %v2002
    %v2741 = vpop.f32.mrb[0].mxu0
    %v2742 = vadd.f32 %v2549, %v2741
    %v2743 = vpop.f32.mrb[0].mxu0
    %v2744 = vadd.f32 %v2551, %v2743
    %v2745 = vpop.f32.mrb[0].mxu0
    %v2746 = vadd.f32 %v2553, %v2745
    %v2747 = vpop.f32.mrb[0].mxu0
    %v2748 = vadd.f32 %v2555, %v2747
    %2749 = vmatprep.mubr.bf16.mxu0 %v2007
    %2750 = vmatmul.mubr.bf16.gmra.mrb[0].mxu0 %v2006
    %v2751 = vpop.f32.mrb[0].mxu0
    %v2752 = vadd.f32 %v2559, %v2751
    %v2753 = vpop.f32.mrb[0].mxu0
    %v2754 = vadd.f32 %v2561, %v2753
    %v2755 = vpop.f32.mrb[0].mxu0
    %v2756 = vadd.f32 %v2563, %v2755
    %v2757 = vpop.f32.mrb[0].mxu0
    %v2758 = vadd.f32 %v2565, %v2757
    %2759 = vmatprep.mubr.bf16.mxu0 %v2011
    %2760 = vmatmul.mubr.bf16.gmra.mrb[0].mxu0 %v2010
    %v2761 = vpop.f32.mrb[0].mxu0
    %v2762 = vadd.f32 %v2569, %v2761
    %v2763 = vpop.f32.mrb[0].mxu0
    %v2764 = vadd.f32 %v2571, %v2763
    %v2765 = vpop.f32.mrb[0].mxu0
    %v2766 = vadd.f32 %v2573, %v2765
    %v2767 = vpop.f32.mrb[0].mxu0
    %v2768 = vadd.f32 %v2575, %v2767
    %2769 = vmatprep.mubr.bf16.mxu0 %v2015
    %2770 = vmatmul.mubr.bf16.gmra.mrb[0].mxu0 %v2014
    %v2771 = vpop.f32.mrb[0].mxu0
    %v2772 = vadd.f32 %v2579, %v2771
    %v2773 = vpop.f32.mrb[0].mxu0
    %v2774 = vadd.f32 %v2581, %v2773
    %v2775 = vpop.f32.mrb[0].mxu0
    %v2776 = vadd.f32 %v2583, %v2775
    %v2777 = vpop.f32.mrb[0].mxu0
    %v2778 = vadd.f32 %v2585, %v2777
    %2779 = vmatprep.mubr.bf16.mxu0 %v2019
    %2780 = vmatmul.mubr.bf16.gmra.mrb[0].mxu0 %v2018
    %v2781 = vpop.f32.mrb[0].mxu0
    %v2782 = vadd.f32 %v2589, %v2781
    %v2783 = vpop.f32.mrb[0].mxu0
    %v2784 = vadd.f32 %v2591, %v2783
    %v2785 = vpop.f32.mrb[0].mxu0
    %v2786 = vadd.f32 %v2593, %v2785
    %v2787 = vpop.f32.mrb[0].mxu0
    %v2788 = vadd.f32 %v2595, %v2787
    %2789 = vmatprep.mubr.bf16.mxu0 %v2023
    %2790 = vmatmul.mubr.bf16.gmra.mrb[0].mxu0 %v2022
    %v2791 = vpop.f32.mrb[0].mxu0
    %v2792 = vadd.f32 %v2599, %v2791
    %v2793 = vpop.f32.mrb[0].mxu0
    %v2794 = vadd.f32 %v2601, %v2793
    %v2795 = vpop.f32.mrb[0].mxu0
    %v2796 = vadd.f32 %v2603, %v2795
    %v2797 = vpop.f32.mrb[0].mxu0
    %v2798 = vadd.f32 %v2605, %v2797
    %2799 = vmatprep.mubr.bf16.mxu0 %v2027
    %2800 = vmatmul.mubr.bf16.gmra.mrb[0].mxu0 %v2026
    %v2801 = vpop.f32.mrb[0].mxu0
    %v2802 = vadd.f32 %v2609, %v2801
    %v2803 = vpop.f32.mrb[0].mxu0
    %v2804 = vadd.f32 %v2611, %v2803
    %v2805 = vpop.f32.mrb[0].mxu0
    %v2806 = vadd.f32 %v2613, %v2805
    %v2807 = vpop.f32.mrb[0].mxu0
    %v2808 = vadd.f32 %v2615, %v2807
    %2809 = vdwg.mxu0
    %v2810 = vmax.f32 %v2652, 0.0
    %v2811 = vmax.f32 %v2654, 0.0
    %v2812 = vmax.f32 %v2656, 0.0
    %v2813 = vmax.f32 %v2658, 0.0
    %v2814 = vmax.f32 %v2662, 0.0
    %v2815 = vmax.f32 %v2664, 0.0
    %v2816 = vmax.f32 %v2666, 0.0
    %v2817 = vmax.f32 %v2668, 0.0
    %v2818 = vmax.f32 %v2672, 0.0
    %v2819 = vmax.f32 %v2674, 0.0
    %v2820 = vmax.f32 %v2676, 0.0
    %v2821 = vmax.f32 %v2678, 0.0
    %v2822 = vmax.f32 %v2682, 0.0
    %v2823 = vmax.f32 %v2684, 0.0
    %v2824 = vmax.f32 %v2686, 0.0
    %v2825 = vmax.f32 %v2688, 0.0
    %v2826 = vmax.f32 %v2692, 0.0
    %v2827 = vmax.f32 %v2694, 0.0
    %v2828 = vmax.f32 %v2696, 0.0
    %v2829 = vmax.f32 %v2698, 0.0
    %v2830 = vmax.f32 %v2702, 0.0
    %v2831 = vmax.f32 %v2704, 0.0
    %v2832 = vmax.f32 %v2706, 0.0
    %v2833 = vmax.f32 %v2708, 0.0
    %v2834 = vmax.f32 %v2712, 0.0
    %v2835 = vmax.f32 %v2714, 0.0
    %v2836 = vmax.f32 %v2716, 0.0
    %v2837 = vmax.f32 %v2718, 0.0
    %v2838 = vmax.f32 %v2722, 0.0
    %v2839 = vmax.f32 %v2724, 0.0
    %v2840 = vmax.f32 %v2726, 0.0
    %v2841 = vmax.f32 %v2728, 0.0
    %v2842 = vmax.f32 %v2732, 0.0
    %v2843 = vmax.f32 %v2734, 0.0
    %v2844 = vmax.f32 %v2736, 0.0
    %v2845 = vmax.f32 %v2738, 0.0
    %v2846 = vmax.f32 %v2742, 0.0
    %v2847 = vmax.f32 %v2744, 0.0
    %v2848 = vmax.f32 %v2746, 0.0
    %v2849 = vmax.f32 %v2748, 0.0
    %v2850 = vmax.f32 %v2752, 0.0
    %v2851 = vmax.f32 %v2754, 0.0
    %v2852 = vmax.f32 %v2756, 0.0
    %v2853 = vmax.f32 %v2758, 0.0
    %v2854 = vmax.f32 %v2762, 0.0
    %v2855 = vmax.f32 %v2764, 0.0
    %v2856 = vmax.f32 %v2766, 0.0
    %v2857 = vmax.f32 %v2768, 0.0
    %v2858 = vmax.f32 %v2772, 0.0
    %v2859 = vmax.f32 %v2774, 0.0
    %v2860 = vmax.f32 %v2776, 0.0
    %v2861 = vmax.f32 %v2778, 0.0
    %v2862 = vmax.f32 %v2782, 0.0
    %v2863 = vmax.f32 %v2784, 0.0
    %v2864 = vmax.f32 %v2786, 0.0
    %v2865 = vmax.f32 %v2788, 0.0
    %v2866 = vmax.f32 %v2792, 0.0
    %v2867 = vmax.f32 %v2794, 0.0
    %v2868 = vmax.f32 %v2796, 0.0
    %v2869 = vmax.f32 %v2798, 0.0
    %v2870 = vmax.f32 %v2802, 0.0
    %v2871 = vmax.f32 %v2804, 0.0
    %v2872 = vmax.f32 %v2806, 0.0
    %v2873 = vmax.f32 %v2808, 0.0
    %v2874 = vpack.c.bf16 %v2812, %v2810
    %v2875 = vpack.c.bf16 %v2813, %v2811
    %v2876 = vpack.c.bf16 %v2816, %v2814
    %v2877 = vpack.c.bf16 %v2817, %v2815
    %v2878 = vpack.c.bf16 %v2820, %v2818
    %v2879 = vpack.c.bf16 %v2821, %v2819
    %v2880 = vpack.c.bf16 %v2824, %v2822
    %v2881 = vpack.c.bf16 %v2825, %v2823
    %v2882 = vpack.c.bf16 %v2828, %v2826
    %v2883 = vpack.c.bf16 %v2829, %v2827
    %v2884 = vpack.c.bf16 %v2832, %v2830
    %v2885 = vpack.c.bf16 %v2833, %v2831
    %v2886 = vpack.c.bf16 %v2836, %v2834
    %v2887 = vpack.c.bf16 %v2837, %v2835
    %v2888 = vpack.c.bf16 %v2840, %v2838
    %v2889 = vpack.c.bf16 %v2841, %v2839
    %v2890 = vpack.c.bf16 %v2844, %v2842
    %v2891 = vpack.c.bf16 %v2845, %v2843
    %v2892 = vpack.c.bf16 %v2848, %v2846
    %v2893 = vpack.c.bf16 %v2849, %v2847
    %v2894 = vpack.c.bf16 %v2852, %v2850
    %v2895 = vpack.c.bf16 %v2853, %v2851
    %v2896 = vpack.c.bf16 %v2856, %v2854
    %v2897 = vpack.c.bf16 %v2857, %v2855
    %v2898 = vpack.c.bf16 %v2860, %v2858
    %v2899 = vpack.c.bf16 %v2861, %v2859
    %v2900 = vpack.c.bf16 %v2864, %v2862
    %v2901 = vpack.c.bf16 %v2865, %v2863
    %v2902 = vpack.c.bf16 %v2868, %v2866
    %v2903 = vpack.c.bf16 %v2869, %v2867
    %v2904 = vpack.c.bf16 %v2872, %v2870
    %v2905 = vpack.c.bf16 %v2873, %v2871
    %v2906 = vld [vmem:[#allocation7] sm:$0xf]
    %v2907 = vld [vmem:[#allocation7 + $0x4] sm:$0xf]
    %v2908 = vld [vmem:[#allocation7 + $0x8] sm:$0xf]
    %v2909 = vld [vmem:[#allocation7 + $0xc] sm:$0xf]
    %v2910 = vld [vmem:[#allocation7 + $0x10] sm:$0xf]
    %v2911 = vld [vmem:[#allocation7 + $0x14] sm:$0xf]
    %v2912 = vld [vmem:[#allocation7 + $0x18] sm:$0xf]
    %v2913 = vld [vmem:[#allocation7 + $0x1c] sm:$0xf]
    %v2914 = vld [vmem:[#allocation7 + $0x20] sm:$0xf]
    %v2915 = vld [vmem:[#allocation7 + $0x24] sm:$0xf]
    %v2916 = vld [vmem:[#allocation7 + $0x28] sm:$0xf]
    %v2917 = vld [vmem:[#allocation7 + $0x2c] sm:$0xf]
    %v2918 = vld [vmem:[#allocation7 + $0x30] sm:$0xf]
    %v2919 = vld [vmem:[#allocation7 + $0x34] sm:$0xf]
    %v2920 = vld [vmem:[#allocation7 + $0x38] sm:$0xf]
    %v2921 = vld [vmem:[#allocation7 + $0x3c] sm:$0xf]
    %v2922 = vld [vmem:[#allocation7 + $0x40] sm:$0xf]
    %v2923 = vld [vmem:[#allocation7 + $0x44] sm:$0xf]
    %v2924 = vld [vmem:[#allocation7 + $0x48] sm:$0xf]
    %v2925 = vld [vmem:[#allocation7 + $0x4c] sm:$0xf]
    %v2926 = vld [vmem:[#allocation7 + $0x50] sm:$0xf]
    %v2927 = vld [vmem:[#allocation7 + $0x54] sm:$0xf]
    %v2928 = vld [vmem:[#allocation7 + $0x58] sm:$0xf]
    %v2929 = vld [vmem:[#allocation7 + $0x5c] sm:$0xf]
    %v2930 = vld [vmem:[#allocation7 + $0x60] sm:$0xf]
    %v2931 = vld [vmem:[#allocation7 + $0x64] sm:$0xf]
    %v2932 = vld [vmem:[#allocation7 + $0x68] sm:$0xf]
    %v2933 = vld [vmem:[#allocation7 + $0x6c] sm:$0xf]
    %v2934 = vld [vmem:[#allocation7 + $0x70] sm:$0xf]
    %v2935 = vld [vmem:[#allocation7 + $0x74] sm:$0xf]
    %v2936 = vld [vmem:[#allocation7 + $0x78] sm:$0xf]
    %v2937 = vld [vmem:[#allocation7 + $0x7c] sm:$0xf]
    %v2938 = vld [vmem:[%s6] sm:$0x1]
    %v2940 = vlaneseq
    %v2941 = vshrl.u32 %v2940, 7
    %v2942 = vsub.s32 0, %v2941
    %v2943 = vrot.slane %v2938, %v2942
    %v2977 = vunpack.c.l.b16 %v2906
    %v2978 = vunpack.c.l.b16 %v2907
    %v2979 = vunpack.c.l.b16 %v2908
    %v2980 = vunpack.c.l.b16 %v2909
    %v2981 = vunpack.c.l.b16 %v2910
    %v2982 = vunpack.c.l.b16 %v2911
    %v2983 = vunpack.c.l.b16 %v2912
    %v2984 = vunpack.c.l.b16 %v2913
    %v2985 = vunpack.c.l.b16 %v2914
    %v2986 = vunpack.c.l.b16 %v2915
    %v2987 = vunpack.c.l.b16 %v2916
    %v2988 = vunpack.c.l.b16 %v2917
    %v2989 = vunpack.c.l.b16 %v2918
    %v2990 = vunpack.c.l.b16 %v2919
    %v2991 = vunpack.c.l.b16 %v2920
    %v2992 = vunpack.c.l.b16 %v2921
    %v2993 = vunpack.c.l.b16 %v2922
    %v2994 = vunpack.c.l.b16 %v2923
    %v2995 = vunpack.c.l.b16 %v2924
    %v2996 = vunpack.c.l.b16 %v2925
    %v2997 = vunpack.c.l.b16 %v2926
    %v2998 = vunpack.c.l.b16 %v2927
    %v2999 = vunpack.c.l.b16 %v2928
    %v3000 = vunpack.c.l.b16 %v2929
    %v3001 = vunpack.c.l.b16 %v2930
    %v3002 = vunpack.c.l.b16 %v2931
    %v3003 = vunpack.c.l.b16 %v2932
    %v3004 = vunpack.c.l.b16 %v2933
    %v3005 = vunpack.c.l.b16 %v2934
    %v3006 = vunpack.c.l.b16 %v2935
    %v3007 = vunpack.c.l.b16 %v2936
    %v3008 = vunpack.c.l.b16 %v2937
    %v3009 = vpack.c.b16 %v2978, %v2977
    %v3010 = vpack.c.b16 %v2980, %v2979
    %v3011 = vpack.c.b16 %v2982, %v2981
    %v3012 = vpack.c.b16 %v2984, %v2983
    %v3013 = vpack.c.b16 %v2986, %v2985
    %v3014 = vpack.c.b16 %v2988, %v2987
    %v3015 = vpack.c.b16 %v2990, %v2989
    %v3016 = vpack.c.b16 %v2992, %v2991
    %v3017 = vpack.c.b16 %v2994, %v2993
    %v3018 = vpack.c.b16 %v2996, %v2995
    %v3019 = vpack.c.b16 %v2998, %v2997
    %v3020 = vpack.c.b16 %v3000, %v2999
    %v3021 = vpack.c.b16 %v3002, %v3001
    %v3022 = vpack.c.b16 %v3004, %v3003
    %v3023 = vpack.c.b16 %v3006, %v3005
    %v3024 = vpack.c.b16 %v3008, %v3007
    %3041 = vmatprep.subr.bf16.mxu0 0
    %3042 = vmatpush1.bf16.msra.mxu0 %v3009
    %3043 = vmatprep.subr.bf16.mxu0 0
    %3044 = vmatpush1.bf16.msra.mxu0 %v3010
    %3045 = vmatprep.subr.bf16.mxu0 0
    %3046 = vmatpush1.bf16.msra.mxu0 %v3011
    %3047 = vmatprep.subr.bf16.mxu0 0
    %3048 = vmatpush1.bf16.msra.mxu0 %v3012
    %3049 = vmatprep.subr.bf16.mxu0 0
    %3050 = vmatpush1.bf16.msra.mxu0 %v3013
    %3051 = vmatprep.subr.bf16.mxu0 0
    %3052 = vmatpush1.bf16.msra.mxu0 %v3014
    %3053 = vmatprep.subr.bf16.mxu0 0
    %3054 = vmatpush1.bf16.msra.mxu0 %v3015
    %3055 = vmatprep.subr.bf16.mxu0 0
    %3056 = vmatpush1.bf16.msra.mxu0 %v3016
    %3057 = vmatprep.subr.bf16.mxu0 0
    %3058 = vmatpush1.bf16.msra.mxu0 %v3017
    %3059 = vmatprep.subr.bf16.mxu0 0
    %3060 = vmatpush1.bf16.msra.mxu0 %v3018
    %3061 = vmatprep.subr.bf16.mxu0 0
    %3062 = vmatpush1.bf16.msra.mxu0 %v3019
    %3063 = vmatprep.subr.bf16.mxu0 0
    %3064 = vmatpush1.bf16.msra.mxu0 %v3020
    %3065 = vmatprep.subr.bf16.mxu0 0
    %3066 = vmatpush1.bf16.msra.mxu0 %v3021
    %3067 = vmatprep.subr.bf16.mxu0 0
    %3068 = vmatpush1.bf16.msra.mxu0 %v3022
    %3069 = vmatprep.subr.bf16.mxu0 0
    %3070 = vmatpush1.bf16.msra.mxu0 %v3023
    %3071 = vmatprep.subr.bf16.mxu0 0
    %3072 = vmatpush1.bf16.msra.mxu0 %v3024
    %3073 = vmatprep.mubr.bf16.mxu0 %v2875
    %3074 = vmatmul.mubr.bf16.gmra.mrb[0].mxu0 %v2874
    %v3075 = vpop.f32.mrb[0].mxu0
    %v3076 = vadd.f32 %v2943, %v3075
    %v3077 = vpop.f32.mrb[0].mxu0
    %v3078 = vpop.f32.mrb[0].mxu0
    %v3079 = vadd.f32 %v2943, %v3078
    %v3080 = vpop.f32.mrb[0].mxu0
    %3081 = vmatprep.mubr.bf16.mxu0 %v2877
    %3082 = vmatmul.mubr.bf16.gmra.mrb[0].mxu0 %v2876
    %v3083 = vpop.f32.mrb[0].mxu0
    %v3084 = vadd.f32 %v2943, %v3083
    %v3085 = vpop.f32.mrb[0].mxu0
    %v3086 = vpop.f32.mrb[0].mxu0
    %v3087 = vadd.f32 %v2943, %v3086
    %v3088 = vpop.f32.mrb[0].mxu0
    %3089 = vmatprep.mubr.bf16.mxu0 %v2879
    %3090 = vmatmul.mubr.bf16.gmra.mrb[0].mxu0 %v2878
    %v3091 = vpop.f32.mrb[0].mxu0
    %v3092 = vadd.f32 %v2943, %v3091
    %v3093 = vpop.f32.mrb[0].mxu0
    %v3094 = vpop.f32.mrb[0].mxu0
    %v3095 = vadd.f32 %v2943, %v3094
    %v3096 = vpop.f32.mrb[0].mxu0
    %3097 = vmatprep.mubr.bf16.mxu0 %v2881
    %3098 = vmatmul.mubr.bf16.gmra.mrb[0].mxu0 %v2880
    %v3099 = vpop.f32.mrb[0].mxu0
    %v3100 = vadd.f32 %v2943, %v3099
    %v3101 = vpop.f32.mrb[0].mxu0
    %v3102 = vpop.f32.mrb[0].mxu0
    %v3103 = vadd.f32 %v2943, %v3102
    %v3104 = vpop.f32.mrb[0].mxu0
    %3105 = vmatprep.mubr.bf16.mxu0 %v2883
    %3106 = vmatmul.mubr.bf16.gmra.mrb[0].mxu0 %v2882
    %v3107 = vpop.f32.mrb[0].mxu0
    %v3108 = vadd.f32 %v2943, %v3107
    %v3109 = vpop.f32.mrb[0].mxu0
    %v3110 = vpop.f32.mrb[0].mxu0
    %v3111 = vadd.f32 %v2943, %v3110
    %v3112 = vpop.f32.mrb[0].mxu0
    %3113 = vmatprep.mubr.bf16.mxu0 %v2885
    %3114 = vmatmul.mubr.bf16.gmra.mrb[0].mxu0 %v2884
    %v3115 = vpop.f32.mrb[0].mxu0
    %v3116 = vadd.f32 %v2943, %v3115
    %v3117 = vpop.f32.mrb[0].mxu0
    %v3118 = vpop.f32.mrb[0].mxu0
    %v3119 = vadd.f32 %v2943, %v3118
    %v3120 = vpop.f32.mrb[0].mxu0
    %3121 = vmatprep.mubr.bf16.mxu0 %v2887
    %3122 = vmatmul.mubr.bf16.gmra.mrb[0].mxu0 %v2886
    %v3123 = vpop.f32.mrb[0].mxu0
    %v3124 = vadd.f32 %v2943, %v3123
    %v3125 = vpop.f32.mrb[0].mxu0
    %v3126 = vpop.f32.mrb[0].mxu0
    %v3127 = vadd.f32 %v2943, %v3126
    %v3128 = vpop.f32.mrb[0].mxu0
    %3129 = vmatprep.mubr.bf16.mxu0 %v2889
    %3130 = vmatmul.mubr.bf16.gmra.mrb[0].mxu0 %v2888
    %v3131 = vpop.f32.mrb[0].mxu0
    %v3132 = vadd.f32 %v2943, %v3131
    %v3133 = vpop.f32.mrb[0].mxu0
    %v3134 = vpop.f32.mrb[0].mxu0
    %v3135 = vadd.f32 %v2943, %v3134
    %v3136 = vpop.f32.mrb[0].mxu0
    %3137 = vmatprep.mubr.bf16.mxu0 %v2891
    %3138 = vmatmul.mubr.bf16.gmra.mrb[0].mxu0 %v2890
    %v3139 = vpop.f32.mrb[0].mxu0
    %v3140 = vadd.f32 %v2943, %v3139
    %v3141 = vpop.f32.mrb[0].mxu0
    %v3142 = vpop.f32.mrb[0].mxu0
    %v3143 = vadd.f32 %v2943, %v3142
    %v3144 = vpop.f32.mrb[0].mxu0
    %3145 = vmatprep.mubr.bf16.mxu0 %v2893
    %3146 = vmatmul.mubr.bf16.gmra.mrb[0].mxu0 %v2892
    %v3147 = vpop.f32.mrb[0].mxu0
    %v3148 = vadd.f32 %v2943, %v3147
    %v3149 = vpop.f32.mrb[0].mxu0
    %v3150 = vpop.f32.mrb[0].mxu0
    %v3151 = vadd.f32 %v2943, %v3150
    %v3152 = vpop.f32.mrb[0].mxu0
    %3153 = vmatprep.mubr.bf16.mxu0 %v2895
    %3154 = vmatmul.mubr.bf16.gmra.mrb[0].mxu0 %v2894
    %v3155 = vpop.f32.mrb[0].mxu0
    %v3156 = vadd.f32 %v2943, %v3155
    %v3157 = vpop.f32.mrb[0].mxu0
    %v3158 = vpop.f32.mrb[0].mxu0
    %v3159 = vadd.f32 %v2943, %v3158
    %v3160 = vpop.f32.mrb[0].mxu0
    %3161 = vmatprep.mubr.bf16.mxu0 %v2897
    %3162 = vmatmul.mubr.bf16.gmra.mrb[0].mxu0 %v2896
    %v3163 = vpop.f32.mrb[0].mxu0
    %v3164 = vadd.f32 %v2943, %v3163
    %v3165 = vpop.f32.mrb[0].mxu0
    %v3166 = vpop.f32.mrb[0].mxu0
    %v3167 = vadd.f32 %v2943, %v3166
    %v3168 = vpop.f32.mrb[0].mxu0
    %3169 = vmatprep.mubr.bf16.mxu0 %v2899
    %3170 = vmatmul.mubr.bf16.gmra.mrb[0].mxu0 %v2898
    %v3171 = vpop.f32.mrb[0].mxu0
    %v3172 = vadd.f32 %v2943, %v3171
    %v3173 = vpop.f32.mrb[0].mxu0
    %v3174 = vpop.f32.mrb[0].mxu0
    %v3175 = vadd.f32 %v2943, %v3174
    %v3176 = vpop.f32.mrb[0].mxu0
    %3177 = vmatprep.mubr.bf16.mxu0 %v2901
    %3178 = vmatmul.mubr.bf16.gmra.mrb[0].mxu0 %v2900
    %v3179 = vpop.f32.mrb[0].mxu0
    %v3180 = vadd.f32 %v2943, %v3179
    %v3181 = vpop.f32.mrb[0].mxu0
    %v3182 = vpop.f32.mrb[0].mxu0
    %v3183 = vadd.f32 %v2943, %v3182
    %v3184 = vpop.f32.mrb[0].mxu0
    %3185 = vmatprep.mubr.bf16.mxu0 %v2903
    %3186 = vmatmul.mubr.bf16.gmra.mrb[0].mxu0 %v2902
    %v3187 = vpop.f32.mrb[0].mxu0
    %v3188 = vadd.f32 %v2943, %v3187
    %v3189 = vpop.f32.mrb[0].mxu0
    %v3190 = vpop.f32.mrb[0].mxu0
    %v3191 = vadd.f32 %v2943, %v3190
    %v3192 = vpop.f32.mrb[0].mxu0
    %3193 = vmatprep.mubr.bf16.mxu0 %v2905
    %3194 = vmatmul.mubr.bf16.gmra.mrb[0].mxu0 %v2904
    %v3195 = vpop.f32.mrb[0].mxu0
    %v3196 = vadd.f32 %v2943, %v3195
    %v3197 = vpop.f32.mrb[0].mxu0
    %v3198 = vpop.f32.mrb[0].mxu0
    %v3199 = vadd.f32 %v2943, %v3198
    %v3200 = vpop.f32.mrb[0].mxu0
    %3201 = vdwg.mxu0
    %v3202 = vpack.c.bf16 %v3079, %v3076
    %v3203 = vpack.c.bf16 %v3087, %v3084
    %v3204 = vpack.c.bf16 %v3095, %v3092
    %v3205 = vpack.c.bf16 %v3103, %v3100
    %v3206 = vpack.c.bf16 %v3111, %v3108
    %v3207 = vpack.c.bf16 %v3119, %v3116
    %v3208 = vpack.c.bf16 %v3127, %v3124
    %v3209 = vpack.c.bf16 %v3135, %v3132
    %v3210 = vpack.c.bf16 %v3143, %v3140
    %v3211 = vpack.c.bf16 %v3151, %v3148
    %v3212 = vpack.c.bf16 %v3159, %v3156
    %v3213 = vpack.c.bf16 %v3167, %v3164
    %v3214 = vpack.c.bf16 %v3175, %v3172
    %v3215 = vpack.c.bf16 %v3183, %v3180
    %v3216 = vpack.c.bf16 %v3191, %v3188
    %v3217 = vpack.c.bf16 %v3199, %v3196
    %v3234 = vunpack.c.l.b16 %v3202
    %v3235 = vunpack.c.h.b16 %v3202
    %v3236 = vunpack.c.l.b16 %v3203
    %v3237 = vunpack.c.h.b16 %v3203
    %v3238 = vunpack.c.l.b16 %v3204
    %v3239 = vunpack.c.h.b16 %v3204
    %v3240 = vunpack.c.l.b16 %v3205
    %v3241 = vunpack.c.h.b16 %v3205
    %v3242 = vunpack.c.l.b16 %v3206
    %v3243 = vunpack.c.h.b16 %v3206
    %v3244 = vunpack.c.l.b16 %v3207
    %v3245 = vunpack.c.h.b16 %v3207
    %v3246 = vunpack.c.l.b16 %v3208
    %v3247 = vunpack.c.h.b16 %v3208
    %v3248 = vunpack.c.l.b16 %v3209
    %v3249 = vunpack.c.h.b16 %v3209
    %v3250 = vunpack.c.l.b16 %v3210
    %v3251 = vunpack.c.h.b16 %v3210
    %v3252 = vunpack.c.l.b16 %v3211
    %v3253 = vunpack.c.h.b16 %v3211
    %v3254 = vunpack.c.l.b16 %v3212
    %v3255 = vunpack.c.h.b16 %v3212
    %v3256 = vunpack.c.l.b16 %v3213
    %v3257 = vunpack.c.h.b16 %v3213
    %v3258 = vunpack.c.l.b16 %v3214
    %v3259 = vunpack.c.h.b16 %v3214
    %v3260 = vunpack.c.l.b16 %v3215
    %v3261 = vunpack.c.h.b16 %v3215
    %v3262 = vunpack.c.l.b16 %v3216
    %v3263 = vunpack.c.h.b16 %v3216
    %v3264 = vunpack.c.l.b16 %v3217
    %v3265 = vunpack.c.h.b16 %v3217
    %v3266 = vpack.c.b16 %v3234, %v3234
    %v3267 = vpack.c.b16 %v3235, %v3235
    %v3268 = vpack.c.b16 %v3236, %v3236
    %v3269 = vpack.c.b16 %v3237, %v3237
    %v3270 = vpack.c.b16 %v3238, %v3238
    %v3271 = vpack.c.b16 %v3239, %v3239
    %v3272 = vpack.c.b16 %v3240, %v3240
    %v3273 = vpack.c.b16 %v3241, %v3241
    %v3274 = vpack.c.b16 %v3242, %v3242
    %v3275 = vpack.c.b16 %v3243, %v3243
    %v3276 = vpack.c.b16 %v3244, %v3244
    %v3277 = vpack.c.b16 %v3245, %v3245
    %v3278 = vpack.c.b16 %v3246, %v3246
    %v3279 = vpack.c.b16 %v3247, %v3247
    %v3280 = vpack.c.b16 %v3248, %v3248
    %v3281 = vpack.c.b16 %v3249, %v3249
    %v3282 = vpack.c.b16 %v3250, %v3250
    %v3283 = vpack.c.b16 %v3251, %v3251
    %v3284 = vpack.c.b16 %v3252, %v3252
    %v3285 = vpack.c.b16 %v3253, %v3253
    %v3286 = vpack.c.b16 %v3254, %v3254
    %v3287 = vpack.c.b16 %v3255, %v3255
    %v3288 = vpack.c.b16 %v3256, %v3256
    %v3289 = vpack.c.b16 %v3257, %v3257
    %v3290 = vpack.c.b16 %v3258, %v3258
    %v3291 = vpack.c.b16 %v3259, %v3259
    %v3292 = vpack.c.b16 %v3260, %v3260
    %v3293 = vpack.c.b16 %v3261, %v3261
    %v3294 = vpack.c.b16 %v3262, %v3262
    %v3295 = vpack.c.b16 %v3263, %v3263
    %v3296 = vpack.c.b16 %v3264, %v3264
    %v3297 = vpack.c.b16 %v3265, %v3265
    %3330 = vst [vmem:[%s7] sm:$0xf] %v3266
    %3331 = vst [vmem:[%s7 + $0x4] sm:$0xf] %v3267
    %3332 = vst [vmem:[%s7 + $0x8] sm:$0xf] %v3268
    %3333 = vst [vmem:[%s7 + $0xc] sm:$0xf] %v3269
    %3334 = vst [vmem:[%s7 + $0x10] sm:$0xf] %v3270
    %3335 = vst [vmem:[%s7 + $0x14] sm:$0xf] %v3271
    %3336 = vst [vmem:[%s7 + $0x18] sm:$0xf] %v3272
    %3337 = vst [vmem:[%s7 + $0x1c] sm:$0xf] %v3273
    %3338 = vst [vmem:[%s7 + $0x20] sm:$0xf] %v3274
    %3339 = vst [vmem:[%s7 + $0x24] sm:$0xf] %v3275
    %3340 = vst [vmem:[%s7 + $0x28] sm:$0xf] %v3276
    %3341 = vst [vmem:[%s7 + $0x2c] sm:$0xf] %v3277
    %3342 = vst [vmem:[%s7 + $0x30] sm:$0xf] %v3278
    %3343 = vst [vmem:[%s7 + $0x34] sm:$0xf] %v3279
    %3344 = vst [vmem:[%s7 + $0x38] sm:$0xf] %v3280
    %3345 = vst [vmem:[%s7 + $0x3c] sm:$0xf] %v3281
    %3346 = vst [vmem:[%s7 + $0x40] sm:$0xf] %v3282
    %3347 = vst [vmem:[%s7 + $0x44] sm:$0xf] %v3283
    %3348 = vst [vmem:[%s7 + $0x48] sm:$0xf] %v3284
    %3349 = vst [vmem:[%s7 + $0x4c] sm:$0xf] %v3285
    %3350 = vst [vmem:[%s7 + $0x50] sm:$0xf] %v3286
    %3351 = vst [vmem:[%s7 + $0x54] sm:$0xf] %v3287
    %3352 = vst [vmem:[%s7 + $0x58] sm:$0xf] %v3288
    %3353 = vst [vmem:[%s7 + $0x5c] sm:$0xf] %v3289
    %3354 = vst [vmem:[%s7 + $0x60] sm:$0xf] %v3290
    %3355 = vst [vmem:[%s7 + $0x64] sm:$0xf] %v3291
    %3356 = vst [vmem:[%s7 + $0x68] sm:$0xf] %v3292
    %3357 = vst [vmem:[%s7 + $0x6c] sm:$0xf] %v3293
    %3358 = vst [vmem:[%s7 + $0x70] sm:$0xf] %v3294
    %3359 = vst [vmem:[%s7 + $0x74] sm:$0xf] %v3295
    %3360 = vst [vmem:[%s7 + $0x78] sm:$0xf] %v3296
    %3361 = vst [vmem:[%s7 + $0x7c] sm:$0xf] %v3297
    // Predicated region
    $region46: #{base_head_forward.1} parent=1 // pred_check
      _
    $region47: #{base_head_forward.1} parent=1 // pred_check_branch
      %3363 = sbr.rel (0) target = $region49
    $region48: #{base_head_forward.1} parent=1 // pred_region
      _
    $region49: #{base_head_forward.1} parent=1 // pred_fallthru
      _
    // Predicated region
    $region50: #{base_head_forward.1} parent=1 // pred_check
      _
    $region51: #{base_head_forward.1} parent=1 // pred_check_branch
      %3365 = sbr.rel (0) target = $region53
    $region52: #{base_head_forward.1} parent=1 // pred_region
      _
    $region53: #{base_head_forward.1} parent=1 // pred_fallthru
      _
    %3366 = vsyncpa [#allocation3], 1
    %3367 = vsyncpa [#allocation5], 1
    %3368 = vsyncpa [#allocation8], 1

</llo_original>
